<compile_context>
chip_gen: v7x
topology: tpu7x:2x2x1
jax: 0.10.0
libtpu: 0.0.40
codegen_flags: <defaults>
</compile_context>

<pallas_src>
import numpy as np

import jax
import jax.numpy as jnp
from jax import lax
from jax.experimental import pallas as pl
from jax.experimental.pallas import tpu as pltpu


def _round_up(n, m):
    return -(-n // m) * m


# ----------------------------------------------------------------------------
# Fused residual-block kernel (one grid step == `bb` images of the batch)
# ----------------------------------------------------------------------------
def _layer_kernel(xh_ref, t1_ref, b1_ref, t2_ref, ts_ref, b2_ref,
                  o_ref, a1p_ref):
    """
    xh_ref : (bb, H+2, W*Cin)   input, lane-packed rows, 1-row top/bottom halo
    t1_ref : (3, W*Cin, LMID)   conv1 row-tap Toeplitz weights (BN1 folded) bf16
    b1_ref : (1, LMID)          conv1 bias in padded-row layout (0 in pad cols)
    t2_ref : (3, LMID, W*Cout)  conv2 row-tap Toeplitz weights (BN2 folded) bf16
    ts_ref : (W*Cin, W*Cout)    1x1 skip-conv Toeplitz (BN_skip folded)     bf16
    b2_ref : (1, W*Cout)        combined conv2 + skip bias, tiled over W
    o_ref  : (bb, H, W*Cout)    lane-dense output rows (512 = 4x128 lanes)
    a1p_ref: VMEM (bb, H+2, LMID) f32 scratch: conv1 activation + 1-row halo
    """
    bb, Hp, WCin = xh_ref.shape
    H = Hp - 2
    LMID = t1_ref.shape[2]
    WCout = o_ref.shape[2]
    M = bb * H

    xh = xh_ref[...]                                     # (bb, H+2, W*Cin) f32

    # ---- conv1 (+folded BN1) + ReLU: 3 row-tap matmuls on the MXU -----------
    acc1 = jnp.zeros((M, LMID), jnp.float32)
    for kh in range(3):
        a = xh[:, kh:kh + H, :].reshape(M, WCin).astype(jnp.bfloat16)
        acc1 = acc1 + jnp.dot(a, t1_ref[kh],
                              preferred_element_type=jnp.float32)
    # pad columns of the padded-row layout have zero weights & zero bias, so
    # they stay exactly 0 through the ReLU (conv2's left/right halo).
    a1 = jnp.maximum(acc1 + b1_ref[...], 0.0)            # (M, LMID)

    # conv1 activation lives only in VMEM; zero just the two 1-row halo strips
    # (every step - never gated on program_id: scratch is per-core).
    zero_row = jnp.zeros((bb, 1, LMID), jnp.float32)
    a1p_ref[:, 0:1, :] = zero_row
    a1p_ref[:, Hp - 1:Hp, :] = zero_row
    a1p_ref[:, 1:1 + H, :] = a1.reshape(bb, H, LMID)

    # ---- conv2 (+folded BN2) + fused 1x1 skip (+BN_skip) + residual + ReLU --
    acc2 = jnp.zeros((M, WCout), jnp.float32)
    for kh in range(3):
        a = a1p_ref[:, kh:kh + H, :].reshape(M, LMID).astype(jnp.bfloat16)
        acc2 = acc2 + jnp.dot(a, t2_ref[kh],
                              preferred_element_type=jnp.float32)
    xc = xh[:, 1:1 + H, :].reshape(M, WCin).astype(jnp.bfloat16)
    acc2 = acc2 + jnp.dot(xc, ts_ref[...],
                          preferred_element_type=jnp.float32)

    out = jnp.maximum(acc2 + b2_ref[...], 0.0)
    o_ref[...] = out.reshape(bb, H, WCout).astype(o_ref.dtype)


def _pick_batch_block(B):
    """Largest bb in {8,4,2,1} dividing B while keeping >=2 grid steps."""
    for bb in (8, 4, 2, 1):
        if B % bb == 0 and B // bb >= 2:
            return bb
    for bb in (8, 4, 2, 1):
        if B % bb == 0:
            return bb
    return 1


@jax.jit
def _layer_forward(x_nchw, t1, b1p, t2, ts, b2s):
    """x_nchw: (B, Cin, H, W) f32. Weights are BN-folded Toeplitz slabs."""
    B, Cin, H, W = x_nchw.shape
    Cout = ts.shape[1] // W
    LMID = t1.shape[2]
    bb = _pick_batch_block(B)

    # NCHW -> lane-packed rows (B, H+2, W*Cin); only the H axis needs explicit
    # zero padding (the W-axis padding is folded into the Toeplitz weights).
    x_rows = jnp.transpose(x_nchw, (0, 2, 3, 1)).astype(jnp.float32)
    x_rows = jnp.pad(x_rows, ((0, 0), (1, 1), (0, 0), (0, 0)))
    x_rows = x_rows.reshape(B, H + 2, W * Cin)

    out = pl.pallas_call(
        _layer_kernel,
        out_shape=jax.ShapeDtypeStruct((B, H, W * Cout), jnp.float32),
        grid=(B // bb,),
        in_specs=[
            pl.BlockSpec((bb, H + 2, W * Cin), lambda i: (i, 0, 0)),
            pl.BlockSpec((3, W * Cin, LMID), lambda i: (0, 0, 0)),
            pl.BlockSpec((1, LMID), lambda i: (0, 0)),
            pl.BlockSpec((3, LMID, W * Cout), lambda i: (0, 0, 0)),
            pl.BlockSpec((W * Cin, W * Cout), lambda i: (0, 0)),
            pl.BlockSpec((1, W * Cout), lambda i: (0, 0)),
        ],
        out_specs=pl.BlockSpec((bb, H, W * Cout), lambda i: (i, 0, 0)),
        scratch_shapes=[pltpu.VMEM((bb, H + 2, LMID), jnp.float32)],
        compiler_params=pltpu.CompilerParams(
            dimension_semantics=("parallel",)),
    )(x_rows, t1, b1p, t2, ts, b2s)

    # lane-dense (B, H, W*Cout) -> NCHW to match the PyTorch return convention
    return jnp.transpose(out.reshape(B, H, W, Cout), (0, 3, 1, 2))


# ----------------------------------------------------------------------------
# Module wrapper: parameters, eval-mode BN folding, Toeplitz weight prep
# ----------------------------------------------------------------------------
def _fold_bn(w_oihw, b, gamma, beta, mean, var, eps=1e-5):
    """Fold eval-mode BatchNorm into a preceding conv's weight/bias."""
    scale = gamma / jnp.sqrt(var + eps)                   # (Cout,)
    w_f = w_oihw * scale[:, None, None, None]
    b_f = (b - mean) * scale + beta
    return w_f, b_f


class LayerPallas:
    """Pallas/TPU equivalent of the PyTorch `Layer` module (inference mode)."""

    def __init__(self, key, input_channels, output_channels):
        ks = jax.random.split(key, 9)
        f32 = jnp.float32
        Cin, Cout = input_channels, output_channels
        self.Cin, self.Cout = Cin, Cout

        def u(k, shape, fan_in):
            bound = 1.0 / float(fan_in) ** 0.5
            return jax.random.uniform(k, shape, f32, -bound, bound)

        # conv weights / biases (torch OIHW layout, torch-like uniform init)
        self.w1 = u(ks[0], (Cout, Cin, 3, 3), Cin * 9)
        self.b1 = u(ks[1], (Cout,), Cin * 9)
        self.w2 = u(ks[2], (Cout, Cout, 3, 3), Cout * 9)
        self.b2 = u(ks[3], (Cout,), Cout * 9)
        self.wd = u(ks[4], (Cout, Cin, 1, 1), Cin)
        self.bd = u(ks[5], (Cout,), Cin)

        # BatchNorm (eval mode) parameters, perturbed from defaults so the
        # folded math is actually exercised.
        def bn_params(k):
            k1, k2, k3, k4 = jax.random.split(k, 4)
            gamma = 1.0 + 0.2 * jax.random.normal(k1, (Cout,), f32)
            beta = 0.1 * jax.random.normal(k2, (Cout,), f32)
            mean = 0.1 * jax.random.normal(k3, (Cout,), f32)
            var = 0.5 + jax.random.uniform(k4, (Cout,), f32)
            return gamma, beta, mean, var

        self.bn1 = bn_params(ks[6])
        self.bn2 = bn_params(ks[7])
        self.bns = bn_params(ks[8])

        self._cache = {}   # per-image-width prepared Toeplitz weights

    # -- host-side one-time weight prep (BN fold + row-Toeplitz assembly) ----
    def _prepare(self, W):
        if W in self._cache:
            return self._cache[W]
        Cin, Cout = self.Cin, self.Cout

        w1f, b1f = _fold_bn(self.w1, self.b1, *self.bn1)
        w2f, b2f = _fold_bn(self.w2, self.b2, *self.bn2)
        wdf, bdf = _fold_bn(self.wd, self.bd, *self.bns)
        k1 = np.array(jnp.transpose(w1f, (2, 3, 1, 0)))   # (kh, kw, Cin, Cout)
        k2 = np.array(jnp.transpose(w2f, (2, 3, 1, 0)))   # (kh, kw, Cout, Cout)
        ws = np.array(wdf.reshape(Cout, Cin).T)           # (Cin, Cout)
        b1n, b2n, bdn = np.array(b1f), np.array(b2f), np.array(bdf)

        LIN = W * Cin                                      # input row width
        LMID = _round_up((W + 2) * Cout, 128)              # conv1 act row width
        LOUT = W * Cout                                    # output row width

        # conv1: unpadded input row -> padded (lane-dense) activation row.
        t1 = np.zeros((3, LIN, LMID), np.float32)
        for kh in range(3):
            for kw in range(3):
                for wi in range(W):
                    wo = wi + 1 - kw
                    if 0 <= wo < W:
                        t1[kh, wi * Cin:(wi + 1) * Cin,
                           (wo + 1) * Cout:(wo + 2) * Cout] = k1[kh, kw]
        b1p = np.zeros((LMID,), np.float32)
        b1p[Cout:(W + 1) * Cout] = np.tile(b1n, W)

        # conv2: padded activation row -> unpadded output row.
        t2 = np.zeros((3, LMID, LOUT), np.float32)
        for kh in range(3):
            for kw in range(3):
                for wip in range(W + 2):
                    wo = wip - kw            # (wip-1) + 1 - kw
                    if 0 <= wo < W:
                        t2[kh, wip * Cout:(wip + 1) * Cout,
                           wo * Cout:(wo + 1) * Cout] = k2[kh, kw]

        # 1x1 skip conv: block-diagonal, accumulated with conv2.
        tskip = np.zeros((LIN, LOUT), np.float32)
        for wi in range(W):
            tskip[wi * Cin:(wi + 1) * Cin, wi * Cout:(wi + 1) * Cout] = ws
        b2s = np.tile(b2n + bdn, W)

        prep = (jnp.asarray(t1, jnp.bfloat16),
                jnp.asarray(b1p, jnp.float32).reshape(1, LMID),
                jnp.asarray(t2, jnp.bfloat16),
                jnp.asarray(tskip, jnp.bfloat16),
                jnp.asarray(b2s, jnp.float32).reshape(1, LOUT))
        self._cache[W] = prep
        return prep

    def __call__(self, x_nchw):
        W = x_nchw.shape[3]
        t1, b1p, t2, ts, b2s = self._prepare(W)
        return _layer_forward(x_nchw, t1, b1p, t2, ts, b2s)


# ----------------------------------------------------------------------------
# Pure-JAX reference (mirrors the PyTorch forward, eval-mode BN) for checking
# ----------------------------------------------------------------------------
def _reference_forward(x, layer):
    eps = 1e-5

    def conv(x, w, b, pad):
        y = lax.conv_general_dilated(
            x, w, window_strides=(1, 1), padding=[(pad, pad), (pad, pad)],
            dimension_numbers=("NCHW", "OIHW", "NCHW"),
            precision=lax.Precision.HIGHEST)
        return y + b[None, :, None, None]

    def bn(x, p):
        g, beta, m, v = p
        return (g[None, :, None, None] * (x - m[None, :, None, None])
                / jnp.sqrt(v[None, :, None, None] + eps)
                + beta[None, :, None, None])

    x_skip = x
    h = jax.nn.relu(bn(conv(x, layer.w1, layer.b1, 1), layer.bn1))
    h = bn(conv(h, layer.w2, layer.b2, 1), layer.bn2)
    s = bn(conv(x_skip, layer.wd, layer.bd, 0), layer.bns)
    return jax.nn.relu(h + s)


# ----------------------------------------------------------------------------
if __name__ == "__main__":
    key = jax.random.PRNGKey(0)
    k_param, k_x = jax.random.split(key)

    B, Cin, H, W, Cout = 2, 4, 16, 16, 32
    x = jax.random.normal(k_x, (B, Cin, H, W), jnp.float32)   # NCHW like torch

    layer = LayerPallas(k_param, input_channels=Cin, output_channels=Cout)

    y = jax.block_until_ready(layer(x))
    assert y.shape == (B, Cout, H, W), y.shape
    assert y.dtype == jnp.float32

    # Sanity check vs a pure-JAX/XLA reference of the same forward pass.
    # Tolerance covers the intentional bf16 MXU inputs (f32 accumulation).
    y_ref = jax.block_until_ready(_reference_forward(x, layer))
    max_err = float(jnp.max(jnp.abs(y - y_ref)))
    assert jnp.allclose(y, y_ref, rtol=5e-2, atol=5e-2), max_err

    print("KERNEL_OK")
</pallas_src>

<mosaic_0001>
module attributes {stable_mosaic.version = 11 : i64} {
  func.func @_layer_kernel(%arg0: i32, %arg1: memref<1x18x64xf32, #tpu.memory_space<vmem>>, %arg2: memref<3x64x640xbf16, #tpu.memory_space<vmem>>, %arg3: memref<1x640xf32, #tpu.memory_space<vmem>>, %arg4: memref<3x640x512xbf16, #tpu.memory_space<vmem>>, %arg5: memref<64x512xbf16, #tpu.memory_space<vmem>>, %arg6: memref<1x512xf32, #tpu.memory_space<vmem>>, %arg7: memref<1x16x512xf32, #tpu.memory_space<vmem>>, %arg8: memref<1x18x640xf32, #tpu.memory_space<vmem>>) attributes {dimension_semantics = [#tpu.dimension_semantics<parallel>], iteration_bounds = array<i64: 2>, scalar_prefetch = 0 : i64, scratch_operands = 1 : i64, tpu.core_type = #tpu.core_type<tc>, window_params = [{transform_indices = @transform_0, window_bounds = array<i64: 1, 18, 64>}, {pipeline_mode = #tpu.pipeline_mode<synchronous>, transform_indices = @transform_1, window_bounds = array<i64: 3, 64, 640>}, {pipeline_mode = #tpu.pipeline_mode<synchronous>, transform_indices = @transform_2, window_bounds = array<i64: 1, 640>}, {pipeline_mode = #tpu.pipeline_mode<synchronous>, transform_indices = @transform_3, window_bounds = array<i64: 3, 640, 512>}, {pipeline_mode = #tpu.pipeline_mode<synchronous>, transform_indices = @transform_4, window_bounds = array<i64: 64, 512>}, {pipeline_mode = #tpu.pipeline_mode<synchronous>, transform_indices = @transform_5, window_bounds = array<i64: 1, 512>}, {transform_indices = @transform_6, window_bounds = array<i64: 1, 16, 512>}]} {
    %c0 = arith.constant 0 : index
    %c0_0 = arith.constant 0 : index
    %c0_1 = arith.constant 0 : index
    %0 = vector.load %arg1[%c0, %c0_0, %c0_1] : memref<1x18x64xf32, #tpu.memory_space<vmem>>, vector<1x18x64xf32>
    %cst = arith.constant 0.000000e+00 : f32
    %1 = vector.broadcast %cst : f32 to vector<16x640xf32>
    %2 = vector.extract_strided_slice %0 {offsets = [0, 0, 0], sizes = [1, 16, 64], strides = [1, 1, 1]} : vector<1x18x64xf32> to vector<1x16x64xf32>
    %3 = vector.shape_cast %2 : vector<1x16x64xf32> to vector<16x64xf32>
    %4 = arith.truncf %3 : vector<16x64xf32> to vector<16x64xbf16>
    %c0_2 = arith.constant 0 : index
    %c0_3 = arith.constant 0 : index
    %c0_4 = arith.constant 0 : index
    %5 = vector.load %arg2[%c0_2, %c0_3, %c0_4] : memref<3x64x640xbf16, #tpu.memory_space<vmem>>, vector<1x64x640xbf16>
    %6 = vector.shape_cast %5 : vector<1x64x640xbf16> to vector<64x640xbf16>
    %cst_5 = arith.constant dense<0.000000e+00> : vector<16x640xf32>
    %7 = tpu.matmul %4, %6, %cst_5 {dimension_numbers = #tpu.dot_dimension_numbers<[1], [0], [0], [1], [0, 0, 1, 1], [], []>} : vector<16x64xbf16>, vector<64x640xbf16>, vector<16x640xf32> -> vector<16x640xf32>
    %8 = arith.addf %1, %7 : vector<16x640xf32>
    %9 = vector.extract_strided_slice %0 {offsets = [0, 1, 0], sizes = [1, 16, 64], strides = [1, 1, 1]} : vector<1x18x64xf32> to vector<1x16x64xf32>
    %10 = vector.shape_cast %9 : vector<1x16x64xf32> to vector<16x64xf32>
    %11 = arith.truncf %10 : vector<16x64xf32> to vector<16x64xbf16>
    %c1 = arith.constant 1 : index
    %c0_6 = arith.constant 0 : index
    %c0_7 = arith.constant 0 : index
    %12 = vector.load %arg2[%c1, %c0_6, %c0_7] : memref<3x64x640xbf16, #tpu.memory_space<vmem>>, vector<1x64x640xbf16>
    %13 = vector.shape_cast %12 : vector<1x64x640xbf16> to vector<64x640xbf16>
    %cst_8 = arith.constant dense<0.000000e+00> : vector<16x640xf32>
    %14 = tpu.matmul %11, %13, %cst_8 {dimension_numbers = #tpu.dot_dimension_numbers<[1], [0], [0], [1], [0, 0, 1, 1], [], []>} : vector<16x64xbf16>, vector<64x640xbf16>, vector<16x640xf32> -> vector<16x640xf32>
    %15 = arith.addf %8, %14 : vector<16x640xf32>
    %16 = vector.extract_strided_slice %0 {offsets = [0, 2, 0], sizes = [1, 16, 64], strides = [1, 1, 1]} : vector<1x18x64xf32> to vector<1x16x64xf32>
    %17 = vector.shape_cast %16 : vector<1x16x64xf32> to vector<16x64xf32>
    %18 = arith.truncf %17 : vector<16x64xf32> to vector<16x64xbf16>
    %c2 = arith.constant 2 : index
    %c0_9 = arith.constant 0 : index
    %c0_10 = arith.constant 0 : index
    %19 = vector.load %arg2[%c2, %c0_9, %c0_10] : memref<3x64x640xbf16, #tpu.memory_space<vmem>>, vector<1x64x640xbf16>
    %20 = vector.shape_cast %19 : vector<1x64x640xbf16> to vector<64x640xbf16>
    %cst_11 = arith.constant dense<0.000000e+00> : vector<16x640xf32>
    %21 = tpu.matmul %18, %20, %cst_11 {dimension_numbers = #tpu.dot_dimension_numbers<[1], [0], [0], [1], [0, 0, 1, 1], [], []>} : vector<16x64xbf16>, vector<64x640xbf16>, vector<16x640xf32> -> vector<16x640xf32>
    %22 = arith.addf %15, %21 : vector<16x640xf32>
    %c0_12 = arith.constant 0 : index
    %c0_13 = arith.constant 0 : index
    %23 = vector.load %arg3[%c0_12, %c0_13] : memref<1x640xf32, #tpu.memory_space<vmem>>, vector<1x640xf32>
    %24 = vector.broadcast %23 : vector<1x640xf32> to vector<16x640xf32>
    %25 = arith.addf %22, %24 : vector<16x640xf32>
    %cst_14 = arith.constant 0.000000e+00 : f32
    %26 = vector.broadcast %cst_14 : f32 to vector<16x640xf32>
    %27 = arith.maximumf %25, %26 : vector<16x640xf32>
    %cst_15 = arith.constant 0.000000e+00 : f32
    %28 = vector.broadcast %cst_15 : f32 to vector<1x1x640xf32>
    %c0_16 = arith.constant 0 : index
    %c0_17 = arith.constant 0 : index
    %c0_18 = arith.constant 0 : index
    %29 = vector.load %arg8[%c0_16, %c0_17, %c0_18] : memref<1x18x640xf32, #tpu.memory_space<vmem>>, vector<1x1x640xf32>
    tpu.vector_store %arg8[%c0_16, %c0_17, %c0_18], %28 {strides = array<i32>} : memref<1x18x640xf32, #tpu.memory_space<vmem>>, vector<1x1x640xf32>,
    %c0_19 = arith.constant 0 : index
    %c17 = arith.constant 17 : index
    %c0_20 = arith.constant 0 : index
    %30 = vector.load %arg8[%c0_19, %c17, %c0_20] : memref<1x18x640xf32, #tpu.memory_space<vmem>>, vector<1x1x640xf32>
    tpu.vector_store %arg8[%c0_19, %c17, %c0_20], %28 {strides = array<i32>} : memref<1x18x640xf32, #tpu.memory_space<vmem>>, vector<1x1x640xf32>,
    %31 = vector.shape_cast %27 : vector<16x640xf32> to vector<1x16x640xf32>
    %c0_21 = arith.constant 0 : index
    %c1_22 = arith.constant 1 : index
    %c0_23 = arith.constant 0 : index
    %32 = vector.load %arg8[%c0_21, %c1_22, %c0_23] : memref<1x18x640xf32, #tpu.memory_space<vmem>>, vector<1x16x640xf32>
    tpu.vector_store %arg8[%c0_21, %c1_22, %c0_23], %31 {strides = array<i32>} : memref<1x18x640xf32, #tpu.memory_space<vmem>>, vector<1x16x640xf32>,
    %cst_24 = arith.constant 0.000000e+00 : f32
    %33 = vector.broadcast %cst_24 : f32 to vector<16x512xf32>
    %c0_25 = arith.constant 0 : index
    %c0_26 = arith.constant 0 : index
    %c0_27 = arith.constant 0 : index
    %34 = vector.load %arg8[%c0_25, %c0_26, %c0_27] : memref<1x18x640xf32, #tpu.memory_space<vmem>>, vector<1x16x640xf32>
    %35 = vector.shape_cast %34 : vector<1x16x640xf32> to vector<16x640xf32>
    %36 = arith.truncf %35 : vector<16x640xf32> to vector<16x640xbf16>
    %c0_28 = arith.constant 0 : index
    %c0_29 = arith.constant 0 : index
    %c0_30 = arith.constant 0 : index
    %37 = vector.load %arg4[%c0_28, %c0_29, %c0_30] : memref<3x640x512xbf16, #tpu.memory_space<vmem>>, vector<1x640x512xbf16>
    %38 = vector.shape_cast %37 : vector<1x640x512xbf16> to vector<640x512xbf16>
    %cst_31 = arith.constant dense<0.000000e+00> : vector<16x512xf32>
    %39 = tpu.matmul %36, %38, %cst_31 {dimension_numbers = #tpu.dot_dimension_numbers<[1], [0], [0], [1], [0, 0, 1, 1], [], []>} : vector<16x640xbf16>, vector<640x512xbf16>, vector<16x512xf32> -> vector<16x512xf32>
    %40 = arith.addf %33, %39 : vector<16x512xf32>
    %c0_32 = arith.constant 0 : index
    %c1_33 = arith.constant 1 : index
    %c0_34 = arith.constant 0 : index
    %41 = vector.load %arg8[%c0_32, %c1_33, %c0_34] : memref<1x18x640xf32, #tpu.memory_space<vmem>>, vector<1x16x640xf32>
    %42 = vector.shape_cast %41 : vector<1x16x640xf32> to vector<16x640xf32>
    %43 = arith.truncf %42 : vector<16x640xf32> to vector<16x640xbf16>
    %c1_35 = arith.constant 1 : index
    %c0_36 = arith.constant 0 : index
    %c0_37 = arith.constant 0 : index
    %44 = vector.load %arg4[%c1_35, %c0_36, %c0_37] : memref<3x640x512xbf16, #tpu.memory_space<vmem>>, vector<1x640x512xbf16>
    %45 = vector.shape_cast %44 : vector<1x640x512xbf16> to vector<640x512xbf16>
    %cst_38 = arith.constant dense<0.000000e+00> : vector<16x512xf32>
    %46 = tpu.matmul %43, %45, %cst_38 {dimension_numbers = #tpu.dot_dimension_numbers<[1], [0], [0], [1], [0, 0, 1, 1], [], []>} : vector<16x640xbf16>, vector<640x512xbf16>, vector<16x512xf32> -> vector<16x512xf32>
    %47 = arith.addf %40, %46 : vector<16x512xf32>
    %c0_39 = arith.constant 0 : index
    %c2_40 = arith.constant 2 : index
    %c0_41 = arith.constant 0 : index
    %48 = vector.load %arg8[%c0_39, %c2_40, %c0_41] : memref<1x18x640xf32, #tpu.memory_space<vmem>>, vector<1x16x640xf32>
    %49 = vector.shape_cast %48 : vector<1x16x640xf32> to vector<16x640xf32>
    %50 = arith.truncf %49 : vector<16x640xf32> to vector<16x640xbf16>
    %c2_42 = arith.constant 2 : index
    %c0_43 = arith.constant 0 : index
    %c0_44 = arith.constant 0 : index
    %51 = vector.load %arg4[%c2_42, %c0_43, %c0_44] : memref<3x640x512xbf16, #tpu.memory_space<vmem>>, vector<1x640x512xbf16>
    %52 = vector.shape_cast %51 : vector<1x640x512xbf16> to vector<640x512xbf16>
    %cst_45 = arith.constant dense<0.000000e+00> : vector<16x512xf32>
    %53 = tpu.matmul %50, %52, %cst_45 {dimension_numbers = #tpu.dot_dimension_numbers<[1], [0], [0], [1], [0, 0, 1, 1], [], []>} : vector<16x640xbf16>, vector<640x512xbf16>, vector<16x512xf32> -> vector<16x512xf32>
    %54 = arith.addf %47, %53 : vector<16x512xf32>
    %55 = vector.extract_strided_slice %0 {offsets = [0, 1, 0], sizes = [1, 16, 64], strides = [1, 1, 1]} : vector<1x18x64xf32> to vector<1x16x64xf32>
    %56 = vector.shape_cast %55 : vector<1x16x64xf32> to vector<16x64xf32>
    %57 = arith.truncf %56 : vector<16x64xf32> to vector<16x64xbf16>
    %c0_46 = arith.constant 0 : index
    %c0_47 = arith.constant 0 : index
    %58 = vector.load %arg5[%c0_46, %c0_47] : memref<64x512xbf16, #tpu.memory_space<vmem>>, vector<64x512xbf16>
    %cst_48 = arith.constant dense<0.000000e+00> : vector<16x512xf32>
    %59 = tpu.matmul %57, %58, %cst_48 {dimension_numbers = #tpu.dot_dimension_numbers<[1], [0], [0], [1], [0, 0, 1, 1], [], []>} : vector<16x64xbf16>, vector<64x512xbf16>, vector<16x512xf32> -> vector<16x512xf32>
    %60 = arith.addf %54, %59 : vector<16x512xf32>
    %c0_49 = arith.constant 0 : index
    %c0_50 = arith.constant 0 : index
    %61 = vector.load %arg6[%c0_49, %c0_50] : memref<1x512xf32, #tpu.memory_space<vmem>>, vector<1x512xf32>
    %62 = vector.broadcast %61 : vector<1x512xf32> to vector<16x512xf32>
    %63 = arith.addf %60, %62 : vector<16x512xf32>
    %cst_51 = arith.constant 0.000000e+00 : f32
    %64 = vector.broadcast %cst_51 : f32 to vector<16x512xf32>
    %65 = arith.maximumf %63, %64 : vector<16x512xf32>
    %66 = vector.shape_cast %65 : vector<16x512xf32> to vector<1x16x512xf32>
    %c0_52 = arith.constant 0 : index
    %c0_53 = arith.constant 0 : index
    %c0_54 = arith.constant 0 : index
    %67 = vector.load %arg7[%c0_52, %c0_53, %c0_54] : memref<1x16x512xf32, #tpu.memory_space<vmem>>, vector<1x16x512xf32>
    tpu.vector_store %arg7[%c0_52, %c0_53, %c0_54], %66 {strides = array<i32>} : memref<1x16x512xf32, #tpu.memory_space<vmem>>, vector<1x16x512xf32>,
    return
  }
  func.func @transform_0(%arg0: i32) -> (i32, i32, i32) {
    %c0_i32 = arith.constant 0 : i32
    %c0_i32_0 = arith.constant 0 : i32
    %c0_i32_1 = arith.constant 0 : i32
    return %arg0, %c0_i32, %c0_i32_0 : i32, i32, i32
  }
  func.func @transform_1(%arg0: i32) -> (i32, i32, i32) {
    %c0_i32 = arith.constant 0 : i32
    %c0_i32_0 = arith.constant 0 : i32
    %c0_i32_1 = arith.constant 0 : i32
    %c0_i32_2 = arith.constant 0 : i32
    return %c0_i32, %c0_i32_0, %c0_i32_1 : i32, i32, i32
  }
  func.func @transform_2(%arg0: i32) -> (i32, i32) {
    %c0_i32 = arith.constant 0 : i32
    %c0_i32_0 = arith.constant 0 : i32
    %c0_i32_1 = arith.constant 0 : i32
    return %c0_i32, %c0_i32_0 : i32, i32
  }
  func.func @transform_3(%arg0: i32) -> (i32, i32, i32) {
    %c0_i32 = arith.constant 0 : i32
    %c0_i32_0 = arith.constant 0 : i32
    %c0_i32_1 = arith.constant 0 : i32
    %c0_i32_2 = arith.constant 0 : i32
    return %c0_i32, %c0_i32_0, %c0_i32_1 : i32, i32, i32
  }
  func.func @transform_4(%arg0: i32) -> (i32, i32) {
    %c0_i32 = arith.constant 0 : i32
    %c0_i32_0 = arith.constant 0 : i32
    %c0_i32_1 = arith.constant 0 : i32
    return %c0_i32, %c0_i32_0 : i32, i32
  }
  func.func @transform_5(%arg0: i32) -> (i32, i32) {
    %c0_i32 = arith.constant 0 : i32
    %c0_i32_0 = arith.constant 0 : i32
    %c0_i32_1 = arith.constant 0 : i32
    return %c0_i32, %c0_i32_0 : i32, i32
  }
  func.func @transform_6(%arg0: i32) -> (i32, i32, i32) {
    %c0_i32 = arith.constant 0 : i32
    %c0_i32_0 = arith.constant 0 : i32
    %c0_i32_1 = arith.constant 0 : i32
    return %arg0, %c0_i32, %c0_i32_0 : i32, i32, i32
  }
}

</mosaic_0001>

<llo_original>
// kernel: _layer_forward.1
$region0: #{_layer_forward.1}
  #allocation0 [shape = 'u32[]', space=smem, size = 0x4, offset = 0x4, fixed_abs, tag = 'smem constant byte address 0x4 - core index']
  #allocation1 [shape = 'u32[144,128]{1,0:T(1,128)}', space=vmem, size = 0x12000, scoped, tag = 'internal scratch']
  #allocation2 [shape = 'f32[1,18,640]{2,1,0:T(8,128)}', space=vmem, size = 0xf000, scoped, tag = 'scratch operand']
  %s0 = inlined_call_operand.vmem [shape: f32[2,18,64], index: 0, kind: input, shape index: {}]
  %s1 = inlined_call_operand.hbm [shape: bf16[3,64,640], index: 1, kind: input, shape index: {}]
  %s2 = inlined_call_operand.hbm [shape: f32[1,640], index: 2, kind: input, shape index: {}]
  %s3 = inlined_call_operand.hbm [shape: bf16[3,640,512], index: 3, kind: input, shape index: {}]
  %s4 = inlined_call_operand.hbm [shape: bf16[64,512], index: 4, kind: input, shape index: {}]
  %s5 = inlined_call_operand.hbm [shape: f32[1,512], index: 5, kind: input, shape index: {}]
  %s6 = inlined_call_operand.vmem [shape: f32[2,16,512], index: 6, kind: output, shape index: {}]
  %s7 = sld [smem:[#allocation0]]
  $region77: #{_layer_forward.1} parent=0
    _
  %s9 = ssub.s32 1, %s7
  %s10 = scalar_select 0, %s9, %s7
  $region1: #{_layer_forward.1} parent=0
    #allocation3 [shape = 'u8[245760]{0}', space=vmem, size = 0x3c000, scoped, tag = 'input window, operand 1, single buffered']
    #allocation4 [shape = 's32[2]{0}', space=sflag, size = 0x8, scoped, tag = 'scoped memory for _layer_forward.1']
    #allocation5 [shape = 'u8[2560]{0}', space=vmem, size = 0xc00, scoped, tag = 'input window, operand 2, single buffered']
    #allocation6 [shape = 's32[1]{0}', space=sflag, size = 0x4, scoped, tag = 'scoped memory for _layer_forward.1']
    #allocation7 [shape = 'u8[1966080]{0}', space=vmem, size = 0x1e0000, scoped, tag = 'input window, operand 3, single buffered']
    #allocation8 [shape = 'u8[65536]{0}', space=vmem, size = 0x10000, scoped, tag = 'input window, operand 4, single buffered']
    #allocation9 [shape = 's32[1]{0}', space=sflag, size = 0x4, scoped, tag = 'scoped memory for _layer_forward.1']
    #allocation10 [shape = 'u8[2048]{0}', space=vmem, size = 0x800, scoped, tag = 'input window, operand 5, single buffered']
    %11 = vsyncpa [#allocation4], 0
    %12 = vsyncpa [#allocation6], 0
    %13 = vsyncpa [#allocation9], 0
    loop: start=0, step=1, limit=4
    $region2: #{_layer_forward.1} parent=1 // loop_pre_header
      _
    $region3: #{_layer_forward.1} parent=1 // loop_header
      %s15 = sphi 0, %s19
      %p16 = scmp.ge.s32.totalorder %s15, 4
      %s25 = sphi 0, %s27
      %s28 = sphi 0, %s25
      %s29 = sphi 0, %s28
      %s45 = sphi 0, %s29
      %s49 = sphi 0, %s49
      %s51 = sphi 0, %s49
      %s52 = sphi 0, %s51
      %s66 = sphi 0, %s52
      %s70 = sphi 0, %s70
      %s72 = sphi 0, %s70
      %s73 = sphi 0, %s72
      %s87 = sphi 0, %s73
      %s91 = sphi 0, %s91
      %s93 = sphi 0, %s91
      %s94 = sphi 0, %s93
      %s108 = sphi 0, %s94
      %s112 = sphi 0, %s112
      %s114 = sphi 0, %s112
      %s115 = sphi 0, %s114
      %s129 = sphi 0, %s115
      %s133 = sphi 0, %s133
      %s135 = sphi 0, %s133
      %s136 = sphi 0, %s135
      %s150 = sphi 0, %s136
      %s156 = sphi 0, %s158
      %s159 = sphi 0, %s156
      %s160 = sphi 0, %s159
      %s176 = sphi 0, %s160
    $region4: #{_layer_forward.1} parent=1 // loop_header_branch
      %18 = sbr.rel (%p16) target = $region8
    $region5: #{_layer_forward.1} parent=1 // loop_body
      %s20 = ssub.s32 %s15, 1
      %s21 = ssub.s32 %s15, 2
      %s22 = sadd.s32 %s15, 1
      %s23 = ssub.s32 %s15, %s22
      %p24 = scmp.eq.s32.totalorder %s23, 0
      %s26 = sadd.s32 %s25, 1
      %s27 = scalar_select %p24, %s25, %s26
      %p30 = pneg %p24
      %p31 = scmp.eq.s32.totalorder %s15, 1
      %p32 = por %p30, %p31
      %p33 = scmp.ne.s32.totalorder %s25, %s28
      %p34 = scmp.eq.s32.totalorder %s15, 0
      %p35 = por %p33, %p34
      %p36 = scmp.ne.s32.totalorder %s25, %s28
      %p37 = scmp.eq.s32.totalorder %s20, 1
      %p38 = por %p36, %p37
      %p39 = scmp.ne.s32.totalorder %s28, %s29
      %p40 = scmp.eq.s32.totalorder %s20, 0
      %p41 = por %p39, %p40
      %p42 = scmp.ne.s32.totalorder %s28, %s29
      %p43 = scmp.eq.s32.totalorder %s21, 1
      %p44 = por %p42, %p43
      %p46 = scmp.ne.s32.totalorder %s29, %s45
      %p47 = scmp.eq.s32.totalorder %s21, 0
      %p48 = por %p46, %p47
      %s50 = sadd.s32 %s49, 1
      %p53 = scmp.eq.s32.totalorder %s15, 1
      %p54 = scmp.ne.s32.totalorder %s49, %s51
      %p55 = scmp.eq.s32.totalorder %s15, 0
      %p56 = por %p54, %p55
      %p57 = scmp.ne.s32.totalorder %s49, %s51
      %p58 = scmp.eq.s32.totalorder %s20, 1
      %p59 = por %p57, %p58
      %p60 = scmp.ne.s32.totalorder %s51, %s52
      %p61 = scmp.eq.s32.totalorder %s20, 0
      %p62 = por %p60, %p61
      %p63 = scmp.ne.s32.totalorder %s51, %s52
      %p64 = scmp.eq.s32.totalorder %s21, 1
      %p65 = por %p63, %p64
      %p67 = scmp.ne.s32.totalorder %s52, %s66
      %p68 = scmp.eq.s32.totalorder %s21, 0
      %p69 = por %p67, %p68
      %s71 = sadd.s32 %s70, 1
      %p74 = scmp.eq.s32.totalorder %s15, 1
      %p75 = scmp.ne.s32.totalorder %s70, %s72
      %p76 = scmp.eq.s32.totalorder %s15, 0
      %p77 = por %p75, %p76
      %p78 = scmp.ne.s32.totalorder %s70, %s72
      %p79 = scmp.eq.s32.totalorder %s20, 1
      %p80 = por %p78, %p79
      %p81 = scmp.ne.s32.totalorder %s72, %s73
      %p82 = scmp.eq.s32.totalorder %s20, 0
      %p83 = por %p81, %p82
      %p84 = scmp.ne.s32.totalorder %s72, %s73
      %p85 = scmp.eq.s32.totalorder %s21, 1
      %p86 = por %p84, %p85
      %p88 = scmp.ne.s32.totalorder %s73, %s87
      %p89 = scmp.eq.s32.totalorder %s21, 0
      %p90 = por %p88, %p89
      %s92 = sadd.s32 %s91, 1
      %p95 = scmp.eq.s32.totalorder %s15, 1
      %p96 = scmp.ne.s32.totalorder %s91, %s93
      %p97 = scmp.eq.s32.totalorder %s15, 0
      %p98 = por %p96, %p97
      %p99 = scmp.ne.s32.totalorder %s91, %s93
      %p100 = scmp.eq.s32.totalorder %s20, 1
      %p101 = por %p99, %p100
      %p102 = scmp.ne.s32.totalorder %s93, %s94
      %p103 = scmp.eq.s32.totalorder %s20, 0
      %p104 = por %p102, %p103
      %p105 = scmp.ne.s32.totalorder %s93, %s94
      %p106 = scmp.eq.s32.totalorder %s21, 1
      %p107 = por %p105, %p106
      %p109 = scmp.ne.s32.totalorder %s94, %s108
      %p110 = scmp.eq.s32.totalorder %s21, 0
      %p111 = por %p109, %p110
      %s113 = sadd.s32 %s112, 1
      %p116 = scmp.eq.s32.totalorder %s15, 1
      %p117 = scmp.ne.s32.totalorder %s112, %s114
      %p118 = scmp.eq.s32.totalorder %s15, 0
      %p119 = por %p117, %p118
      %p120 = scmp.ne.s32.totalorder %s112, %s114
      %p121 = scmp.eq.s32.totalorder %s20, 1
      %p122 = por %p120, %p121
      %p123 = scmp.ne.s32.totalorder %s114, %s115
      %p124 = scmp.eq.s32.totalorder %s20, 0
      %p125 = por %p123, %p124
      %p126 = scmp.ne.s32.totalorder %s114, %s115
      %p127 = scmp.eq.s32.totalorder %s21, 1
      %p128 = por %p126, %p127
      %p130 = scmp.ne.s32.totalorder %s115, %s129
      %p131 = scmp.eq.s32.totalorder %s21, 0
      %p132 = por %p130, %p131
      %s134 = sadd.s32 %s133, 1
      %p137 = scmp.eq.s32.totalorder %s15, 1
      %p138 = scmp.ne.s32.totalorder %s133, %s135
      %p139 = scmp.eq.s32.totalorder %s15, 0
      %p140 = por %p138, %p139
      %p141 = scmp.ne.s32.totalorder %s133, %s135
      %p142 = scmp.eq.s32.totalorder %s20, 1
      %p143 = por %p141, %p142
      %p144 = scmp.ne.s32.totalorder %s135, %s136
      %p145 = scmp.eq.s32.totalorder %s20, 0
      %p146 = por %p144, %p145
      %p147 = scmp.ne.s32.totalorder %s135, %s136
      %p148 = scmp.eq.s32.totalorder %s21, 1
      %p149 = por %p147, %p148
      %p151 = scmp.ne.s32.totalorder %s136, %s150
      %p152 = scmp.eq.s32.totalorder %s21, 0
      %p153 = por %p151, %p152
      %s154 = ssub.s32 %s15, %s22
      %p155 = scmp.eq.s32.totalorder %s154, 0
      %s157 = sadd.s32 %s156, 1
      %s158 = scalar_select %p155, %s156, %s157
      %p161 = pneg %p155
      %p162 = scmp.eq.s32.totalorder %s15, 1
      %p163 = por %p161, %p162
      %p164 = scmp.ne.s32.totalorder %s156, %s159
      %p165 = scmp.eq.s32.totalorder %s15, 0
      %p166 = por %p164, %p165
      %p167 = scmp.ne.s32.totalorder %s156, %s159
      %p168 = scmp.eq.s32.totalorder %s20, 1
      %p169 = por %p167, %p168
      %p170 = scmp.ne.s32.totalorder %s159, %s160
      %p171 = scmp.eq.s32.totalorder %s20, 0
      %p172 = por %p170, %p171
      %p173 = scmp.ne.s32.totalorder %s159, %s160
      %p174 = scmp.eq.s32.totalorder %s21, 1
      %p175 = por %p173, %p174
      %p177 = scmp.ne.s32.totalorder %s160, %s176
      %p178 = scmp.eq.s32.totalorder %s21, 0
      %p179 = por %p177, %p178
      %p180 = scmp.le.s32.totalorder 1, %s15
      %p181 = scmp.lt.s32.totalorder %s15, 3
      %p182 = pnand %p180, %p181
      %p183 = pneg %p182
      // Predicated region
      $region9: #{_layer_forward.1} parent=5 // pred_check
        _
      $region10: #{_layer_forward.1} parent=5 // pred_check_branch
        %185 = sbr.rel (%p182) target = $region12
      $region11: #{_layer_forward.1} parent=5 // pred_region
        %s186 = ssub.s32 %s15, 1
        // Predicated region
        $region13: #{_layer_forward.1} parent=11 // pred_check
          %p187 = pneg %p62
        $region14: #{_layer_forward.1} parent=11 // pred_check_branch
          %189 = sbr.rel (%p187) target = $region16
        $region15: #{_layer_forward.1} parent=11 // pred_region
          %s191 = ssub.s32 7680, 7680
          %192 = vsyncadd [#allocation4], %s191
          %s193 = sshll.u32 [#allocation3], 4
          %s194 = int_to_ptr.vmem [resolvable:$true] %s193
          %199 = dma.hbm_to_vmem [thread:$0]  %s1, 7680, %s194, [#allocation4], 320, 320, 20
        $region16: #{_layer_forward.1} parent=11 // pred_fallthru
          _
        // Predicated region
        $region17: #{_layer_forward.1} parent=11 // pred_check
          %p200 = pneg %p83
        $region18: #{_layer_forward.1} parent=11 // pred_check_branch
          %202 = sbr.rel (%p200) target = $region20
        $region19: #{_layer_forward.1} parent=11 // pred_region
          %s204 = ssub.s32 80, 80
          %205 = vsyncadd [#allocation6], %s204
          %s207 = sshll.u32 [#allocation5], 4
          %s208 = int_to_ptr.vmem [resolvable:$true] %s207
          %210 = dma.hbm_to_vmem [thread:$0]  %s2, 80, %s208, [#allocation6]
        $region20: #{_layer_forward.1} parent=11 // pred_fallthru
          _
        // Predicated region
        $region21: #{_layer_forward.1} parent=11 // pred_check
          %p211 = pneg %p104
        $region22: #{_layer_forward.1} parent=11 // pred_check_branch
          %213 = sbr.rel (%p211) target = $region24
        $region23: #{_layer_forward.1} parent=11 // pred_region
          %s215 = ssub.s32 61440, 61440
          %216 = vsyncadd [#allocation6], %s215
          %s217 = sshll.u32 [#allocation7], 4
          %s218 = int_to_ptr.vmem [resolvable:$true] %s217
          %223 = dma.hbm_to_vmem [thread:$0]  %s3, 61440, %s218, [#allocation6], 256, 256, 16
        $region24: #{_layer_forward.1} parent=11 // pred_fallthru
          _
        // Predicated region
        $region25: #{_layer_forward.1} parent=11 // pred_check
          %p224 = pneg %p125
        $region26: #{_layer_forward.1} parent=11 // pred_check_branch
          %226 = sbr.rel (%p224) target = $region28
        $region27: #{_layer_forward.1} parent=11 // pred_region
          %s228 = ssub.s32 2048, 2048
          %229 = vsyncadd [#allocation9], %s228
          %s230 = sshll.u32 [#allocation8], 4
          %s231 = int_to_ptr.vmem [resolvable:$true] %s230
          %236 = dma.hbm_to_vmem [thread:$0]  %s4, 2048, %s231, [#allocation9], 256, 256, 16
        $region28: #{_layer_forward.1} parent=11 // pred_fallthru
          _
        // Predicated region
        $region29: #{_layer_forward.1} parent=11 // pred_check
          %p237 = pneg %p146
        $region30: #{_layer_forward.1} parent=11 // pred_check_branch
          %239 = sbr.rel (%p237) target = $region32
        $region31: #{_layer_forward.1} parent=11 // pred_region
          %s241 = ssub.s32 64, 64
          %242 = vsyncadd [#allocation9], %s241
          %s244 = sshll.u32 [#allocation10], 4
          %s245 = int_to_ptr.vmem [resolvable:$true] %s244
          %247 = dma.hbm_to_vmem [thread:$0]  %s5, 64, %s245, [#allocation9]
        $region32: #{_layer_forward.1} parent=11 // pred_fallthru
          _
      $region12: #{_layer_forward.1} parent=5 // pred_fallthru
        _
      %p248 = scmp.lt.s32.totalorder %s15, 2
      // Predicated region
      $region33: #{_layer_forward.1} parent=5 // pred_check
        %p249 = pneg %p248
      $region34: #{_layer_forward.1} parent=5 // pred_check_branch
        %251 = sbr.rel (%p249) target = $region36
      $region35: #{_layer_forward.1} parent=5 // pred_region
        // Predicated region
        $region37: #{_layer_forward.1} parent=35 // pred_check
          %p252 = pneg %p35
        $region38: #{_layer_forward.1} parent=35 // pred_check_branch
          %254 = sbr.rel (%p252) target = $region40
        $region39: #{_layer_forward.1} parent=35 // pred_region
          %p255 = scmp.lt.s32.totalorder %s15, 1
          %s256 = scalar_select %p255, %s15, 1
          %s257 = smul.addr %s256, 3
          %s258 = smul.addr %s257, 8
          %s259 = scalar_lea.vmem %s0, %s258
        $region40: #{_layer_forward.1} parent=35 // pred_fallthru
          _
      $region36: #{_layer_forward.1} parent=5 // pred_fallthru
        _
      %p260 = scmp.le.s32.totalorder 1, %s15
      %p261 = scmp.lt.s32.totalorder %s15, 3
      %p262 = pnand %p260, %p261
      %p263 = pneg %p262
      // Predicated region
      $region41: #{_layer_forward.1} parent=5 // pred_check
        _
      $region42: #{_layer_forward.1} parent=5 // pred_check_branch
        %265 = sbr.rel (%p262) target = $region44
      $region43: #{_layer_forward.1} parent=5 // pred_region
        %s266 = ssub.s32 %s15, 1
        // Predicated region
        $region45: #{_layer_forward.1} parent=43 // pred_check
          %p267 = pneg %p62
        $region46: #{_layer_forward.1} parent=43 // pred_check_branch
          %269 = sbr.rel (%p267) target = $region48
        $region47: #{_layer_forward.1} parent=43 // pred_region
          %270 = dma.done [#allocation4], 7680
        $region48: #{_layer_forward.1} parent=43 // pred_fallthru
          _
        // Predicated region
        $region49: #{_layer_forward.1} parent=43 // pred_check
          %p271 = pneg %p83
        $region50: #{_layer_forward.1} parent=43 // pred_check_branch
          %273 = sbr.rel (%p271) target = $region52
        $region51: #{_layer_forward.1} parent=43 // pred_region
          %274 = dma.done [#allocation6], 80
        $region52: #{_layer_forward.1} parent=43 // pred_fallthru
          _
        // Predicated region
        $region53: #{_layer_forward.1} parent=43 // pred_check
          %p275 = pneg %p104
        $region54: #{_layer_forward.1} parent=43 // pred_check_branch
          %277 = sbr.rel (%p275) target = $region56
        $region55: #{_layer_forward.1} parent=43 // pred_region
          %278 = dma.done [#allocation6], 61440
        $region56: #{_layer_forward.1} parent=43 // pred_fallthru
          _
        // Predicated region
        $region57: #{_layer_forward.1} parent=43 // pred_check
          %p279 = pneg %p125
        $region58: #{_layer_forward.1} parent=43 // pred_check_branch
          %281 = sbr.rel (%p279) target = $region60
        $region59: #{_layer_forward.1} parent=43 // pred_region
          %282 = dma.done [#allocation9], 2048
        $region60: #{_layer_forward.1} parent=43 // pred_fallthru
          _
        // Predicated region
        $region61: #{_layer_forward.1} parent=43 // pred_check
          %p283 = pneg %p146
        $region62: #{_layer_forward.1} parent=43 // pred_check_branch
          %285 = sbr.rel (%p283) target = $region64
        $region63: #{_layer_forward.1} parent=43 // pred_region
          %286 = dma.done [#allocation9], 64
        $region64: #{_layer_forward.1} parent=43 // pred_fallthru
          _
        %p287 = scmp.lt.s32.totalorder %s20, 1
        %s288 = scalar_select %p287, %s20, 1
        %s289 = smul.addr %s288, 3
        %s290 = smul.addr %s289, 8
        %s291 = scalar_lea.vmem %s0, %s290
        %p292 = pneg %p41
        %p293 = pneg %p38
        %p294 = pneg %p62
        %p295 = pneg %p59
        %p296 = pneg %p83
        %p297 = pneg %p80
        %p298 = pneg %p104
        %p299 = pneg %p101
        %p300 = pneg %p125
        %p301 = pneg %p122
        %p302 = pneg %p146
        %p303 = pneg %p143
        %p304 = pneg %p172
        %p305 = pneg %p169
        %p306 = scmp.lt.s32.totalorder %s20, 1
        %s307 = scalar_select %p306, %s20, 1
        %s308 = smul.addr %s307, 8
        %s309 = smul.addr %s308, 8
        %s310 = scalar_lea.vmem %s6, %s309
        %p311 = scmp.lt.s32.totalorder %s20, 1
        %s312 = scalar_select %p311, %s20, 1
        %s313 = smul.addr %s312, 3
        %s314 = smul.addr %s313, 8
        %s315 = scalar_lea.vmem %s0, %s314
        %p316 = scmp.lt.s32.totalorder %s20, 1
        %s317 = scalar_select %p316, %s20, 1
        %s318 = smul.addr %s317, 8
        %s319 = smul.addr %s318, 8
        %s320 = scalar_lea.vmem %s6, %s319
        %v322 = vld [vmem:[%s315] sm:$0xff]
        %v323 = vld [vmem:[%s315 + $0x8] sm:$0xff]
        %v324 = vld [vmem:[%s315 + $0x10] sm:$0x3]
        %v325 = vpack.c.bf16 %v323, %v322
        %v326 = vld [vmem:[#allocation3] sm:$0xff]
        %v327 = vld [vmem:[#allocation3 + $0x8] sm:$0xff]
        %v328 = vld [vmem:[#allocation3 + $0x10] sm:$0xf]
        %v329 = vld [vmem:[#allocation3 + $0x14] sm:$0xff]
        %v330 = vld [vmem:[#allocation3 + $0x1c] sm:$0xff]
        %v331 = vld [vmem:[#allocation3 + $0x24] sm:$0xf]
        %v332 = vld [vmem:[#allocation3 + $0x28] sm:$0xff]
        %v333 = vld [vmem:[#allocation3 + $0x30] sm:$0xff]
        %v334 = vld [vmem:[#allocation3 + $0x38] sm:$0xf]
        %v335 = vld [vmem:[#allocation3 + $0x3c] sm:$0xff]
        %v336 = vld [vmem:[#allocation3 + $0x44] sm:$0xff]
        %v337 = vld [vmem:[#allocation3 + $0x4c] sm:$0xf]
        %v338 = vld [vmem:[#allocation3 + $0x50] sm:$0xff]
        %v339 = vld [vmem:[#allocation3 + $0x58] sm:$0xff]
        %v340 = vld [vmem:[#allocation3 + $0x60] sm:$0xf]
        %v341 = vld [vmem:[#allocation3 + $0x64] sm:$0xff]
        %v342 = vld [vmem:[#allocation3 + $0x6c] sm:$0xff]
        %v343 = vld [vmem:[#allocation3 + $0x74] sm:$0xf]
        %v344 = vld [vmem:[#allocation3 + $0x78] sm:$0xff]
        %v345 = vld [vmem:[#allocation3 + $0x80] sm:$0xff]
        %v346 = vld [vmem:[#allocation3 + $0x88] sm:$0xf]
        %v347 = vld [vmem:[#allocation3 + $0x8c] sm:$0xff]
        %v348 = vld [vmem:[#allocation3 + $0x94] sm:$0xff]
        %v349 = vld [vmem:[#allocation3 + $0x9c] sm:$0xf]
        %v350 = vpack.c.bf16 %v324, %v324
        %s351 = scalar_lea.vmem [#allocation3], 160
        %v352 = vld [vmem:[%s351] sm:$0xff]
        %v353 = vld [vmem:[%s351 + $0x8] sm:$0xff]
        %v354 = vld [vmem:[%s351 + $0x10] sm:$0xf]
        %v355 = vld [vmem:[%s351 + $0x14] sm:$0xff]
        %v356 = vld [vmem:[%s351 + $0x1c] sm:$0xff]
        %v357 = vld [vmem:[%s351 + $0x24] sm:$0xf]
        %v358 = vld [vmem:[%s351 + $0x28] sm:$0xff]
        %v359 = vld [vmem:[%s351 + $0x30] sm:$0xff]
        %v360 = vld [vmem:[%s351 + $0x38] sm:$0xf]
        %v361 = vld [vmem:[%s351 + $0x3c] sm:$0xff]
        %v362 = vld [vmem:[%s351 + $0x44] sm:$0xff]
        %v363 = vld [vmem:[%s351 + $0x4c] sm:$0xf]
        %v364 = vld [vmem:[%s351 + $0x50] sm:$0xff]
        %v365 = vld [vmem:[%s351 + $0x58] sm:$0xff]
        %v366 = vld [vmem:[%s351 + $0x60] sm:$0xf]
        %v367 = vld [vmem:[%s351 + $0x64] sm:$0xff]
        %v368 = vld [vmem:[%s351 + $0x6c] sm:$0xff]
        %v369 = vld [vmem:[%s351 + $0x74] sm:$0xf]
        %v370 = vld [vmem:[%s351 + $0x78] sm:$0xff]
        %v371 = vld [vmem:[%s351 + $0x80] sm:$0xff]
        %v372 = vld [vmem:[%s351 + $0x88] sm:$0xf]
        %v373 = vld [vmem:[%s351 + $0x8c] sm:$0xff]
        %v374 = vld [vmem:[%s351 + $0x94] sm:$0xff]
        %v375 = vld [vmem:[%s351 + $0x9c] sm:$0xf]
        %vm376 = vsmask.f32 7424
        %v378 = vshrl.u32 %v325, 16
        %v380 = vshll.u32 %v325, 16
        %v382 = vrot.slane %v380, 1
        %v383 = vor.u32 %v378, %v382
        %v385 = vshll.u32 %v350, 16
        %v387 = vrot.slane %v385, 1
        %v388 = vsel %vm376, %v383, %v387
        %v413 = vunpack.c.l.b16 %v352
        %v414 = vunpack.c.h.b16 %v352
        %v415 = vunpack.c.l.b16 %v353
        %v416 = vunpack.c.h.b16 %v353
        %v417 = vunpack.c.l.b16 %v354
        %v418 = vunpack.c.l.b16 %v355
        %v419 = vunpack.c.h.b16 %v355
        %v420 = vunpack.c.l.b16 %v356
        %v421 = vunpack.c.h.b16 %v356
        %v422 = vunpack.c.l.b16 %v357
        %v423 = vunpack.c.l.b16 %v358
        %v424 = vunpack.c.h.b16 %v358
        %v425 = vunpack.c.l.b16 %v359
        %v426 = vunpack.c.h.b16 %v359
        %v427 = vunpack.c.l.b16 %v360
        %v428 = vunpack.c.l.b16 %v361
        %v429 = vunpack.c.h.b16 %v361
        %v430 = vunpack.c.l.b16 %v362
        %v431 = vunpack.c.h.b16 %v362
        %v432 = vunpack.c.l.b16 %v363
        %v433 = vunpack.c.l.b16 %v364
        %v434 = vunpack.c.h.b16 %v364
        %v435 = vunpack.c.l.b16 %v365
        %v436 = vunpack.c.h.b16 %v365
        %v437 = vunpack.c.l.b16 %v366
        %v438 = vunpack.c.l.b16 %v367
        %v439 = vunpack.c.h.b16 %v367
        %v440 = vunpack.c.l.b16 %v368
        %v441 = vunpack.c.h.b16 %v368
        %v442 = vunpack.c.l.b16 %v369
        %v443 = vunpack.c.l.b16 %v370
        %v444 = vunpack.c.h.b16 %v370
        %v445 = vunpack.c.l.b16 %v371
        %v446 = vunpack.c.h.b16 %v371
        %v447 = vunpack.c.l.b16 %v372
        %v448 = vunpack.c.l.b16 %v373
        %v449 = vunpack.c.h.b16 %v373
        %v450 = vunpack.c.l.b16 %v374
        %v451 = vunpack.c.h.b16 %v374
        %v452 = vunpack.c.l.b16 %v375
        %v453 = vpack.c.b16 %v418, %v413
        %v454 = vpack.c.b16 %v419, %v414
        %v455 = vpack.c.b16 %v420, %v415
        %v456 = vpack.c.b16 %v421, %v416
        %v457 = vpack.c.b16 %v422, %v417
        %v458 = vpack.c.b16 %v428, %v423
        %v459 = vpack.c.b16 %v429, %v424
        %v460 = vpack.c.b16 %v430, %v425
        %v461 = vpack.c.b16 %v431, %v426
        %v462 = vpack.c.b16 %v432, %v427
        %v463 = vpack.c.b16 %v438, %v433
        %v464 = vpack.c.b16 %v439, %v434
        %v465 = vpack.c.b16 %v440, %v435
        %v466 = vpack.c.b16 %v441, %v436
        %v467 = vpack.c.b16 %v442, %v437
        %v468 = vpack.c.b16 %v448, %v443
        %v469 = vpack.c.b16 %v449, %v444
        %v470 = vpack.c.b16 %v450, %v445
        %v471 = vpack.c.b16 %v451, %v446
        %v472 = vpack.c.b16 %v452, %v447
        %vm493 = vcmask 523264
        %v495 = vsel %vm493, %v388, 0
        %497 = vmatprep.subr.bf16.mxu0 %v454
        %498 = vmatpush1.bf16.msra.mxu0 %v453
        %499 = vmatprep.subr.bf16.mxu0 %v459
        %500 = vmatpush1.bf16.msra.mxu0 %v458
        %501 = vmatprep.subr.bf16.mxu0 %v464
        %502 = vmatpush1.bf16.msra.mxu0 %v463
        %503 = vmatprep.subr.bf16.mxu0 %v469
        %504 = vmatpush1.bf16.msra.mxu0 %v468
        %505 = vmatprep.subr.bf16.mxu0 0
        %506 = vmatpush1.bf16.msra.mxu0 0
        %507 = vmatprep.subr.bf16.mxu0 0
        %508 = vmatpush1.bf16.msra.mxu0 0
        %509 = vmatprep.subr.bf16.mxu0 0
        %510 = vmatpush1.bf16.msra.mxu0 0
        %511 = vmatprep.subr.bf16.mxu0 0
        %512 = vmatpush1.bf16.msra.mxu0 0
        %513 = vmatprep.subr.bf16.mxu0 0
        %514 = vmatpush1.bf16.msra.mxu0 0
        %515 = vmatprep.subr.bf16.mxu0 0
        %516 = vmatpush1.bf16.msra.mxu0 0
        %517 = vmatprep.subr.bf16.mxu0 0
        %518 = vmatpush1.bf16.msra.mxu0 0
        %519 = vmatprep.subr.bf16.mxu0 0
        %520 = vmatpush1.bf16.msra.mxu0 0
        %521 = vmatprep.subr.bf16.mxu0 0
        %522 = vmatpush1.bf16.msra.mxu0 0
        %523 = vmatprep.subr.bf16.mxu0 0
        %524 = vmatpush1.bf16.msra.mxu0 0
        %525 = vmatprep.subr.bf16.mxu0 0
        %526 = vmatpush1.bf16.msra.mxu0 0
        %527 = vmatprep.subr.bf16.mxu0 0
        %528 = vmatpush1.bf16.msra.mxu0 0
        %529 = vmatprep.mubr.bf16.mxu0 0
        %530 = vmatmul.mubr.bf16.gmra.mrb[0].mxu0 %v495
        %v531 = vpop.f32.mrb[0].mxu0
        %v532 = vadd.f32 0.0, %v531
        %v533 = vpop.f32.mrb[0].mxu0
        %v534 = vadd.f32 0.0, %v533
        %v535 = vpop.f32.mrb[0].mxu0
        %v536 = vadd.f32 0.0, %v535
        %v537 = vpop.f32.mrb[0].mxu0
        %v538 = vadd.f32 0.0, %v537
        %539 = vdwg.mxu0
        %540 = vmatprep.subr.bf16.mxu0 %v456
        %541 = vmatpush1.bf16.msra.mxu0 %v455
        %542 = vmatprep.subr.bf16.mxu0 %v461
        %543 = vmatpush1.bf16.msra.mxu0 %v460
        %544 = vmatprep.subr.bf16.mxu0 %v466
        %545 = vmatpush1.bf16.msra.mxu0 %v465
        %546 = vmatprep.subr.bf16.mxu0 %v471
        %547 = vmatpush1.bf16.msra.mxu0 %v470
        %548 = vmatprep.subr.bf16.mxu0 0
        %549 = vmatpush1.bf16.msra.mxu0 0
        %550 = vmatprep.subr.bf16.mxu0 0
        %551 = vmatpush1.bf16.msra.mxu0 0
        %552 = vmatprep.subr.bf16.mxu0 0
        %553 = vmatpush1.bf16.msra.mxu0 0
        %554 = vmatprep.subr.bf16.mxu0 0
        %555 = vmatpush1.bf16.msra.mxu0 0
        %556 = vmatprep.subr.bf16.mxu0 0
        %557 = vmatpush1.bf16.msra.mxu0 0
        %558 = vmatprep.subr.bf16.mxu0 0
        %559 = vmatpush1.bf16.msra.mxu0 0
        %560 = vmatprep.subr.bf16.mxu0 0
        %561 = vmatpush1.bf16.msra.mxu0 0
        %562 = vmatprep.subr.bf16.mxu0 0
        %563 = vmatpush1.bf16.msra.mxu0 0
        %564 = vmatprep.subr.bf16.mxu0 0
        %565 = vmatpush1.bf16.msra.mxu0 0
        %566 = vmatprep.subr.bf16.mxu0 0
        %567 = vmatpush1.bf16.msra.mxu0 0
        %568 = vmatprep.subr.bf16.mxu0 0
        %569 = vmatpush1.bf16.msra.mxu0 0
        %570 = vmatprep.subr.bf16.mxu0 0
        %571 = vmatpush1.bf16.msra.mxu0 0
        %572 = vmatprep.mubr.bf16.mxu0 0
        %573 = vmatmul.mubr.bf16.gmra.mrb[0].mxu0 %v495
        %v574 = vpop.f32.mrb[0].mxu0
        %v575 = vadd.f32 0.0, %v574
        %v576 = vpop.f32.mrb[0].mxu0
        %v577 = vadd.f32 0.0, %v576
        %v578 = vpop.f32.mrb[0].mxu0
        %v579 = vadd.f32 0.0, %v578
        %v580 = vpop.f32.mrb[0].mxu0
        %v581 = vadd.f32 0.0, %v580
        %582 = vdwg.mxu0
        %583 = vmatprep.subr.bf16.mxu0 0
        %584 = vmatpush1.bf16.msra.mxu0 %v457
        %585 = vmatprep.subr.bf16.mxu0 0
        %586 = vmatpush1.bf16.msra.mxu0 %v462
        %587 = vmatprep.subr.bf16.mxu0 0
        %588 = vmatpush1.bf16.msra.mxu0 %v467
        %589 = vmatprep.subr.bf16.mxu0 0
        %590 = vmatpush1.bf16.msra.mxu0 %v472
        %591 = vmatprep.subr.bf16.mxu0 0
        %592 = vmatpush1.bf16.msra.mxu0 0
        %593 = vmatprep.subr.bf16.mxu0 0
        %594 = vmatpush1.bf16.msra.mxu0 0
        %595 = vmatprep.subr.bf16.mxu0 0
        %596 = vmatpush1.bf16.msra.mxu0 0
        %597 = vmatprep.subr.bf16.mxu0 0
        %598 = vmatpush1.bf16.msra.mxu0 0
        %599 = vmatprep.subr.bf16.mxu0 0
        %600 = vmatpush1.bf16.msra.mxu0 0
        %601 = vmatprep.subr.bf16.mxu0 0
        %602 = vmatpush1.bf16.msra.mxu0 0
        %603 = vmatprep.subr.bf16.mxu0 0
        %604 = vmatpush1.bf16.msra.mxu0 0
        %605 = vmatprep.subr.bf16.mxu0 0
        %606 = vmatpush1.bf16.msra.mxu0 0
        %607 = vmatprep.subr.bf16.mxu0 0
        %608 = vmatpush1.bf16.msra.mxu0 0
        %609 = vmatprep.subr.bf16.mxu0 0
        %610 = vmatpush1.bf16.msra.mxu0 0
        %611 = vmatprep.subr.bf16.mxu0 0
        %612 = vmatpush1.bf16.msra.mxu0 0
        %613 = vmatprep.subr.bf16.mxu0 0
        %614 = vmatpush1.bf16.msra.mxu0 0
        %615 = vmatprep.mubr.bf16.mxu0 0
        %616 = vmatmul.mubr.bf16.gmra.mrb[0].mxu0 %v495
        %v617 = vpop.f32.mrb[0].mxu0
        %v618 = vadd.f32 0.0, %v617
        %v619 = vpop.f32.mrb[0].mxu0
        %v620 = vpop.f32.mrb[0].mxu0
        %v621 = vadd.f32 0.0, %v620
        %v622 = vpop.f32.mrb[0].mxu0
        %623 = vdwg.mxu0
        %v648 = vunpack.c.l.b16 %v326
        %v649 = vunpack.c.h.b16 %v326
        %v650 = vunpack.c.l.b16 %v327
        %v651 = vunpack.c.h.b16 %v327
        %v652 = vunpack.c.l.b16 %v328
        %v653 = vunpack.c.l.b16 %v329
        %v654 = vunpack.c.h.b16 %v329
        %v655 = vunpack.c.l.b16 %v330
        %v656 = vunpack.c.h.b16 %v330
        %v657 = vunpack.c.l.b16 %v331
        %v658 = vunpack.c.l.b16 %v332
        %v659 = vunpack.c.h.b16 %v332
        %v660 = vunpack.c.l.b16 %v333
        %v661 = vunpack.c.h.b16 %v333
        %v662 = vunpack.c.l.b16 %v334
        %v663 = vunpack.c.l.b16 %v335
        %v664 = vunpack.c.h.b16 %v335
        %v665 = vunpack.c.l.b16 %v336
        %v666 = vunpack.c.h.b16 %v336
        %v667 = vunpack.c.l.b16 %v337
        %v668 = vunpack.c.l.b16 %v338
        %v669 = vunpack.c.h.b16 %v338
        %v670 = vunpack.c.l.b16 %v339
        %v671 = vunpack.c.h.b16 %v339
        %v672 = vunpack.c.l.b16 %v340
        %v673 = vunpack.c.l.b16 %v341
        %v674 = vunpack.c.h.b16 %v341
        %v675 = vunpack.c.l.b16 %v342
        %v676 = vunpack.c.h.b16 %v342
        %v677 = vunpack.c.l.b16 %v343
        %v678 = vunpack.c.l.b16 %v344
        %v679 = vunpack.c.h.b16 %v344
        %v680 = vunpack.c.l.b16 %v345
        %v681 = vunpack.c.h.b16 %v345
        %v682 = vunpack.c.l.b16 %v346
        %v683 = vunpack.c.l.b16 %v347
        %v684 = vunpack.c.h.b16 %v347
        %v685 = vunpack.c.l.b16 %v348
        %v686 = vunpack.c.h.b16 %v348
        %v687 = vunpack.c.l.b16 %v349
        %v688 = vpack.c.b16 %v653, %v648
        %v689 = vpack.c.b16 %v654, %v649
        %v690 = vpack.c.b16 %v655, %v650
        %v691 = vpack.c.b16 %v656, %v651
        %v692 = vpack.c.b16 %v657, %v652
        %v693 = vpack.c.b16 %v663, %v658
        %v694 = vpack.c.b16 %v664, %v659
        %v695 = vpack.c.b16 %v665, %v660
        %v696 = vpack.c.b16 %v666, %v661
        %v697 = vpack.c.b16 %v667, %v662
        %v698 = vpack.c.b16 %v673, %v668
        %v699 = vpack.c.b16 %v674, %v669
        %v700 = vpack.c.b16 %v675, %v670
        %v701 = vpack.c.b16 %v676, %v671
        %v702 = vpack.c.b16 %v677, %v672
        %v703 = vpack.c.b16 %v683, %v678
        %v704 = vpack.c.b16 %v684, %v679
        %v705 = vpack.c.b16 %v685, %v680
        %v706 = vpack.c.b16 %v686, %v681
        %v707 = vpack.c.b16 %v687, %v682
        %v728 = vsel %vm493, %v325, 0
        %730 = vmatprep.subr.bf16.mxu0 %v689
        %731 = vmatpush1.bf16.msra.mxu0 %v688
        %732 = vmatprep.subr.bf16.mxu0 %v694
        %733 = vmatpush1.bf16.msra.mxu0 %v693
        %734 = vmatprep.subr.bf16.mxu0 %v699
        %735 = vmatpush1.bf16.msra.mxu0 %v698
        %736 = vmatprep.subr.bf16.mxu0 %v704
        %737 = vmatpush1.bf16.msra.mxu0 %v703
        %738 = vmatprep.subr.bf16.mxu0 0
        %739 = vmatpush1.bf16.msra.mxu0 0
        %740 = vmatprep.subr.bf16.mxu0 0
        %741 = vmatpush1.bf16.msra.mxu0 0
        %742 = vmatprep.subr.bf16.mxu0 0
        %743 = vmatpush1.bf16.msra.mxu0 0
        %744 = vmatprep.subr.bf16.mxu0 0
        %745 = vmatpush1.bf16.msra.mxu0 0
        %746 = vmatprep.subr.bf16.mxu0 0
        %747 = vmatpush1.bf16.msra.mxu0 0
        %748 = vmatprep.subr.bf16.mxu0 0
        %749 = vmatpush1.bf16.msra.mxu0 0
        %750 = vmatprep.subr.bf16.mxu0 0
        %751 = vmatpush1.bf16.msra.mxu0 0
        %752 = vmatprep.subr.bf16.mxu0 0
        %753 = vmatpush1.bf16.msra.mxu0 0
        %754 = vmatprep.subr.bf16.mxu0 0
        %755 = vmatpush1.bf16.msra.mxu0 0
        %756 = vmatprep.subr.bf16.mxu0 0
        %757 = vmatpush1.bf16.msra.mxu0 0
        %758 = vmatprep.subr.bf16.mxu0 0
        %759 = vmatpush1.bf16.msra.mxu0 0
        %760 = vmatprep.subr.bf16.mxu0 0
        %761 = vmatpush1.bf16.msra.mxu0 0
        %762 = vmatprep.mubr.bf16.mxu0 0
        %763 = vmatmul.mubr.bf16.gmra.mrb[0].mxu0 %v728
        %v764 = vpop.f32.mrb[0].mxu0
        %v765 = vadd.f32 %v532, %v764
        %v766 = vpop.f32.mrb[0].mxu0
        %v767 = vadd.f32 %v534, %v766
        %v768 = vpop.f32.mrb[0].mxu0
        %v769 = vadd.f32 %v536, %v768
        %v770 = vpop.f32.mrb[0].mxu0
        %v771 = vadd.f32 %v538, %v770
        %772 = vdwg.mxu0
        %773 = vmatprep.subr.bf16.mxu0 %v691
        %774 = vmatpush1.bf16.msra.mxu0 %v690
        %775 = vmatprep.subr.bf16.mxu0 %v696
        %776 = vmatpush1.bf16.msra.mxu0 %v695
        %777 = vmatprep.subr.bf16.mxu0 %v701
        %778 = vmatpush1.bf16.msra.mxu0 %v700
        %779 = vmatprep.subr.bf16.mxu0 %v706
        %780 = vmatpush1.bf16.msra.mxu0 %v705
        %781 = vmatprep.subr.bf16.mxu0 0
        %782 = vmatpush1.bf16.msra.mxu0 0
        %783 = vmatprep.subr.bf16.mxu0 0
        %784 = vmatpush1.bf16.msra.mxu0 0
        %785 = vmatprep.subr.bf16.mxu0 0
        %786 = vmatpush1.bf16.msra.mxu0 0
        %787 = vmatprep.subr.bf16.mxu0 0
        %788 = vmatpush1.bf16.msra.mxu0 0
        %789 = vmatprep.subr.bf16.mxu0 0
        %790 = vmatpush1.bf16.msra.mxu0 0
        %791 = vmatprep.subr.bf16.mxu0 0
        %792 = vmatpush1.bf16.msra.mxu0 0
        %793 = vmatprep.subr.bf16.mxu0 0
        %794 = vmatpush1.bf16.msra.mxu0 0
        %795 = vmatprep.subr.bf16.mxu0 0
        %796 = vmatpush1.bf16.msra.mxu0 0
        %797 = vmatprep.subr.bf16.mxu0 0
        %798 = vmatpush1.bf16.msra.mxu0 0
        %799 = vmatprep.subr.bf16.mxu0 0
        %800 = vmatpush1.bf16.msra.mxu0 0
        %801 = vmatprep.subr.bf16.mxu0 0
        %802 = vmatpush1.bf16.msra.mxu0 0
        %803 = vmatprep.subr.bf16.mxu0 0
        %804 = vmatpush1.bf16.msra.mxu0 0
        %805 = vmatprep.mubr.bf16.mxu0 0
        %806 = vmatmul.mubr.bf16.gmra.mrb[0].mxu0 %v728
        %v807 = vpop.f32.mrb[0].mxu0
        %v808 = vadd.f32 %v575, %v807
        %v809 = vpop.f32.mrb[0].mxu0
        %v810 = vadd.f32 %v577, %v809
        %v811 = vpop.f32.mrb[0].mxu0
        %v812 = vadd.f32 %v579, %v811
        %v813 = vpop.f32.mrb[0].mxu0
        %v814 = vadd.f32 %v581, %v813
        %815 = vdwg.mxu0
        %816 = vmatprep.subr.bf16.mxu0 0
        %817 = vmatpush1.bf16.msra.mxu0 %v692
        %818 = vmatprep.subr.bf16.mxu0 0
        %819 = vmatpush1.bf16.msra.mxu0 %v697
        %820 = vmatprep.subr.bf16.mxu0 0
        %821 = vmatpush1.bf16.msra.mxu0 %v702
        %822 = vmatprep.subr.bf16.mxu0 0
        %823 = vmatpush1.bf16.msra.mxu0 %v707
        %824 = vmatprep.subr.bf16.mxu0 0
        %825 = vmatpush1.bf16.msra.mxu0 0
        %826 = vmatprep.subr.bf16.mxu0 0
        %827 = vmatpush1.bf16.msra.mxu0 0
        %828 = vmatprep.subr.bf16.mxu0 0
        %829 = vmatpush1.bf16.msra.mxu0 0
        %830 = vmatprep.subr.bf16.mxu0 0
        %831 = vmatpush1.bf16.msra.mxu0 0
        %832 = vmatprep.subr.bf16.mxu0 0
        %833 = vmatpush1.bf16.msra.mxu0 0
        %834 = vmatprep.subr.bf16.mxu0 0
        %835 = vmatpush1.bf16.msra.mxu0 0
        %836 = vmatprep.subr.bf16.mxu0 0
        %837 = vmatpush1.bf16.msra.mxu0 0
        %838 = vmatprep.subr.bf16.mxu0 0
        %839 = vmatpush1.bf16.msra.mxu0 0
        %840 = vmatprep.subr.bf16.mxu0 0
        %841 = vmatpush1.bf16.msra.mxu0 0
        %842 = vmatprep.subr.bf16.mxu0 0
        %843 = vmatpush1.bf16.msra.mxu0 0
        %844 = vmatprep.subr.bf16.mxu0 0
        %845 = vmatpush1.bf16.msra.mxu0 0
        %846 = vmatprep.subr.bf16.mxu0 0
        %847 = vmatpush1.bf16.msra.mxu0 0
        %848 = vmatprep.mubr.bf16.mxu0 0
        %849 = vmatmul.mubr.bf16.gmra.mrb[0].mxu0 %v728
        %v850 = vpop.f32.mrb[0].mxu0
        %v851 = vadd.f32 %v618, %v850
        %v852 = vpop.f32.mrb[0].mxu0
        %v853 = vpop.f32.mrb[0].mxu0
        %v854 = vadd.f32 %v621, %v853
        %v855 = vpop.f32.mrb[0].mxu0
        %856 = vdwg.mxu0
        %s857 = scalar_lea.vmem [#allocation3], 320
        %v858 = vld [vmem:[%s857] sm:$0xff]
        %v859 = vld [vmem:[%s857 + $0x8] sm:$0xff]
        %v860 = vld [vmem:[%s857 + $0x10] sm:$0xf]
        %v861 = vld [vmem:[%s857 + $0x14] sm:$0xff]
        %v862 = vld [vmem:[%s857 + $0x1c] sm:$0xff]
        %v863 = vld [vmem:[%s857 + $0x24] sm:$0xf]
        %v864 = vld [vmem:[%s857 + $0x28] sm:$0xff]
        %v865 = vld [vmem:[%s857 + $0x30] sm:$0xff]
        %v866 = vld [vmem:[%s857 + $0x38] sm:$0xf]
        %v867 = vld [vmem:[%s857 + $0x3c] sm:$0xff]
        %v868 = vld [vmem:[%s857 + $0x44] sm:$0xff]
        %v869 = vld [vmem:[%s857 + $0x4c] sm:$0xf]
        %v870 = vld [vmem:[%s857 + $0x50] sm:$0xff]
        %v871 = vld [vmem:[%s857 + $0x58] sm:$0xff]
        %v872 = vld [vmem:[%s857 + $0x60] sm:$0xf]
        %v873 = vld [vmem:[%s857 + $0x64] sm:$0xff]
        %v874 = vld [vmem:[%s857 + $0x6c] sm:$0xff]
        %v875 = vld [vmem:[%s857 + $0x74] sm:$0xf]
        %v876 = vld [vmem:[%s857 + $0x78] sm:$0xff]
        %v877 = vld [vmem:[%s857 + $0x80] sm:$0xff]
        %v878 = vld [vmem:[%s857 + $0x88] sm:$0xf]
        %v879 = vld [vmem:[%s857 + $0x8c] sm:$0xff]
        %v880 = vld [vmem:[%s857 + $0x94] sm:$0xff]
        %v881 = vld [vmem:[%s857 + $0x9c] sm:$0xf]
        %vm884 = vcmask 1046528
        %v885 = vrot.slane %v325, 1
        %v886 = vrot.slane %v350, 1
        %v887 = vsel %vm884, %v885, %v886
        %v912 = vunpack.c.l.b16 %v858
        %v913 = vunpack.c.h.b16 %v858
        %v914 = vunpack.c.l.b16 %v859
        %v915 = vunpack.c.h.b16 %v859
        %v916 = vunpack.c.l.b16 %v860
        %v917 = vunpack.c.l.b16 %v861
        %v918 = vunpack.c.h.b16 %v861
        %v919 = vunpack.c.l.b16 %v862
        %v920 = vunpack.c.h.b16 %v862
        %v921 = vunpack.c.l.b16 %v863
        %v922 = vunpack.c.l.b16 %v864
        %v923 = vunpack.c.h.b16 %v864
        %v924 = vunpack.c.l.b16 %v865
        %v925 = vunpack.c.h.b16 %v865
        %v926 = vunpack.c.l.b16 %v866
        %v927 = vunpack.c.l.b16 %v867
        %v928 = vunpack.c.h.b16 %v867
        %v929 = vunpack.c.l.b16 %v868
        %v930 = vunpack.c.h.b16 %v868
        %v931 = vunpack.c.l.b16 %v869
        %v932 = vunpack.c.l.b16 %v870
        %v933 = vunpack.c.h.b16 %v870
        %v934 = vunpack.c.l.b16 %v871
        %v935 = vunpack.c.h.b16 %v871
        %v936 = vunpack.c.l.b16 %v872
        %v937 = vunpack.c.l.b16 %v873
        %v938 = vunpack.c.h.b16 %v873
        %v939 = vunpack.c.l.b16 %v874
        %v940 = vunpack.c.h.b16 %v874
        %v941 = vunpack.c.l.b16 %v875
        %v942 = vunpack.c.l.b16 %v876
        %v943 = vunpack.c.h.b16 %v876
        %v944 = vunpack.c.l.b16 %v877
        %v945 = vunpack.c.h.b16 %v877
        %v946 = vunpack.c.l.b16 %v878
        %v947 = vunpack.c.l.b16 %v879
        %v948 = vunpack.c.h.b16 %v879
        %v949 = vunpack.c.l.b16 %v880
        %v950 = vunpack.c.h.b16 %v880
        %v951 = vunpack.c.l.b16 %v881
        %v952 = vpack.c.b16 %v917, %v912
        %v953 = vpack.c.b16 %v918, %v913
        %v954 = vpack.c.b16 %v919, %v914
        %v955 = vpack.c.b16 %v920, %v915
        %v956 = vpack.c.b16 %v921, %v916
        %v957 = vpack.c.b16 %v927, %v922
        %v958 = vpack.c.b16 %v928, %v923
        %v959 = vpack.c.b16 %v929, %v924
        %v960 = vpack.c.b16 %v930, %v925
        %v961 = vpack.c.b16 %v931, %v926
        %v962 = vpack.c.b16 %v937, %v932
        %v963 = vpack.c.b16 %v938, %v933
        %v964 = vpack.c.b16 %v939, %v934
        %v965 = vpack.c.b16 %v940, %v935
        %v966 = vpack.c.b16 %v941, %v936
        %v967 = vpack.c.b16 %v947, %v942
        %v968 = vpack.c.b16 %v948, %v943
        %v969 = vpack.c.b16 %v949, %v944
        %v970 = vpack.c.b16 %v950, %v945
        %v971 = vpack.c.b16 %v951, %v946
        %v993 = vsel %vm493, %v887, 0
        %995 = vmatprep.subr.bf16.mxu0 %v953
        %996 = vmatpush1.bf16.msra.mxu0 %v952
        %997 = vmatprep.subr.bf16.mxu0 %v958
        %998 = vmatpush1.bf16.msra.mxu0 %v957
        %999 = vmatprep.subr.bf16.mxu0 %v963
        %1000 = vmatpush1.bf16.msra.mxu0 %v962
        %1001 = vmatprep.subr.bf16.mxu0 %v968
        %1002 = vmatpush1.bf16.msra.mxu0 %v967
        %1003 = vmatprep.subr.bf16.mxu0 0
        %1004 = vmatpush1.bf16.msra.mxu0 0
        %1005 = vmatprep.subr.bf16.mxu0 0
        %1006 = vmatpush1.bf16.msra.mxu0 0
        %1007 = vmatprep.subr.bf16.mxu0 0
        %1008 = vmatpush1.bf16.msra.mxu0 0
        %1009 = vmatprep.subr.bf16.mxu0 0
        %1010 = vmatpush1.bf16.msra.mxu0 0
        %1011 = vmatprep.subr.bf16.mxu0 0
        %1012 = vmatpush1.bf16.msra.mxu0 0
        %1013 = vmatprep.subr.bf16.mxu0 0
        %1014 = vmatpush1.bf16.msra.mxu0 0
        %1015 = vmatprep.subr.bf16.mxu0 0
        %1016 = vmatpush1.bf16.msra.mxu0 0
        %1017 = vmatprep.subr.bf16.mxu0 0
        %1018 = vmatpush1.bf16.msra.mxu0 0
        %1019 = vmatprep.subr.bf16.mxu0 0
        %1020 = vmatpush1.bf16.msra.mxu0 0
        %1021 = vmatprep.subr.bf16.mxu0 0
        %1022 = vmatpush1.bf16.msra.mxu0 0
        %1023 = vmatprep.subr.bf16.mxu0 0
        %1024 = vmatpush1.bf16.msra.mxu0 0
        %1025 = vmatprep.subr.bf16.mxu0 0
        %1026 = vmatpush1.bf16.msra.mxu0 0
        %1027 = vmatprep.mubr.bf16.mxu0 0
        %1028 = vmatmul.mubr.bf16.gmra.mrb[0].mxu0 %v993
        %v1029 = vpop.f32.mrb[0].mxu0
        %v1030 = vadd.f32 0.0, %v1029
        %v1031 = vpop.f32.mrb[0].mxu0
        %v1032 = vadd.f32 0.0, %v1031
        %v1033 = vpop.f32.mrb[0].mxu0
        %v1034 = vadd.f32 0.0, %v1033
        %v1035 = vpop.f32.mrb[0].mxu0
        %v1036 = vadd.f32 0.0, %v1035
        %1037 = vdwg.mxu0
        %1038 = vmatprep.subr.bf16.mxu0 %v955
        %1039 = vmatpush1.bf16.msra.mxu0 %v954
        %1040 = vmatprep.subr.bf16.mxu0 %v960
        %1041 = vmatpush1.bf16.msra.mxu0 %v959
        %1042 = vmatprep.subr.bf16.mxu0 %v965
        %1043 = vmatpush1.bf16.msra.mxu0 %v964
        %1044 = vmatprep.subr.bf16.mxu0 %v970
        %1045 = vmatpush1.bf16.msra.mxu0 %v969
        %1046 = vmatprep.subr.bf16.mxu0 0
        %1047 = vmatpush1.bf16.msra.mxu0 0
        %1048 = vmatprep.subr.bf16.mxu0 0
        %1049 = vmatpush1.bf16.msra.mxu0 0
        %1050 = vmatprep.subr.bf16.mxu0 0
        %1051 = vmatpush1.bf16.msra.mxu0 0
        %1052 = vmatprep.subr.bf16.mxu0 0
        %1053 = vmatpush1.bf16.msra.mxu0 0
        %1054 = vmatprep.subr.bf16.mxu0 0
        %1055 = vmatpush1.bf16.msra.mxu0 0
        %1056 = vmatprep.subr.bf16.mxu0 0
        %1057 = vmatpush1.bf16.msra.mxu0 0
        %1058 = vmatprep.subr.bf16.mxu0 0
        %1059 = vmatpush1.bf16.msra.mxu0 0
        %1060 = vmatprep.subr.bf16.mxu0 0
        %1061 = vmatpush1.bf16.msra.mxu0 0
        %1062 = vmatprep.subr.bf16.mxu0 0
        %1063 = vmatpush1.bf16.msra.mxu0 0
        %1064 = vmatprep.subr.bf16.mxu0 0
        %1065 = vmatpush1.bf16.msra.mxu0 0
        %1066 = vmatprep.subr.bf16.mxu0 0
        %1067 = vmatpush1.bf16.msra.mxu0 0
        %1068 = vmatprep.subr.bf16.mxu0 0
        %1069 = vmatpush1.bf16.msra.mxu0 0
        %1070 = vmatprep.mubr.bf16.mxu0 0
        %1071 = vmatmul.mubr.bf16.gmra.mrb[0].mxu0 %v993
        %v1072 = vpop.f32.mrb[0].mxu0
        %v1073 = vadd.f32 0.0, %v1072
        %v1074 = vpop.f32.mrb[0].mxu0
        %v1075 = vadd.f32 0.0, %v1074
        %v1076 = vpop.f32.mrb[0].mxu0
        %v1077 = vadd.f32 0.0, %v1076
        %v1078 = vpop.f32.mrb[0].mxu0
        %v1079 = vadd.f32 0.0, %v1078
        %1080 = vdwg.mxu0
        %1081 = vmatprep.subr.bf16.mxu0 0
        %1082 = vmatpush1.bf16.msra.mxu0 %v956
        %1083 = vmatprep.subr.bf16.mxu0 0
        %1084 = vmatpush1.bf16.msra.mxu0 %v961
        %1085 = vmatprep.subr.bf16.mxu0 0
        %1086 = vmatpush1.bf16.msra.mxu0 %v966
        %1087 = vmatprep.subr.bf16.mxu0 0
        %1088 = vmatpush1.bf16.msra.mxu0 %v971
        %1089 = vmatprep.subr.bf16.mxu0 0
        %1090 = vmatpush1.bf16.msra.mxu0 0
        %1091 = vmatprep.subr.bf16.mxu0 0
        %1092 = vmatpush1.bf16.msra.mxu0 0
        %1093 = vmatprep.subr.bf16.mxu0 0
        %1094 = vmatpush1.bf16.msra.mxu0 0
        %1095 = vmatprep.subr.bf16.mxu0 0
        %1096 = vmatpush1.bf16.msra.mxu0 0
        %1097 = vmatprep.subr.bf16.mxu0 0
        %1098 = vmatpush1.bf16.msra.mxu0 0
        %1099 = vmatprep.subr.bf16.mxu0 0
        %1100 = vmatpush1.bf16.msra.mxu0 0
        %1101 = vmatprep.subr.bf16.mxu0 0
        %1102 = vmatpush1.bf16.msra.mxu0 0
        %1103 = vmatprep.subr.bf16.mxu0 0
        %1104 = vmatpush1.bf16.msra.mxu0 0
        %1105 = vmatprep.subr.bf16.mxu0 0
        %1106 = vmatpush1.bf16.msra.mxu0 0
        %1107 = vmatprep.subr.bf16.mxu0 0
        %1108 = vmatpush1.bf16.msra.mxu0 0
        %1109 = vmatprep.subr.bf16.mxu0 0
        %1110 = vmatpush1.bf16.msra.mxu0 0
        %1111 = vmatprep.subr.bf16.mxu0 0
        %1112 = vmatpush1.bf16.msra.mxu0 0
        %1113 = vmatprep.mubr.bf16.mxu0 0
        %1114 = vmatmul.mubr.bf16.gmra.mrb[0].mxu0 %v993
        %v1115 = vpop.f32.mrb[0].mxu0
        %v1116 = vadd.f32 0.0, %v1115
        %v1117 = vpop.f32.mrb[0].mxu0
        %v1118 = vpop.f32.mrb[0].mxu0
        %v1119 = vadd.f32 0.0, %v1118
        %v1120 = vpop.f32.mrb[0].mxu0
        %1121 = vdwg.mxu0
        %v1122 = vadd.f32 %v765, %v1030
        %v1123 = vadd.f32 %v767, %v1032
        %v1124 = vadd.f32 %v808, %v1073
        %v1125 = vadd.f32 %v810, %v1075
        %v1126 = vadd.f32 %v851, %v1116
        %v1127 = vadd.f32 %v769, %v1034
        %v1128 = vadd.f32 %v771, %v1036
        %v1129 = vadd.f32 %v812, %v1077
        %v1130 = vadd.f32 %v814, %v1079
        %v1131 = vadd.f32 %v854, %v1119
        %v1132 = vld [vmem:[#allocation5] sm:$0x1f]
        %v1134 = vlaneseq
        %v1135 = vshrl.u32 %v1134, 7
        %v1136 = vsub.s32 0, %v1135
        %v1137 = vrot.slane %v1132, %v1136
        %v1138 = vlaneseq
        %v1139 = vshrl.u32 %v1138, 7
        %v1140 = vsub.s32 1, %v1139
        %v1141 = vrot.slane %v1132, %v1140
        %v1142 = vlaneseq
        %v1143 = vshrl.u32 %v1142, 7
        %v1144 = vsub.s32 2, %v1143
        %v1145 = vrot.slane %v1132, %v1144
        %v1146 = vlaneseq
        %v1147 = vshrl.u32 %v1146, 7
        %v1148 = vsub.s32 3, %v1147
        %v1149 = vrot.slane %v1132, %v1148
        %v1150 = vlaneseq
        %v1151 = vshrl.u32 %v1150, 7
        %v1152 = vsub.s32 4, %v1151
        %v1153 = vrot.slane %v1132, %v1152
        %v1159 = vadd.f32 %v1122, %v1137
        %v1160 = vadd.f32 %v1123, %v1141
        %v1161 = vadd.f32 %v1124, %v1145
        %v1162 = vadd.f32 %v1125, %v1149
        %v1163 = vadd.f32 %v1126, %v1153
        %v1164 = vadd.f32 %v1127, %v1137
        %v1165 = vadd.f32 %v1128, %v1141
        %v1166 = vadd.f32 %v1129, %v1145
        %v1167 = vadd.f32 %v1130, %v1149
        %v1168 = vadd.f32 %v1131, %v1153
        %v1169 = vmax.f32 %v1159, 0.0
        %v1170 = vmax.f32 %v1160, 0.0
        %v1171 = vmax.f32 %v1161, 0.0
        %v1172 = vmax.f32 %v1162, 0.0
        %v1173 = vmax.f32 %v1163, 0.0
        %v1174 = vmax.f32 %v1164, 0.0
        %v1175 = vmax.f32 %v1165, 0.0
        %v1176 = vmax.f32 %v1166, 0.0
        %v1177 = vmax.f32 %v1167, 0.0
        %v1178 = vmax.f32 %v1168, 0.0
        %v1179 = vlaneseq
        %vm1180 = vcmp.ge.s32.totalorder %v1179, 0
        %vm1181 = vcmp.lt.s32.totalorder %v1179, 640
        %vm1182 = vmand %vm1180, %vm1181
        %1183 = vst.msk [vmem:[#allocation2] ss:$8 sm:$0xf] %vm1182, 0.0
        %1184 = vst.msk [vmem:[#allocation2] ss:$8 sm:$0x10] %vm1182, 0.0
        %s1185 = scalar_lea.vmem [#allocation2], 81
        %1186 = vst.msk [vmem:[%s1185] ss:$8 sm:$0xf] %vm1182, 0.0
        %1187 = vst.msk [vmem:[%s1185] ss:$8 sm:$0x10] %vm1182, 0.0
        %vm1198 = vcmask 1040384
        %v1199 = vrot.slane %v1169, 7
        %v1200 = vrot.slane %v1170, 7
        %v1201 = vrot.slane %v1171, 7
        %v1202 = vrot.slane %v1172, 7
        %v1203 = vrot.slane %v1173, 7
        %v1204 = vrot.slane %v1174, 7
        %v1205 = vsel %vm1198, %v1199, %v1204
        %v1206 = vrot.slane %v1175, 7
        %v1207 = vsel %vm1198, %v1200, %v1206
        %v1208 = vrot.slane %v1176, 7
        %v1209 = vsel %vm1198, %v1201, %v1208
        %v1210 = vrot.slane %v1177, 7
        %v1211 = vsel %vm1198, %v1202, %v1210
        %v1212 = vrot.slane %v1178, 7
        %v1213 = vsel %vm1198, %v1203, %v1212
        %1229 = vst [vmem:[#allocation2] sm:$0xfe] %v1199
        %1230 = vst [vmem:[#allocation2 + $0x8] sm:$0xfe] %v1200
        %1231 = vst [vmem:[#allocation2 + $0x10] sm:$0xfe] %v1201
        %1232 = vst [vmem:[#allocation2 + $0x18] sm:$0xfe] %v1202
        %1233 = vst [vmem:[#allocation2 + $0x20] sm:$0xfe] %v1203
        %1234 = vst [vmem:[#allocation2 + $0x28] sm:$0xff] %v1205
        %1235 = vst [vmem:[#allocation2 + $0x30] sm:$0xff] %v1207
        %1236 = vst [vmem:[#allocation2 + $0x38] sm:$0xff] %v1209
        %1237 = vst [vmem:[#allocation2 + $0x40] sm:$0xff] %v1211
        %1238 = vst [vmem:[#allocation2 + $0x48] sm:$0xff] %v1213
        %1239 = vst [vmem:[#allocation2 + $0x50] sm:$0x1] %v1204
        %1240 = vst [vmem:[#allocation2 + $0x58] sm:$0x1] %v1206
        %1241 = vst [vmem:[#allocation2 + $0x60] sm:$0x1] %v1208
        %1242 = vst [vmem:[#allocation2 + $0x68] sm:$0x1] %v1210
        %1243 = vst [vmem:[#allocation2 + $0x70] sm:$0x1] %v1212
        %v1244 = vld [vmem:[#allocation2] sm:$0xff]
        %v1245 = vld [vmem:[#allocation2 + $0x8] sm:$0xff]
        %v1246 = vld [vmem:[#allocation2 + $0x10] sm:$0xff]
        %v1247 = vld [vmem:[#allocation2 + $0x18] sm:$0xff]
        %v1248 = vld [vmem:[#allocation2 + $0x20] sm:$0xff]
        %v1249 = vld [vmem:[#allocation2 + $0x28] sm:$0xff]
        %v1250 = vld [vmem:[#allocation2 + $0x30] sm:$0xff]
        %v1251 = vld [vmem:[#allocation2 + $0x38] sm:$0xff]
        %v1252 = vld [vmem:[#allocation2 + $0x40] sm:$0xff]
        %v1253 = vld [vmem:[#allocation2 + $0x48] sm:$0xff]
        %v1254 = vpack.c.bf16 %v1249, %v1244
        %v1255 = vpack.c.bf16 %v1250, %v1245
        %v1256 = vpack.c.bf16 %v1251, %v1246
        %v1257 = vpack.c.bf16 %v1252, %v1247
        %v1258 = vpack.c.bf16 %v1253, %v1248
        %v1259 = vld [vmem:[#allocation7] sm:$0xff]
        %v1260 = vld [vmem:[#allocation7 + $0x8] sm:$0xff]
        %v1261 = vld [vmem:[#allocation7 + $0x10] sm:$0xff]
        %v1262 = vld [vmem:[#allocation7 + $0x18] sm:$0xff]
        %v1263 = vld [vmem:[#allocation7 + $0x20] sm:$0xff]
        %v1264 = vld [vmem:[#allocation7 + $0x28] sm:$0xff]
        %v1265 = vld [vmem:[#allocation7 + $0x30] sm:$0xff]
        %v1266 = vld [vmem:[#allocation7 + $0x38] sm:$0xff]
        %v1267 = vld [vmem:[#allocation7 + $0x40] sm:$0xff]
        %v1268 = vld [vmem:[#allocation7 + $0x48] sm:$0xff]
        %v1269 = vld [vmem:[#allocation7 + $0x50] sm:$0xff]
        %v1270 = vld [vmem:[#allocation7 + $0x58] sm:$0xff]
        %v1271 = vld [vmem:[#allocation7 + $0x60] sm:$0xff]
        %v1272 = vld [vmem:[#allocation7 + $0x68] sm:$0xff]
        %v1273 = vld [vmem:[#allocation7 + $0x70] sm:$0xff]
        %v1274 = vld [vmem:[#allocation7 + $0x78] sm:$0xff]
        %v1275 = vld [vmem:[#allocation7 + $0x80] sm:$0xff]
        %v1276 = vld [vmem:[#allocation7 + $0x88] sm:$0xff]
        %v1277 = vld [vmem:[#allocation7 + $0x90] sm:$0xff]
        %v1278 = vld [vmem:[#allocation7 + $0x98] sm:$0xff]
        %v1279 = vld [vmem:[#allocation7 + $0xa0] sm:$0xff]
        %v1280 = vld [vmem:[#allocation7 + $0xa8] sm:$0xff]
        %v1281 = vld [vmem:[#allocation7 + $0xb0] sm:$0xff]
        %v1282 = vld [vmem:[#allocation7 + $0xb8] sm:$0xff]
        %v1283 = vld [vmem:[#allocation7 + $0xc0] sm:$0xff]
        %v1284 = vld [vmem:[#allocation7 + $0xc8] sm:$0xff]
        %v1285 = vld [vmem:[#allocation7 + $0xd0] sm:$0xff]
        %v1286 = vld [vmem:[#allocation7 + $0xd8] sm:$0xff]
        %v1287 = vld [vmem:[#allocation7 + $0xe0] sm:$0xff]
        %v1288 = vld [vmem:[#allocation7 + $0xe8] sm:$0xff]
        %v1289 = vld [vmem:[#allocation7 + $0xf0] sm:$0xff]
        %v1290 = vld [vmem:[#allocation7 + $0xf8] sm:$0xff]
        %v1291 = vld [vmem:[#allocation7 + $0x100] sm:$0xff]
        %v1292 = vld [vmem:[#allocation7 + $0x108] sm:$0xff]
        %v1293 = vld [vmem:[#allocation7 + $0x110] sm:$0xff]
        %v1294 = vld [vmem:[#allocation7 + $0x118] sm:$0xff]
        %v1295 = vld [vmem:[#allocation7 + $0x120] sm:$0xff]
        %v1296 = vld [vmem:[#allocation7 + $0x128] sm:$0xff]
        %v1297 = vld [vmem:[#allocation7 + $0x130] sm:$0xff]
        %v1298 = vld [vmem:[#allocation7 + $0x138] sm:$0xff]
        %v1299 = vld [vmem:[#allocation7 + $0x140] sm:$0xff]
        %v1300 = vld [vmem:[#allocation7 + $0x148] sm:$0xff]
        %v1301 = vld [vmem:[#allocation7 + $0x150] sm:$0xff]
        %v1302 = vld [vmem:[#allocation7 + $0x158] sm:$0xff]
        %v1303 = vld [vmem:[#allocation7 + $0x160] sm:$0xff]
        %v1304 = vld [vmem:[#allocation7 + $0x168] sm:$0xff]
        %v1305 = vld [vmem:[#allocation7 + $0x170] sm:$0xff]
        %v1306 = vld [vmem:[#allocation7 + $0x178] sm:$0xff]
        %v1307 = vld [vmem:[#allocation7 + $0x180] sm:$0xff]
        %v1308 = vld [vmem:[#allocation7 + $0x188] sm:$0xff]
        %v1309 = vld [vmem:[#allocation7 + $0x190] sm:$0xff]
        %v1310 = vld [vmem:[#allocation7 + $0x198] sm:$0xff]
        %v1311 = vld [vmem:[#allocation7 + $0x1a0] sm:$0xff]
        %v1312 = vld [vmem:[#allocation7 + $0x1a8] sm:$0xff]
        %v1313 = vld [vmem:[#allocation7 + $0x1b0] sm:$0xff]
        %v1314 = vld [vmem:[#allocation7 + $0x1b8] sm:$0xff]
        %v1315 = vld [vmem:[#allocation7 + $0x1c0] sm:$0xff]
        %v1316 = vld [vmem:[#allocation7 + $0x1c8] sm:$0xff]
        %v1317 = vld [vmem:[#allocation7 + $0x1d0] sm:$0xff]
        %v1318 = vld [vmem:[#allocation7 + $0x1d8] sm:$0xff]
        %v1319 = vld [vmem:[#allocation7 + $0x1e0] sm:$0xff]
        %v1320 = vld [vmem:[#allocation7 + $0x1e8] sm:$0xff]
        %v1321 = vld [vmem:[#allocation7 + $0x1f0] sm:$0xff]
        %v1322 = vld [vmem:[#allocation7 + $0x1f8] sm:$0xff]
        %v1323 = vld [vmem:[#allocation7 + $0x200] sm:$0xff]
        %v1324 = vld [vmem:[#allocation7 + $0x208] sm:$0xff]
        %v1325 = vld [vmem:[#allocation7 + $0x210] sm:$0xff]
        %v1326 = vld [vmem:[#allocation7 + $0x218] sm:$0xff]
        %v1327 = vld [vmem:[#allocation7 + $0x220] sm:$0xff]
        %v1328 = vld [vmem:[#allocation7 + $0x228] sm:$0xff]
        %v1329 = vld [vmem:[#allocation7 + $0x230] sm:$0xff]
        %v1330 = vld [vmem:[#allocation7 + $0x238] sm:$0xff]
        %v1331 = vld [vmem:[#allocation7 + $0x240] sm:$0xff]
        %v1332 = vld [vmem:[#allocation7 + $0x248] sm:$0xff]
        %v1333 = vld [vmem:[#allocation7 + $0x250] sm:$0xff]
        %v1334 = vld [vmem:[#allocation7 + $0x258] sm:$0xff]
        %v1335 = vld [vmem:[#allocation7 + $0x260] sm:$0xff]
        %v1336 = vld [vmem:[#allocation7 + $0x268] sm:$0xff]
        %v1337 = vld [vmem:[#allocation7 + $0x270] sm:$0xff]
        %v1338 = vld [vmem:[#allocation7 + $0x278] sm:$0xff]
        %v1339 = vld [vmem:[#allocation7 + $0x280] sm:$0xff]
        %v1340 = vld [vmem:[#allocation7 + $0x288] sm:$0xff]
        %v1341 = vld [vmem:[#allocation7 + $0x290] sm:$0xff]
        %v1342 = vld [vmem:[#allocation7 + $0x298] sm:$0xff]
        %v1343 = vld [vmem:[#allocation7 + $0x2a0] sm:$0xff]
        %v1344 = vld [vmem:[#allocation7 + $0x2a8] sm:$0xff]
        %v1345 = vld [vmem:[#allocation7 + $0x2b0] sm:$0xff]
        %v1346 = vld [vmem:[#allocation7 + $0x2b8] sm:$0xff]
        %v1347 = vld [vmem:[#allocation7 + $0x2c0] sm:$0xff]
        %v1348 = vld [vmem:[#allocation7 + $0x2c8] sm:$0xff]
        %v1349 = vld [vmem:[#allocation7 + $0x2d0] sm:$0xff]
        %v1350 = vld [vmem:[#allocation7 + $0x2d8] sm:$0xff]
        %v1351 = vld [vmem:[#allocation7 + $0x2e0] sm:$0xff]
        %v1352 = vld [vmem:[#allocation7 + $0x2e8] sm:$0xff]
        %v1353 = vld [vmem:[#allocation7 + $0x2f0] sm:$0xff]
        %v1354 = vld [vmem:[#allocation7 + $0x2f8] sm:$0xff]
        %v1355 = vld [vmem:[#allocation7 + $0x300] sm:$0xff]
        %v1356 = vld [vmem:[#allocation7 + $0x308] sm:$0xff]
        %v1357 = vld [vmem:[#allocation7 + $0x310] sm:$0xff]
        %v1358 = vld [vmem:[#allocation7 + $0x318] sm:$0xff]
        %v1359 = vld [vmem:[#allocation7 + $0x320] sm:$0xff]
        %v1360 = vld [vmem:[#allocation7 + $0x328] sm:$0xff]
        %v1361 = vld [vmem:[#allocation7 + $0x330] sm:$0xff]
        %v1362 = vld [vmem:[#allocation7 + $0x338] sm:$0xff]
        %v1363 = vld [vmem:[#allocation7 + $0x340] sm:$0xff]
        %v1364 = vld [vmem:[#allocation7 + $0x348] sm:$0xff]
        %v1365 = vld [vmem:[#allocation7 + $0x350] sm:$0xff]
        %v1366 = vld [vmem:[#allocation7 + $0x358] sm:$0xff]
        %v1367 = vld [vmem:[#allocation7 + $0x360] sm:$0xff]
        %v1368 = vld [vmem:[#allocation7 + $0x368] sm:$0xff]
        %v1369 = vld [vmem:[#allocation7 + $0x370] sm:$0xff]
        %v1370 = vld [vmem:[#allocation7 + $0x378] sm:$0xff]
        %v1371 = vld [vmem:[#allocation7 + $0x380] sm:$0xff]
        %v1372 = vld [vmem:[#allocation7 + $0x388] sm:$0xff]
        %v1373 = vld [vmem:[#allocation7 + $0x390] sm:$0xff]
        %v1374 = vld [vmem:[#allocation7 + $0x398] sm:$0xff]
        %v1375 = vld [vmem:[#allocation7 + $0x3a0] sm:$0xff]
        %v1376 = vld [vmem:[#allocation7 + $0x3a8] sm:$0xff]
        %v1377 = vld [vmem:[#allocation7 + $0x3b0] sm:$0xff]
        %v1378 = vld [vmem:[#allocation7 + $0x3b8] sm:$0xff]
        %v1379 = vld [vmem:[#allocation7 + $0x3c0] sm:$0xff]
        %v1380 = vld [vmem:[#allocation7 + $0x3c8] sm:$0xff]
        %v1381 = vld [vmem:[#allocation7 + $0x3d0] sm:$0xff]
        %v1382 = vld [vmem:[#allocation7 + $0x3d8] sm:$0xff]
        %v1383 = vld [vmem:[#allocation7 + $0x3e0] sm:$0xff]
        %v1384 = vld [vmem:[#allocation7 + $0x3e8] sm:$0xff]
        %v1385 = vld [vmem:[#allocation7 + $0x3f0] sm:$0xff]
        %v1386 = vld [vmem:[#allocation7 + $0x3f8] sm:$0xff]
        %v1387 = vld [vmem:[#allocation7 + $0x400] sm:$0xff]
        %v1388 = vld [vmem:[#allocation7 + $0x408] sm:$0xff]
        %v1389 = vld [vmem:[#allocation7 + $0x410] sm:$0xff]
        %v1390 = vld [vmem:[#allocation7 + $0x418] sm:$0xff]
        %v1391 = vld [vmem:[#allocation7 + $0x420] sm:$0xff]
        %v1392 = vld [vmem:[#allocation7 + $0x428] sm:$0xff]
        %v1393 = vld [vmem:[#allocation7 + $0x430] sm:$0xff]
        %v1394 = vld [vmem:[#allocation7 + $0x438] sm:$0xff]
        %v1395 = vld [vmem:[#allocation7 + $0x440] sm:$0xff]
        %v1396 = vld [vmem:[#allocation7 + $0x448] sm:$0xff]
        %v1397 = vld [vmem:[#allocation7 + $0x450] sm:$0xff]
        %v1398 = vld [vmem:[#allocation7 + $0x458] sm:$0xff]
        %v1399 = vld [vmem:[#allocation7 + $0x460] sm:$0xff]
        %v1400 = vld [vmem:[#allocation7 + $0x468] sm:$0xff]
        %v1401 = vld [vmem:[#allocation7 + $0x470] sm:$0xff]
        %v1402 = vld [vmem:[#allocation7 + $0x478] sm:$0xff]
        %v1403 = vld [vmem:[#allocation7 + $0x480] sm:$0xff]
        %v1404 = vld [vmem:[#allocation7 + $0x488] sm:$0xff]
        %v1405 = vld [vmem:[#allocation7 + $0x490] sm:$0xff]
        %v1406 = vld [vmem:[#allocation7 + $0x498] sm:$0xff]
        %v1407 = vld [vmem:[#allocation7 + $0x4a0] sm:$0xff]
        %v1408 = vld [vmem:[#allocation7 + $0x4a8] sm:$0xff]
        %v1409 = vld [vmem:[#allocation7 + $0x4b0] sm:$0xff]
        %v1410 = vld [vmem:[#allocation7 + $0x4b8] sm:$0xff]
        %v1411 = vld [vmem:[#allocation7 + $0x4c0] sm:$0xff]
        %v1412 = vld [vmem:[#allocation7 + $0x4c8] sm:$0xff]
        %v1413 = vld [vmem:[#allocation7 + $0x4d0] sm:$0xff]
        %v1414 = vld [vmem:[#allocation7 + $0x4d8] sm:$0xff]
        %v1415 = vld [vmem:[#allocation7 + $0x4e0] sm:$0xff]
        %v1416 = vld [vmem:[#allocation7 + $0x4e8] sm:$0xff]
        %v1417 = vld [vmem:[#allocation7 + $0x4f0] sm:$0xff]
        %v1418 = vld [vmem:[#allocation7 + $0x4f8] sm:$0xff]
        %v1419 = vld [vmem:[#allocation2] sm:$0xfe]
        %v1420 = vld [vmem:[#allocation2 + $0x8] sm:$0xfe]
        %v1421 = vld [vmem:[#allocation2 + $0x10] sm:$0xfe]
        %v1422 = vld [vmem:[#allocation2 + $0x18] sm:$0xfe]
        %v1423 = vld [vmem:[#allocation2 + $0x20] sm:$0xfe]
        %v1424 = vld [vmem:[#allocation2 + $0x50] sm:$0x1]
        %v1425 = vld [vmem:[#allocation2 + $0x58] sm:$0x1]
        %v1426 = vld [vmem:[#allocation2 + $0x60] sm:$0x1]
        %v1427 = vld [vmem:[#allocation2 + $0x68] sm:$0x1]
        %v1428 = vld [vmem:[#allocation2 + $0x70] sm:$0x1]
        %v1429 = vpack.c.bf16 %v1249, %v1419
        %v1430 = vpack.c.bf16 %v1250, %v1420
        %v1431 = vpack.c.bf16 %v1251, %v1421
        %v1432 = vpack.c.bf16 %v1252, %v1422
        %v1433 = vpack.c.bf16 %v1253, %v1423
        %v1434 = vpack.c.bf16 %v1424, %v1424
        %v1435 = vpack.c.bf16 %v1425, %v1425
        %v1436 = vpack.c.bf16 %v1426, %v1426
        %v1437 = vpack.c.bf16 %v1427, %v1427
        %v1438 = vpack.c.bf16 %v1428, %v1428
        %s1439 = scalar_lea.vmem [#allocation7], 1280
        %v1440 = vld [vmem:[%s1439] sm:$0xff]
        %v1441 = vld [vmem:[%s1439 + $0x8] sm:$0xff]
        %v1442 = vld [vmem:[%s1439 + $0x10] sm:$0xff]
        %v1443 = vld [vmem:[%s1439 + $0x18] sm:$0xff]
        %v1444 = vld [vmem:[%s1439 + $0x20] sm:$0xff]
        %v1445 = vld [vmem:[%s1439 + $0x28] sm:$0xff]
        %v1446 = vld [vmem:[%s1439 + $0x30] sm:$0xff]
        %v1447 = vld [vmem:[%s1439 + $0x38] sm:$0xff]
        %v1448 = vld [vmem:[%s1439 + $0x40] sm:$0xff]
        %v1449 = vld [vmem:[%s1439 + $0x48] sm:$0xff]
        %v1450 = vld [vmem:[%s1439 + $0x50] sm:$0xff]
        %v1451 = vld [vmem:[%s1439 + $0x58] sm:$0xff]
        %v1452 = vld [vmem:[%s1439 + $0x60] sm:$0xff]
        %v1453 = vld [vmem:[%s1439 + $0x68] sm:$0xff]
        %v1454 = vld [vmem:[%s1439 + $0x70] sm:$0xff]
        %v1455 = vld [vmem:[%s1439 + $0x78] sm:$0xff]
        %v1456 = vld [vmem:[%s1439 + $0x80] sm:$0xff]
        %v1457 = vld [vmem:[%s1439 + $0x88] sm:$0xff]
        %v1458 = vld [vmem:[%s1439 + $0x90] sm:$0xff]
        %v1459 = vld [vmem:[%s1439 + $0x98] sm:$0xff]
        %v1460 = vld [vmem:[%s1439 + $0xa0] sm:$0xff]
        %v1461 = vld [vmem:[%s1439 + $0xa8] sm:$0xff]
        %v1462 = vld [vmem:[%s1439 + $0xb0] sm:$0xff]
        %v1463 = vld [vmem:[%s1439 + $0xb8] sm:$0xff]
        %v1464 = vld [vmem:[%s1439 + $0xc0] sm:$0xff]
        %v1465 = vld [vmem:[%s1439 + $0xc8] sm:$0xff]
        %v1466 = vld [vmem:[%s1439 + $0xd0] sm:$0xff]
        %v1467 = vld [vmem:[%s1439 + $0xd8] sm:$0xff]
        %v1468 = vld [vmem:[%s1439 + $0xe0] sm:$0xff]
        %v1469 = vld [vmem:[%s1439 + $0xe8] sm:$0xff]
        %v1470 = vld [vmem:[%s1439 + $0xf0] sm:$0xff]
        %v1471 = vld [vmem:[%s1439 + $0xf8] sm:$0xff]
        %v1472 = vld [vmem:[%s1439 + $0x100] sm:$0xff]
        %v1473 = vld [vmem:[%s1439 + $0x108] sm:$0xff]
        %v1474 = vld [vmem:[%s1439 + $0x110] sm:$0xff]
        %v1475 = vld [vmem:[%s1439 + $0x118] sm:$0xff]
        %v1476 = vld [vmem:[%s1439 + $0x120] sm:$0xff]
        %v1477 = vld [vmem:[%s1439 + $0x128] sm:$0xff]
        %v1478 = vld [vmem:[%s1439 + $0x130] sm:$0xff]
        %v1479 = vld [vmem:[%s1439 + $0x138] sm:$0xff]
        %v1480 = vld [vmem:[%s1439 + $0x140] sm:$0xff]
        %v1481 = vld [vmem:[%s1439 + $0x148] sm:$0xff]
        %v1482 = vld [vmem:[%s1439 + $0x150] sm:$0xff]
        %v1483 = vld [vmem:[%s1439 + $0x158] sm:$0xff]
        %v1484 = vld [vmem:[%s1439 + $0x160] sm:$0xff]
        %v1485 = vld [vmem:[%s1439 + $0x168] sm:$0xff]
        %v1486 = vld [vmem:[%s1439 + $0x170] sm:$0xff]
        %v1487 = vld [vmem:[%s1439 + $0x178] sm:$0xff]
        %v1488 = vld [vmem:[%s1439 + $0x180] sm:$0xff]
        %v1489 = vld [vmem:[%s1439 + $0x188] sm:$0xff]
        %v1490 = vld [vmem:[%s1439 + $0x190] sm:$0xff]
        %v1491 = vld [vmem:[%s1439 + $0x198] sm:$0xff]
        %v1492 = vld [vmem:[%s1439 + $0x1a0] sm:$0xff]
        %v1493 = vld [vmem:[%s1439 + $0x1a8] sm:$0xff]
        %v1494 = vld [vmem:[%s1439 + $0x1b0] sm:$0xff]
        %v1495 = vld [vmem:[%s1439 + $0x1b8] sm:$0xff]
        %v1496 = vld [vmem:[%s1439 + $0x1c0] sm:$0xff]
        %v1497 = vld [vmem:[%s1439 + $0x1c8] sm:$0xff]
        %v1498 = vld [vmem:[%s1439 + $0x1d0] sm:$0xff]
        %v1499 = vld [vmem:[%s1439 + $0x1d8] sm:$0xff]
        %v1500 = vld [vmem:[%s1439 + $0x1e0] sm:$0xff]
        %v1501 = vld [vmem:[%s1439 + $0x1e8] sm:$0xff]
        %v1502 = vld [vmem:[%s1439 + $0x1f0] sm:$0xff]
        %v1503 = vld [vmem:[%s1439 + $0x1f8] sm:$0xff]
        %v1504 = vld [vmem:[%s1439 + $0x200] sm:$0xff]
        %v1505 = vld [vmem:[%s1439 + $0x208] sm:$0xff]
        %v1506 = vld [vmem:[%s1439 + $0x210] sm:$0xff]
        %v1507 = vld [vmem:[%s1439 + $0x218] sm:$0xff]
        %v1508 = vld [vmem:[%s1439 + $0x220] sm:$0xff]
        %v1509 = vld [vmem:[%s1439 + $0x228] sm:$0xff]
        %v1510 = vld [vmem:[%s1439 + $0x230] sm:$0xff]
        %v1511 = vld [vmem:[%s1439 + $0x238] sm:$0xff]
        %v1512 = vld [vmem:[%s1439 + $0x240] sm:$0xff]
        %v1513 = vld [vmem:[%s1439 + $0x248] sm:$0xff]
        %v1514 = vld [vmem:[%s1439 + $0x250] sm:$0xff]
        %v1515 = vld [vmem:[%s1439 + $0x258] sm:$0xff]
        %v1516 = vld [vmem:[%s1439 + $0x260] sm:$0xff]
        %v1517 = vld [vmem:[%s1439 + $0x268] sm:$0xff]
        %v1518 = vld [vmem:[%s1439 + $0x270] sm:$0xff]
        %v1519 = vld [vmem:[%s1439 + $0x278] sm:$0xff]
        %v1520 = vld [vmem:[%s1439 + $0x280] sm:$0xff]
        %v1521 = vld [vmem:[%s1439 + $0x288] sm:$0xff]
        %v1522 = vld [vmem:[%s1439 + $0x290] sm:$0xff]
        %v1523 = vld [vmem:[%s1439 + $0x298] sm:$0xff]
        %v1524 = vld [vmem:[%s1439 + $0x2a0] sm:$0xff]
        %v1525 = vld [vmem:[%s1439 + $0x2a8] sm:$0xff]
        %v1526 = vld [vmem:[%s1439 + $0x2b0] sm:$0xff]
        %v1527 = vld [vmem:[%s1439 + $0x2b8] sm:$0xff]
        %v1528 = vld [vmem:[%s1439 + $0x2c0] sm:$0xff]
        %v1529 = vld [vmem:[%s1439 + $0x2c8] sm:$0xff]
        %v1530 = vld [vmem:[%s1439 + $0x2d0] sm:$0xff]
        %v1531 = vld [vmem:[%s1439 + $0x2d8] sm:$0xff]
        %v1532 = vld [vmem:[%s1439 + $0x2e0] sm:$0xff]
        %v1533 = vld [vmem:[%s1439 + $0x2e8] sm:$0xff]
        %v1534 = vld [vmem:[%s1439 + $0x2f0] sm:$0xff]
        %v1535 = vld [vmem:[%s1439 + $0x2f8] sm:$0xff]
        %v1536 = vld [vmem:[%s1439 + $0x300] sm:$0xff]
        %v1537 = vld [vmem:[%s1439 + $0x308] sm:$0xff]
        %v1538 = vld [vmem:[%s1439 + $0x310] sm:$0xff]
        %v1539 = vld [vmem:[%s1439 + $0x318] sm:$0xff]
        %v1540 = vld [vmem:[%s1439 + $0x320] sm:$0xff]
        %v1541 = vld [vmem:[%s1439 + $0x328] sm:$0xff]
        %v1542 = vld [vmem:[%s1439 + $0x330] sm:$0xff]
        %v1543 = vld [vmem:[%s1439 + $0x338] sm:$0xff]
        %v1544 = vld [vmem:[%s1439 + $0x340] sm:$0xff]
        %v1545 = vld [vmem:[%s1439 + $0x348] sm:$0xff]
        %v1546 = vld [vmem:[%s1439 + $0x350] sm:$0xff]
        %v1547 = vld [vmem:[%s1439 + $0x358] sm:$0xff]
        %v1548 = vld [vmem:[%s1439 + $0x360] sm:$0xff]
        %v1549 = vld [vmem:[%s1439 + $0x368] sm:$0xff]
        %v1550 = vld [vmem:[%s1439 + $0x370] sm:$0xff]
        %v1551 = vld [vmem:[%s1439 + $0x378] sm:$0xff]
        %v1552 = vld [vmem:[%s1439 + $0x380] sm:$0xff]
        %v1553 = vld [vmem:[%s1439 + $0x388] sm:$0xff]
        %v1554 = vld [vmem:[%s1439 + $0x390] sm:$0xff]
        %v1555 = vld [vmem:[%s1439 + $0x398] sm:$0xff]
        %v1556 = vld [vmem:[%s1439 + $0x3a0] sm:$0xff]
        %v1557 = vld [vmem:[%s1439 + $0x3a8] sm:$0xff]
        %v1558 = vld [vmem:[%s1439 + $0x3b0] sm:$0xff]
        %v1559 = vld [vmem:[%s1439 + $0x3b8] sm:$0xff]
        %v1560 = vld [vmem:[%s1439 + $0x3c0] sm:$0xff]
        %v1561 = vld [vmem:[%s1439 + $0x3c8] sm:$0xff]
        %v1562 = vld [vmem:[%s1439 + $0x3d0] sm:$0xff]
        %v1563 = vld [vmem:[%s1439 + $0x3d8] sm:$0xff]
        %v1564 = vld [vmem:[%s1439 + $0x3e0] sm:$0xff]
        %v1565 = vld [vmem:[%s1439 + $0x3e8] sm:$0xff]
        %v1566 = vld [vmem:[%s1439 + $0x3f0] sm:$0xff]
        %v1567 = vld [vmem:[%s1439 + $0x3f8] sm:$0xff]
        %v1568 = vld [vmem:[%s1439 + $0x400] sm:$0xff]
        %v1569 = vld [vmem:[%s1439 + $0x408] sm:$0xff]
        %v1570 = vld [vmem:[%s1439 + $0x410] sm:$0xff]
        %v1571 = vld [vmem:[%s1439 + $0x418] sm:$0xff]
        %v1572 = vld [vmem:[%s1439 + $0x420] sm:$0xff]
        %v1573 = vld [vmem:[%s1439 + $0x428] sm:$0xff]
        %v1574 = vld [vmem:[%s1439 + $0x430] sm:$0xff]
        %v1575 = vld [vmem:[%s1439 + $0x438] sm:$0xff]
        %v1576 = vld [vmem:[%s1439 + $0x440] sm:$0xff]
        %v1577 = vld [vmem:[%s1439 + $0x448] sm:$0xff]
        %v1578 = vld [vmem:[%s1439 + $0x450] sm:$0xff]
        %v1579 = vld [vmem:[%s1439 + $0x458] sm:$0xff]
        %v1580 = vld [vmem:[%s1439 + $0x460] sm:$0xff]
        %v1581 = vld [vmem:[%s1439 + $0x468] sm:$0xff]
        %v1582 = vld [vmem:[%s1439 + $0x470] sm:$0xff]
        %v1583 = vld [vmem:[%s1439 + $0x478] sm:$0xff]
        %v1584 = vld [vmem:[%s1439 + $0x480] sm:$0xff]
        %v1585 = vld [vmem:[%s1439 + $0x488] sm:$0xff]
        %v1586 = vld [vmem:[%s1439 + $0x490] sm:$0xff]
        %v1587 = vld [vmem:[%s1439 + $0x498] sm:$0xff]
        %v1588 = vld [vmem:[%s1439 + $0x4a0] sm:$0xff]
        %v1589 = vld [vmem:[%s1439 + $0x4a8] sm:$0xff]
        %v1590 = vld [vmem:[%s1439 + $0x4b0] sm:$0xff]
        %v1591 = vld [vmem:[%s1439 + $0x4b8] sm:$0xff]
        %v1592 = vld [vmem:[%s1439 + $0x4c0] sm:$0xff]
        %v1593 = vld [vmem:[%s1439 + $0x4c8] sm:$0xff]
        %v1594 = vld [vmem:[%s1439 + $0x4d0] sm:$0xff]
        %v1595 = vld [vmem:[%s1439 + $0x4d8] sm:$0xff]
        %v1596 = vld [vmem:[%s1439 + $0x4e0] sm:$0xff]
        %v1597 = vld [vmem:[%s1439 + $0x4e8] sm:$0xff]
        %v1598 = vld [vmem:[%s1439 + $0x4f0] sm:$0xff]
        %v1599 = vld [vmem:[%s1439 + $0x4f8] sm:$0xff]
        %v1601 = vshrl.u32 %v1429, 16
        %v1603 = vshll.u32 %v1429, 16
        %v1605 = vrot.slane %v1603, 1
        %v1606 = vor.u32 %v1601, %v1605
        %v1608 = vshll.u32 %v1434, 16
        %v1610 = vrot.slane %v1608, 1
        %v1611 = vsel %vm376, %v1606, %v1610
        %v1613 = vshrl.u32 %v1430, 16
        %v1615 = vshll.u32 %v1430, 16
        %v1617 = vrot.slane %v1615, 1
        %v1618 = vor.u32 %v1613, %v1617
        %v1620 = vshll.u32 %v1435, 16
        %v1622 = vrot.slane %v1620, 1
        %v1623 = vsel %vm376, %v1618, %v1622
        %v1625 = vshrl.u32 %v1431, 16
        %v1627 = vshll.u32 %v1431, 16
        %v1629 = vrot.slane %v1627, 1
        %v1630 = vor.u32 %v1625, %v1629
        %v1632 = vshll.u32 %v1436, 16
        %v1634 = vrot.slane %v1632, 1
        %v1635 = vsel %vm376, %v1630, %v1634
        %v1637 = vshrl.u32 %v1432, 16
        %v1639 = vshll.u32 %v1432, 16
        %v1641 = vrot.slane %v1639, 1
        %v1642 = vor.u32 %v1637, %v1641
        %v1644 = vshll.u32 %v1437, 16
        %v1646 = vrot.slane %v1644, 1
        %v1647 = vsel %vm376, %v1642, %v1646
        %v1649 = vshrl.u32 %v1433, 16
        %v1651 = vshll.u32 %v1433, 16
        %v1653 = vrot.slane %v1651, 1
        %v1654 = vor.u32 %v1649, %v1653
        %v1656 = vshll.u32 %v1438, 16
        %v1658 = vrot.slane %v1656, 1
        %v1659 = vsel %vm376, %v1654, %v1658
        %v1825 = vunpack.c.l.b16 %v1440
        %v1826 = vunpack.c.h.b16 %v1440
        %v1827 = vunpack.c.l.b16 %v1441
        %v1828 = vunpack.c.h.b16 %v1441
        %v1829 = vunpack.c.l.b16 %v1442
        %v1830 = vunpack.c.h.b16 %v1442
        %v1831 = vunpack.c.l.b16 %v1443
        %v1832 = vunpack.c.h.b16 %v1443
        %v1833 = vunpack.c.l.b16 %v1444
        %v1834 = vunpack.c.h.b16 %v1444
        %v1835 = vunpack.c.l.b16 %v1445
        %v1836 = vunpack.c.h.b16 %v1445
        %v1837 = vunpack.c.l.b16 %v1446
        %v1838 = vunpack.c.h.b16 %v1446
        %v1839 = vunpack.c.l.b16 %v1447
        %v1840 = vunpack.c.h.b16 %v1447
        %v1841 = vunpack.c.l.b16 %v1448
        %v1842 = vunpack.c.h.b16 %v1448
        %v1843 = vunpack.c.l.b16 %v1449
        %v1844 = vunpack.c.h.b16 %v1449
        %v1845 = vunpack.c.l.b16 %v1450
        %v1846 = vunpack.c.h.b16 %v1450
        %v1847 = vunpack.c.l.b16 %v1451
        %v1848 = vunpack.c.h.b16 %v1451
        %v1849 = vunpack.c.l.b16 %v1452
        %v1850 = vunpack.c.h.b16 %v1452
        %v1851 = vunpack.c.l.b16 %v1453
        %v1852 = vunpack.c.h.b16 %v1453
        %v1853 = vunpack.c.l.b16 %v1454
        %v1854 = vunpack.c.h.b16 %v1454
        %v1855 = vunpack.c.l.b16 %v1455
        %v1856 = vunpack.c.h.b16 %v1455
        %v1857 = vunpack.c.l.b16 %v1456
        %v1858 = vunpack.c.h.b16 %v1456
        %v1859 = vunpack.c.l.b16 %v1457
        %v1860 = vunpack.c.h.b16 %v1457
        %v1861 = vunpack.c.l.b16 %v1458
        %v1862 = vunpack.c.h.b16 %v1458
        %v1863 = vunpack.c.l.b16 %v1459
        %v1864 = vunpack.c.h.b16 %v1459
        %v1865 = vunpack.c.l.b16 %v1460
        %v1866 = vunpack.c.h.b16 %v1460
        %v1867 = vunpack.c.l.b16 %v1461
        %v1868 = vunpack.c.h.b16 %v1461
        %v1869 = vunpack.c.l.b16 %v1462
        %v1870 = vunpack.c.h.b16 %v1462
        %v1871 = vunpack.c.l.b16 %v1463
        %v1872 = vunpack.c.h.b16 %v1463
        %v1873 = vunpack.c.l.b16 %v1464
        %v1874 = vunpack.c.h.b16 %v1464
        %v1875 = vunpack.c.l.b16 %v1465
        %v1876 = vunpack.c.h.b16 %v1465
        %v1877 = vunpack.c.l.b16 %v1466
        %v1878 = vunpack.c.h.b16 %v1466
        %v1879 = vunpack.c.l.b16 %v1467
        %v1880 = vunpack.c.h.b16 %v1467
        %v1881 = vunpack.c.l.b16 %v1468
        %v1882 = vunpack.c.h.b16 %v1468
        %v1883 = vunpack.c.l.b16 %v1469
        %v1884 = vunpack.c.h.b16 %v1469
        %v1885 = vunpack.c.l.b16 %v1470
        %v1886 = vunpack.c.h.b16 %v1470
        %v1887 = vunpack.c.l.b16 %v1471
        %v1888 = vunpack.c.h.b16 %v1471
        %v1889 = vunpack.c.l.b16 %v1472
        %v1890 = vunpack.c.h.b16 %v1472
        %v1891 = vunpack.c.l.b16 %v1473
        %v1892 = vunpack.c.h.b16 %v1473
        %v1893 = vunpack.c.l.b16 %v1474
        %v1894 = vunpack.c.h.b16 %v1474
        %v1895 = vunpack.c.l.b16 %v1475
        %v1896 = vunpack.c.h.b16 %v1475
        %v1897 = vunpack.c.l.b16 %v1476
        %v1898 = vunpack.c.h.b16 %v1476
        %v1899 = vunpack.c.l.b16 %v1477
        %v1900 = vunpack.c.h.b16 %v1477
        %v1901 = vunpack.c.l.b16 %v1478
        %v1902 = vunpack.c.h.b16 %v1478
        %v1903 = vunpack.c.l.b16 %v1479
        %v1904 = vunpack.c.h.b16 %v1479
        %v1905 = vunpack.c.l.b16 %v1480
        %v1906 = vunpack.c.h.b16 %v1480
        %v1907 = vunpack.c.l.b16 %v1481
        %v1908 = vunpack.c.h.b16 %v1481
        %v1909 = vunpack.c.l.b16 %v1482
        %v1910 = vunpack.c.h.b16 %v1482
        %v1911 = vunpack.c.l.b16 %v1483
        %v1912 = vunpack.c.h.b16 %v1483
        %v1913 = vunpack.c.l.b16 %v1484
        %v1914 = vunpack.c.h.b16 %v1484
        %v1915 = vunpack.c.l.b16 %v1485
        %v1916 = vunpack.c.h.b16 %v1485
        %v1917 = vunpack.c.l.b16 %v1486
        %v1918 = vunpack.c.h.b16 %v1486
        %v1919 = vunpack.c.l.b16 %v1487
        %v1920 = vunpack.c.h.b16 %v1487
        %v1921 = vunpack.c.l.b16 %v1488
        %v1922 = vunpack.c.h.b16 %v1488
        %v1923 = vunpack.c.l.b16 %v1489
        %v1924 = vunpack.c.h.b16 %v1489
        %v1925 = vunpack.c.l.b16 %v1490
        %v1926 = vunpack.c.h.b16 %v1490
        %v1927 = vunpack.c.l.b16 %v1491
        %v1928 = vunpack.c.h.b16 %v1491
        %v1929 = vunpack.c.l.b16 %v1492
        %v1930 = vunpack.c.h.b16 %v1492
        %v1931 = vunpack.c.l.b16 %v1493
        %v1932 = vunpack.c.h.b16 %v1493
        %v1933 = vunpack.c.l.b16 %v1494
        %v1934 = vunpack.c.h.b16 %v1494
        %v1935 = vunpack.c.l.b16 %v1495
        %v1936 = vunpack.c.h.b16 %v1495
        %v1937 = vunpack.c.l.b16 %v1496
        %v1938 = vunpack.c.h.b16 %v1496
        %v1939 = vunpack.c.l.b16 %v1497
        %v1940 = vunpack.c.h.b16 %v1497
        %v1941 = vunpack.c.l.b16 %v1498
        %v1942 = vunpack.c.h.b16 %v1498
        %v1943 = vunpack.c.l.b16 %v1499
        %v1944 = vunpack.c.h.b16 %v1499
        %v1945 = vunpack.c.l.b16 %v1500
        %v1946 = vunpack.c.h.b16 %v1500
        %v1947 = vunpack.c.l.b16 %v1501
        %v1948 = vunpack.c.h.b16 %v1501
        %v1949 = vunpack.c.l.b16 %v1502
        %v1950 = vunpack.c.h.b16 %v1502
        %v1951 = vunpack.c.l.b16 %v1503
        %v1952 = vunpack.c.h.b16 %v1503
        %v1953 = vunpack.c.l.b16 %v1504
        %v1954 = vunpack.c.h.b16 %v1504
        %v1955 = vunpack.c.l.b16 %v1505
        %v1956 = vunpack.c.h.b16 %v1505
        %v1957 = vunpack.c.l.b16 %v1506
        %v1958 = vunpack.c.h.b16 %v1506
        %v1959 = vunpack.c.l.b16 %v1507
        %v1960 = vunpack.c.h.b16 %v1507
        %v1961 = vunpack.c.l.b16 %v1508
        %v1962 = vunpack.c.h.b16 %v1508
        %v1963 = vunpack.c.l.b16 %v1509
        %v1964 = vunpack.c.h.b16 %v1509
        %v1965 = vunpack.c.l.b16 %v1510
        %v1966 = vunpack.c.h.b16 %v1510
        %v1967 = vunpack.c.l.b16 %v1511
        %v1968 = vunpack.c.h.b16 %v1511
        %v1969 = vunpack.c.l.b16 %v1512
        %v1970 = vunpack.c.h.b16 %v1512
        %v1971 = vunpack.c.l.b16 %v1513
        %v1972 = vunpack.c.h.b16 %v1513
        %v1973 = vunpack.c.l.b16 %v1514
        %v1974 = vunpack.c.h.b16 %v1514
        %v1975 = vunpack.c.l.b16 %v1515
        %v1976 = vunpack.c.h.b16 %v1515
        %v1977 = vunpack.c.l.b16 %v1516
        %v1978 = vunpack.c.h.b16 %v1516
        %v1979 = vunpack.c.l.b16 %v1517
        %v1980 = vunpack.c.h.b16 %v1517
        %v1981 = vunpack.c.l.b16 %v1518
        %v1982 = vunpack.c.h.b16 %v1518
        %v1983 = vunpack.c.l.b16 %v1519
        %v1984 = vunpack.c.h.b16 %v1519
        %v1985 = vunpack.c.l.b16 %v1520
        %v1986 = vunpack.c.h.b16 %v1520
        %v1987 = vunpack.c.l.b16 %v1521
        %v1988 = vunpack.c.h.b16 %v1521
        %v1989 = vunpack.c.l.b16 %v1522
        %v1990 = vunpack.c.h.b16 %v1522
        %v1991 = vunpack.c.l.b16 %v1523
        %v1992 = vunpack.c.h.b16 %v1523
        %v1993 = vunpack.c.l.b16 %v1524
        %v1994 = vunpack.c.h.b16 %v1524
        %v1995 = vunpack.c.l.b16 %v1525
        %v1996 = vunpack.c.h.b16 %v1525
        %v1997 = vunpack.c.l.b16 %v1526
        %v1998 = vunpack.c.h.b16 %v1526
        %v1999 = vunpack.c.l.b16 %v1527
        %v2000 = vunpack.c.h.b16 %v1527
        %v2001 = vunpack.c.l.b16 %v1528
        %v2002 = vunpack.c.h.b16 %v1528
        %v2003 = vunpack.c.l.b16 %v1529
        %v2004 = vunpack.c.h.b16 %v1529
        %v2005 = vunpack.c.l.b16 %v1530
        %v2006 = vunpack.c.h.b16 %v1530
        %v2007 = vunpack.c.l.b16 %v1531
        %v2008 = vunpack.c.h.b16 %v1531
        %v2009 = vunpack.c.l.b16 %v1532
        %v2010 = vunpack.c.h.b16 %v1532
        %v2011 = vunpack.c.l.b16 %v1533
        %v2012 = vunpack.c.h.b16 %v1533
        %v2013 = vunpack.c.l.b16 %v1534
        %v2014 = vunpack.c.h.b16 %v1534
        %v2015 = vunpack.c.l.b16 %v1535
        %v2016 = vunpack.c.h.b16 %v1535
        %v2017 = vunpack.c.l.b16 %v1536
        %v2018 = vunpack.c.h.b16 %v1536
        %v2019 = vunpack.c.l.b16 %v1537
        %v2020 = vunpack.c.h.b16 %v1537
        %v2021 = vunpack.c.l.b16 %v1538
        %v2022 = vunpack.c.h.b16 %v1538
        %v2023 = vunpack.c.l.b16 %v1539
        %v2024 = vunpack.c.h.b16 %v1539
        %v2025 = vunpack.c.l.b16 %v1540
        %v2026 = vunpack.c.h.b16 %v1540
        %v2027 = vunpack.c.l.b16 %v1541
        %v2028 = vunpack.c.h.b16 %v1541
        %v2029 = vunpack.c.l.b16 %v1542
        %v2030 = vunpack.c.h.b16 %v1542
        %v2031 = vunpack.c.l.b16 %v1543
        %v2032 = vunpack.c.h.b16 %v1543
        %v2033 = vunpack.c.l.b16 %v1544
        %v2034 = vunpack.c.h.b16 %v1544
        %v2035 = vunpack.c.l.b16 %v1545
        %v2036 = vunpack.c.h.b16 %v1545
        %v2037 = vunpack.c.l.b16 %v1546
        %v2038 = vunpack.c.h.b16 %v1546
        %v2039 = vunpack.c.l.b16 %v1547
        %v2040 = vunpack.c.h.b16 %v1547
        %v2041 = vunpack.c.l.b16 %v1548
        %v2042 = vunpack.c.h.b16 %v1548
        %v2043 = vunpack.c.l.b16 %v1549
        %v2044 = vunpack.c.h.b16 %v1549
        %v2045 = vunpack.c.l.b16 %v1550
        %v2046 = vunpack.c.h.b16 %v1550
        %v2047 = vunpack.c.l.b16 %v1551
        %v2048 = vunpack.c.h.b16 %v1551
        %v2049 = vunpack.c.l.b16 %v1552
        %v2050 = vunpack.c.h.b16 %v1552
        %v2051 = vunpack.c.l.b16 %v1553
        %v2052 = vunpack.c.h.b16 %v1553
        %v2053 = vunpack.c.l.b16 %v1554
        %v2054 = vunpack.c.h.b16 %v1554
        %v2055 = vunpack.c.l.b16 %v1555
        %v2056 = vunpack.c.h.b16 %v1555
        %v2057 = vunpack.c.l.b16 %v1556
        %v2058 = vunpack.c.h.b16 %v1556
        %v2059 = vunpack.c.l.b16 %v1557
        %v2060 = vunpack.c.h.b16 %v1557
        %v2061 = vunpack.c.l.b16 %v1558
        %v2062 = vunpack.c.h.b16 %v1558
        %v2063 = vunpack.c.l.b16 %v1559
        %v2064 = vunpack.c.h.b16 %v1559
        %v2065 = vunpack.c.l.b16 %v1560
        %v2066 = vunpack.c.h.b16 %v1560
        %v2067 = vunpack.c.l.b16 %v1561
        %v2068 = vunpack.c.h.b16 %v1561
        %v2069 = vunpack.c.l.b16 %v1562
        %v2070 = vunpack.c.h.b16 %v1562
        %v2071 = vunpack.c.l.b16 %v1563
        %v2072 = vunpack.c.h.b16 %v1563
        %v2073 = vunpack.c.l.b16 %v1564
        %v2074 = vunpack.c.h.b16 %v1564
        %v2075 = vunpack.c.l.b16 %v1565
        %v2076 = vunpack.c.h.b16 %v1565
        %v2077 = vunpack.c.l.b16 %v1566
        %v2078 = vunpack.c.h.b16 %v1566
        %v2079 = vunpack.c.l.b16 %v1567
        %v2080 = vunpack.c.h.b16 %v1567
        %v2081 = vunpack.c.l.b16 %v1568
        %v2082 = vunpack.c.h.b16 %v1568
        %v2083 = vunpack.c.l.b16 %v1569
        %v2084 = vunpack.c.h.b16 %v1569
        %v2085 = vunpack.c.l.b16 %v1570
        %v2086 = vunpack.c.h.b16 %v1570
        %v2087 = vunpack.c.l.b16 %v1571
        %v2088 = vunpack.c.h.b16 %v1571
        %v2089 = vunpack.c.l.b16 %v1572
        %v2090 = vunpack.c.h.b16 %v1572
        %v2091 = vunpack.c.l.b16 %v1573
        %v2092 = vunpack.c.h.b16 %v1573
        %v2093 = vunpack.c.l.b16 %v1574
        %v2094 = vunpack.c.h.b16 %v1574
        %v2095 = vunpack.c.l.b16 %v1575
        %v2096 = vunpack.c.h.b16 %v1575
        %v2097 = vunpack.c.l.b16 %v1576
        %v2098 = vunpack.c.h.b16 %v1576
        %v2099 = vunpack.c.l.b16 %v1577
        %v2100 = vunpack.c.h.b16 %v1577
        %v2101 = vunpack.c.l.b16 %v1578
        %v2102 = vunpack.c.h.b16 %v1578
        %v2103 = vunpack.c.l.b16 %v1579
        %v2104 = vunpack.c.h.b16 %v1579
        %v2105 = vunpack.c.l.b16 %v1580
        %v2106 = vunpack.c.h.b16 %v1580
        %v2107 = vunpack.c.l.b16 %v1581
        %v2108 = vunpack.c.h.b16 %v1581
        %v2109 = vunpack.c.l.b16 %v1582
        %v2110 = vunpack.c.h.b16 %v1582
        %v2111 = vunpack.c.l.b16 %v1583
        %v2112 = vunpack.c.h.b16 %v1583
        %v2113 = vunpack.c.l.b16 %v1584
        %v2114 = vunpack.c.h.b16 %v1584
        %v2115 = vunpack.c.l.b16 %v1585
        %v2116 = vunpack.c.h.b16 %v1585
        %v2117 = vunpack.c.l.b16 %v1586
        %v2118 = vunpack.c.h.b16 %v1586
        %v2119 = vunpack.c.l.b16 %v1587
        %v2120 = vunpack.c.h.b16 %v1587
        %v2121 = vunpack.c.l.b16 %v1588
        %v2122 = vunpack.c.h.b16 %v1588
        %v2123 = vunpack.c.l.b16 %v1589
        %v2124 = vunpack.c.h.b16 %v1589
        %v2125 = vunpack.c.l.b16 %v1590
        %v2126 = vunpack.c.h.b16 %v1590
        %v2127 = vunpack.c.l.b16 %v1591
        %v2128 = vunpack.c.h.b16 %v1591
        %v2129 = vunpack.c.l.b16 %v1592
        %v2130 = vunpack.c.h.b16 %v1592
        %v2131 = vunpack.c.l.b16 %v1593
        %v2132 = vunpack.c.h.b16 %v1593
        %v2133 = vunpack.c.l.b16 %v1594
        %v2134 = vunpack.c.h.b16 %v1594
        %v2135 = vunpack.c.l.b16 %v1595
        %v2136 = vunpack.c.h.b16 %v1595
        %v2137 = vunpack.c.l.b16 %v1596
        %v2138 = vunpack.c.h.b16 %v1596
        %v2139 = vunpack.c.l.b16 %v1597
        %v2140 = vunpack.c.h.b16 %v1597
        %v2141 = vunpack.c.l.b16 %v1598
        %v2142 = vunpack.c.h.b16 %v1598
        %v2143 = vunpack.c.l.b16 %v1599
        %v2144 = vunpack.c.h.b16 %v1599
        %v2145 = vpack.c.b16 %v1829, %v1825
        %v2146 = vpack.c.b16 %v1830, %v1826
        %v2147 = vpack.c.b16 %v1831, %v1827
        %v2148 = vpack.c.b16 %v1832, %v1828
        %v2149 = vpack.c.b16 %v1837, %v1833
        %v2150 = vpack.c.b16 %v1838, %v1834
        %v2151 = vpack.c.b16 %v1839, %v1835
        %v2152 = vpack.c.b16 %v1840, %v1836
        %v2153 = vpack.c.b16 %v1845, %v1841
        %v2154 = vpack.c.b16 %v1846, %v1842
        %v2155 = vpack.c.b16 %v1847, %v1843
        %v2156 = vpack.c.b16 %v1848, %v1844
        %v2157 = vpack.c.b16 %v1853, %v1849
        %v2158 = vpack.c.b16 %v1854, %v1850
        %v2159 = vpack.c.b16 %v1855, %v1851
        %v2160 = vpack.c.b16 %v1856, %v1852
        %v2161 = vpack.c.b16 %v1861, %v1857
        %v2162 = vpack.c.b16 %v1862, %v1858
        %v2163 = vpack.c.b16 %v1863, %v1859
        %v2164 = vpack.c.b16 %v1864, %v1860
        %v2165 = vpack.c.b16 %v1869, %v1865
        %v2166 = vpack.c.b16 %v1870, %v1866
        %v2167 = vpack.c.b16 %v1871, %v1867
        %v2168 = vpack.c.b16 %v1872, %v1868
        %v2169 = vpack.c.b16 %v1877, %v1873
        %v2170 = vpack.c.b16 %v1878, %v1874
        %v2171 = vpack.c.b16 %v1879, %v1875
        %v2172 = vpack.c.b16 %v1880, %v1876
        %v2173 = vpack.c.b16 %v1885, %v1881
        %v2174 = vpack.c.b16 %v1886, %v1882
        %v2175 = vpack.c.b16 %v1887, %v1883
        %v2176 = vpack.c.b16 %v1888, %v1884
        %v2177 = vpack.c.b16 %v1893, %v1889
        %v2178 = vpack.c.b16 %v1894, %v1890
        %v2179 = vpack.c.b16 %v1895, %v1891
        %v2180 = vpack.c.b16 %v1896, %v1892
        %v2181 = vpack.c.b16 %v1901, %v1897
        %v2182 = vpack.c.b16 %v1902, %v1898
        %v2183 = vpack.c.b16 %v1903, %v1899
        %v2184 = vpack.c.b16 %v1904, %v1900
        %v2185 = vpack.c.b16 %v1909, %v1905
        %v2186 = vpack.c.b16 %v1910, %v1906
        %v2187 = vpack.c.b16 %v1911, %v1907
        %v2188 = vpack.c.b16 %v1912, %v1908
        %v2189 = vpack.c.b16 %v1917, %v1913
        %v2190 = vpack.c.b16 %v1918, %v1914
        %v2191 = vpack.c.b16 %v1919, %v1915
        %v2192 = vpack.c.b16 %v1920, %v1916
        %v2193 = vpack.c.b16 %v1925, %v1921
        %v2194 = vpack.c.b16 %v1926, %v1922
        %v2195 = vpack.c.b16 %v1927, %v1923
        %v2196 = vpack.c.b16 %v1928, %v1924
        %v2197 = vpack.c.b16 %v1933, %v1929
        %v2198 = vpack.c.b16 %v1934, %v1930
        %v2199 = vpack.c.b16 %v1935, %v1931
        %v2200 = vpack.c.b16 %v1936, %v1932
        %v2201 = vpack.c.b16 %v1941, %v1937
        %v2202 = vpack.c.b16 %v1942, %v1938
        %v2203 = vpack.c.b16 %v1943, %v1939
        %v2204 = vpack.c.b16 %v1944, %v1940
        %v2205 = vpack.c.b16 %v1949, %v1945
        %v2206 = vpack.c.b16 %v1950, %v1946
        %v2207 = vpack.c.b16 %v1951, %v1947
        %v2208 = vpack.c.b16 %v1952, %v1948
        %v2209 = vpack.c.b16 %v1957, %v1953
        %v2210 = vpack.c.b16 %v1958, %v1954
        %v2211 = vpack.c.b16 %v1959, %v1955
        %v2212 = vpack.c.b16 %v1960, %v1956
        %v2213 = vpack.c.b16 %v1965, %v1961
        %v2214 = vpack.c.b16 %v1966, %v1962
        %v2215 = vpack.c.b16 %v1967, %v1963
        %v2216 = vpack.c.b16 %v1968, %v1964
        %v2217 = vpack.c.b16 %v1973, %v1969
        %v2218 = vpack.c.b16 %v1974, %v1970
        %v2219 = vpack.c.b16 %v1975, %v1971
        %v2220 = vpack.c.b16 %v1976, %v1972
        %v2221 = vpack.c.b16 %v1981, %v1977
        %v2222 = vpack.c.b16 %v1982, %v1978
        %v2223 = vpack.c.b16 %v1983, %v1979
        %v2224 = vpack.c.b16 %v1984, %v1980
        %v2225 = vpack.c.b16 %v1989, %v1985
        %v2226 = vpack.c.b16 %v1990, %v1986
        %v2227 = vpack.c.b16 %v1991, %v1987
        %v2228 = vpack.c.b16 %v1992, %v1988
        %v2229 = vpack.c.b16 %v1997, %v1993
        %v2230 = vpack.c.b16 %v1998, %v1994
        %v2231 = vpack.c.b16 %v1999, %v1995
        %v2232 = vpack.c.b16 %v2000, %v1996
        %v2233 = vpack.c.b16 %v2005, %v2001
        %v2234 = vpack.c.b16 %v2006, %v2002
        %v2235 = vpack.c.b16 %v2007, %v2003
        %v2236 = vpack.c.b16 %v2008, %v2004
        %v2237 = vpack.c.b16 %v2013, %v2009
        %v2238 = vpack.c.b16 %v2014, %v2010
        %v2239 = vpack.c.b16 %v2015, %v2011
        %v2240 = vpack.c.b16 %v2016, %v2012
        %v2241 = vpack.c.b16 %v2021, %v2017
        %v2242 = vpack.c.b16 %v2022, %v2018
        %v2243 = vpack.c.b16 %v2023, %v2019
        %v2244 = vpack.c.b16 %v2024, %v2020
        %v2245 = vpack.c.b16 %v2029, %v2025
        %v2246 = vpack.c.b16 %v2030, %v2026
        %v2247 = vpack.c.b16 %v2031, %v2027
        %v2248 = vpack.c.b16 %v2032, %v2028
        %v2249 = vpack.c.b16 %v2037, %v2033
        %v2250 = vpack.c.b16 %v2038, %v2034
        %v2251 = vpack.c.b16 %v2039, %v2035
        %v2252 = vpack.c.b16 %v2040, %v2036
        %v2253 = vpack.c.b16 %v2045, %v2041
        %v2254 = vpack.c.b16 %v2046, %v2042
        %v2255 = vpack.c.b16 %v2047, %v2043
        %v2256 = vpack.c.b16 %v2048, %v2044
        %v2257 = vpack.c.b16 %v2053, %v2049
        %v2258 = vpack.c.b16 %v2054, %v2050
        %v2259 = vpack.c.b16 %v2055, %v2051
        %v2260 = vpack.c.b16 %v2056, %v2052
        %v2261 = vpack.c.b16 %v2061, %v2057
        %v2262 = vpack.c.b16 %v2062, %v2058
        %v2263 = vpack.c.b16 %v2063, %v2059
        %v2264 = vpack.c.b16 %v2064, %v2060
        %v2265 = vpack.c.b16 %v2069, %v2065
        %v2266 = vpack.c.b16 %v2070, %v2066
        %v2267 = vpack.c.b16 %v2071, %v2067
        %v2268 = vpack.c.b16 %v2072, %v2068
        %v2269 = vpack.c.b16 %v2077, %v2073
        %v2270 = vpack.c.b16 %v2078, %v2074
        %v2271 = vpack.c.b16 %v2079, %v2075
        %v2272 = vpack.c.b16 %v2080, %v2076
        %v2273 = vpack.c.b16 %v2085, %v2081
        %v2274 = vpack.c.b16 %v2086, %v2082
        %v2275 = vpack.c.b16 %v2087, %v2083
        %v2276 = vpack.c.b16 %v2088, %v2084
        %v2277 = vpack.c.b16 %v2093, %v2089
        %v2278 = vpack.c.b16 %v2094, %v2090
        %v2279 = vpack.c.b16 %v2095, %v2091
        %v2280 = vpack.c.b16 %v2096, %v2092
        %v2281 = vpack.c.b16 %v2101, %v2097
        %v2282 = vpack.c.b16 %v2102, %v2098
        %v2283 = vpack.c.b16 %v2103, %v2099
        %v2284 = vpack.c.b16 %v2104, %v2100
        %v2285 = vpack.c.b16 %v2109, %v2105
        %v2286 = vpack.c.b16 %v2110, %v2106
        %v2287 = vpack.c.b16 %v2111, %v2107
        %v2288 = vpack.c.b16 %v2112, %v2108
        %v2289 = vpack.c.b16 %v2117, %v2113
        %v2290 = vpack.c.b16 %v2118, %v2114
        %v2291 = vpack.c.b16 %v2119, %v2115
        %v2292 = vpack.c.b16 %v2120, %v2116
        %v2293 = vpack.c.b16 %v2125, %v2121
        %v2294 = vpack.c.b16 %v2126, %v2122
        %v2295 = vpack.c.b16 %v2127, %v2123
        %v2296 = vpack.c.b16 %v2128, %v2124
        %v2297 = vpack.c.b16 %v2133, %v2129
        %v2298 = vpack.c.b16 %v2134, %v2130
        %v2299 = vpack.c.b16 %v2135, %v2131
        %v2300 = vpack.c.b16 %v2136, %v2132
        %v2301 = vpack.c.b16 %v2141, %v2137
        %v2302 = vpack.c.b16 %v2142, %v2138
        %v2303 = vpack.c.b16 %v2143, %v2139
        %v2304 = vpack.c.b16 %v2144, %v2140
        %2465 = vmatprep.subr.bf16.mxu0 %v2146
        %2466 = vmatpush1.bf16.msra.mxu0 %v2145
        %2467 = vmatprep.subr.bf16.mxu0 %v2150
        %2468 = vmatpush1.bf16.msra.mxu0 %v2149
        %2469 = vmatprep.subr.bf16.mxu0 %v2154
        %2470 = vmatpush1.bf16.msra.mxu0 %v2153
        %2471 = vmatprep.subr.bf16.mxu0 %v2158
        %2472 = vmatpush1.bf16.msra.mxu0 %v2157
        %2473 = vmatprep.subr.bf16.mxu0 %v2162
        %2474 = vmatpush1.bf16.msra.mxu0 %v2161
        %2475 = vmatprep.subr.bf16.mxu0 %v2166
        %2476 = vmatpush1.bf16.msra.mxu0 %v2165
        %2477 = vmatprep.subr.bf16.mxu0 %v2170
        %2478 = vmatpush1.bf16.msra.mxu0 %v2169
        %2479 = vmatprep.subr.bf16.mxu0 %v2174
        %2480 = vmatpush1.bf16.msra.mxu0 %v2173
        %2481 = vmatprep.subr.bf16.mxu0 %v2178
        %2482 = vmatpush1.bf16.msra.mxu0 %v2177
        %2483 = vmatprep.subr.bf16.mxu0 %v2182
        %2484 = vmatpush1.bf16.msra.mxu0 %v2181
        %2485 = vmatprep.subr.bf16.mxu0 %v2186
        %2486 = vmatpush1.bf16.msra.mxu0 %v2185
        %2487 = vmatprep.subr.bf16.mxu0 %v2190
        %2488 = vmatpush1.bf16.msra.mxu0 %v2189
        %2489 = vmatprep.subr.bf16.mxu0 %v2194
        %2490 = vmatpush1.bf16.msra.mxu0 %v2193
        %2491 = vmatprep.subr.bf16.mxu0 %v2198
        %2492 = vmatpush1.bf16.msra.mxu0 %v2197
        %2493 = vmatprep.subr.bf16.mxu0 %v2202
        %2494 = vmatpush1.bf16.msra.mxu0 %v2201
        %2495 = vmatprep.subr.bf16.mxu0 %v2206
        %2496 = vmatpush1.bf16.msra.mxu0 %v2205
        %2497 = vmatprep.mubr.bf16.mxu0 %v1623
        %2498 = vmatmul.mubr.bf16.gmra.mrb[0].mxu0 %v1611
        %v2499 = vpop.f32.mrb[0].mxu0
        %v2500 = vadd.f32 0.0, %v2499
        %v2501 = vpop.f32.mrb[0].mxu0
        %v2502 = vadd.f32 0.0, %v2501
        %v2503 = vpop.f32.mrb[0].mxu0
        %v2504 = vadd.f32 0.0, %v2503
        %v2505 = vpop.f32.mrb[0].mxu0
        %v2506 = vadd.f32 0.0, %v2505
        %2507 = vdwg.mxu0
        %2508 = vmatprep.subr.bf16.mxu0 %v2210
        %2509 = vmatpush1.bf16.msra.mxu0 %v2209
        %2510 = vmatprep.subr.bf16.mxu0 %v2214
        %2511 = vmatpush1.bf16.msra.mxu0 %v2213
        %2512 = vmatprep.subr.bf16.mxu0 %v2218
        %2513 = vmatpush1.bf16.msra.mxu0 %v2217
        %2514 = vmatprep.subr.bf16.mxu0 %v2222
        %2515 = vmatpush1.bf16.msra.mxu0 %v2221
        %2516 = vmatprep.subr.bf16.mxu0 %v2226
        %2517 = vmatpush1.bf16.msra.mxu0 %v2225
        %2518 = vmatprep.subr.bf16.mxu0 %v2230
        %2519 = vmatpush1.bf16.msra.mxu0 %v2229
        %2520 = vmatprep.subr.bf16.mxu0 %v2234
        %2521 = vmatpush1.bf16.msra.mxu0 %v2233
        %2522 = vmatprep.subr.bf16.mxu0 %v2238
        %2523 = vmatpush1.bf16.msra.mxu0 %v2237
        %2524 = vmatprep.subr.bf16.mxu0 %v2242
        %2525 = vmatpush1.bf16.msra.mxu0 %v2241
        %2526 = vmatprep.subr.bf16.mxu0 %v2246
        %2527 = vmatpush1.bf16.msra.mxu0 %v2245
        %2528 = vmatprep.subr.bf16.mxu0 %v2250
        %2529 = vmatpush1.bf16.msra.mxu0 %v2249
        %2530 = vmatprep.subr.bf16.mxu0 %v2254
        %2531 = vmatpush1.bf16.msra.mxu0 %v2253
        %2532 = vmatprep.subr.bf16.mxu0 %v2258
        %2533 = vmatpush1.bf16.msra.mxu0 %v2257
        %2534 = vmatprep.subr.bf16.mxu0 %v2262
        %2535 = vmatpush1.bf16.msra.mxu0 %v2261
        %2536 = vmatprep.subr.bf16.mxu0 %v2266
        %2537 = vmatpush1.bf16.msra.mxu0 %v2265
        %2538 = vmatprep.subr.bf16.mxu0 %v2270
        %2539 = vmatpush1.bf16.msra.mxu0 %v2269
        %2540 = vmatprep.mubr.bf16.mxu0 %v1647
        %2541 = vmatmul.mubr.bf16.gmra.mrb[0].mxu0 %v1635
        %v2542 = vpop.f32.mrb[0].mxu0
        %v2543 = vadd.f32 %v2500, %v2542
        %v2544 = vpop.f32.mrb[0].mxu0
        %v2545 = vadd.f32 %v2502, %v2544
        %v2546 = vpop.f32.mrb[0].mxu0
        %v2547 = vadd.f32 %v2504, %v2546
        %v2548 = vpop.f32.mrb[0].mxu0
        %v2549 = vadd.f32 %v2506, %v2548
        %2550 = vdwg.mxu0
        %2551 = vmatprep.subr.bf16.mxu0 %v2274
        %2552 = vmatpush1.bf16.msra.mxu0 %v2273
        %2553 = vmatprep.subr.bf16.mxu0 %v2278
        %2554 = vmatpush1.bf16.msra.mxu0 %v2277
        %2555 = vmatprep.subr.bf16.mxu0 %v2282
        %2556 = vmatpush1.bf16.msra.mxu0 %v2281
        %2557 = vmatprep.subr.bf16.mxu0 %v2286
        %2558 = vmatpush1.bf16.msra.mxu0 %v2285
        %2559 = vmatprep.subr.bf16.mxu0 %v2290
        %2560 = vmatpush1.bf16.msra.mxu0 %v2289
        %2561 = vmatprep.subr.bf16.mxu0 %v2294
        %2562 = vmatpush1.bf16.msra.mxu0 %v2293
        %2563 = vmatprep.subr.bf16.mxu0 %v2298
        %2564 = vmatpush1.bf16.msra.mxu0 %v2297
        %2565 = vmatprep.subr.bf16.mxu0 %v2302
        %2566 = vmatpush1.bf16.msra.mxu0 %v2301
        %2567 = vmatprep.subr.bf16.mxu0 0
        %2568 = vmatpush1.bf16.msra.mxu0 0
        %2569 = vmatprep.subr.bf16.mxu0 0
        %2570 = vmatpush1.bf16.msra.mxu0 0
        %2571 = vmatprep.subr.bf16.mxu0 0
        %2572 = vmatpush1.bf16.msra.mxu0 0
        %2573 = vmatprep.subr.bf16.mxu0 0
        %2574 = vmatpush1.bf16.msra.mxu0 0
        %2575 = vmatprep.subr.bf16.mxu0 0
        %2576 = vmatpush1.bf16.msra.mxu0 0
        %2577 = vmatprep.subr.bf16.mxu0 0
        %2578 = vmatpush1.bf16.msra.mxu0 0
        %2579 = vmatprep.subr.bf16.mxu0 0
        %2580 = vmatpush1.bf16.msra.mxu0 0
        %2581 = vmatprep.subr.bf16.mxu0 0
        %2582 = vmatpush1.bf16.msra.mxu0 0
        %2583 = vmatprep.mubr.bf16.mxu0 0
        %2584 = vmatmul.mubr.bf16.gmra.mrb[0].mxu0 %v1659
        %v2585 = vpop.f32.mrb[0].mxu0
        %v2586 = vadd.f32 %v2543, %v2585
        %v2587 = vpop.f32.mrb[0].mxu0
        %v2588 = vadd.f32 %v2545, %v2587
        %v2589 = vpop.f32.mrb[0].mxu0
        %v2590 = vadd.f32 %v2547, %v2589
        %v2591 = vpop.f32.mrb[0].mxu0
        %v2592 = vadd.f32 %v2549, %v2591
        %2593 = vdwg.mxu0
        %2594 = vmatprep.subr.bf16.mxu0 %v2148
        %2595 = vmatpush1.bf16.msra.mxu0 %v2147
        %2596 = vmatprep.subr.bf16.mxu0 %v2152
        %2597 = vmatpush1.bf16.msra.mxu0 %v2151
        %2598 = vmatprep.subr.bf16.mxu0 %v2156
        %2599 = vmatpush1.bf16.msra.mxu0 %v2155
        %2600 = vmatprep.subr.bf16.mxu0 %v2160
        %2601 = vmatpush1.bf16.msra.mxu0 %v2159
        %2602 = vmatprep.subr.bf16.mxu0 %v2164
        %2603 = vmatpush1.bf16.msra.mxu0 %v2163
        %2604 = vmatprep.subr.bf16.mxu0 %v2168
        %2605 = vmatpush1.bf16.msra.mxu0 %v2167
        %2606 = vmatprep.subr.bf16.mxu0 %v2172
        %2607 = vmatpush1.bf16.msra.mxu0 %v2171
        %2608 = vmatprep.subr.bf16.mxu0 %v2176
        %2609 = vmatpush1.bf16.msra.mxu0 %v2175
        %2610 = vmatprep.subr.bf16.mxu0 %v2180
        %2611 = vmatpush1.bf16.msra.mxu0 %v2179
        %2612 = vmatprep.subr.bf16.mxu0 %v2184
        %2613 = vmatpush1.bf16.msra.mxu0 %v2183
        %2614 = vmatprep.subr.bf16.mxu0 %v2188
        %2615 = vmatpush1.bf16.msra.mxu0 %v2187
        %2616 = vmatprep.subr.bf16.mxu0 %v2192
        %2617 = vmatpush1.bf16.msra.mxu0 %v2191
        %2618 = vmatprep.subr.bf16.mxu0 %v2196
        %2619 = vmatpush1.bf16.msra.mxu0 %v2195
        %2620 = vmatprep.subr.bf16.mxu0 %v2200
        %2621 = vmatpush1.bf16.msra.mxu0 %v2199
        %2622 = vmatprep.subr.bf16.mxu0 %v2204
        %2623 = vmatpush1.bf16.msra.mxu0 %v2203
        %2624 = vmatprep.subr.bf16.mxu0 %v2208
        %2625 = vmatpush1.bf16.msra.mxu0 %v2207
        %2626 = vmatprep.mubr.bf16.mxu0 %v1623
        %2627 = vmatmul.mubr.bf16.gmra.mrb[0].mxu0 %v1611
        %v2628 = vpop.f32.mrb[0].mxu0
        %v2629 = vadd.f32 0.0, %v2628
        %v2630 = vpop.f32.mrb[0].mxu0
        %v2631 = vadd.f32 0.0, %v2630
        %v2632 = vpop.f32.mrb[0].mxu0
        %v2633 = vadd.f32 0.0, %v2632
        %v2634 = vpop.f32.mrb[0].mxu0
        %v2635 = vadd.f32 0.0, %v2634
        %2636 = vdwg.mxu0
        %2637 = vmatprep.subr.bf16.mxu0 %v2212
        %2638 = vmatpush1.bf16.msra.mxu0 %v2211
        %2639 = vmatprep.subr.bf16.mxu0 %v2216
        %2640 = vmatpush1.bf16.msra.mxu0 %v2215
        %2641 = vmatprep.subr.bf16.mxu0 %v2220
        %2642 = vmatpush1.bf16.msra.mxu0 %v2219
        %2643 = vmatprep.subr.bf16.mxu0 %v2224
        %2644 = vmatpush1.bf16.msra.mxu0 %v2223
        %2645 = vmatprep.subr.bf16.mxu0 %v2228
        %2646 = vmatpush1.bf16.msra.mxu0 %v2227
        %2647 = vmatprep.subr.bf16.mxu0 %v2232
        %2648 = vmatpush1.bf16.msra.mxu0 %v2231
        %2649 = vmatprep.subr.bf16.mxu0 %v2236
        %2650 = vmatpush1.bf16.msra.mxu0 %v2235
        %2651 = vmatprep.subr.bf16.mxu0 %v2240
        %2652 = vmatpush1.bf16.msra.mxu0 %v2239
        %2653 = vmatprep.subr.bf16.mxu0 %v2244
        %2654 = vmatpush1.bf16.msra.mxu0 %v2243
        %2655 = vmatprep.subr.bf16.mxu0 %v2248
        %2656 = vmatpush1.bf16.msra.mxu0 %v2247
        %2657 = vmatprep.subr.bf16.mxu0 %v2252
        %2658 = vmatpush1.bf16.msra.mxu0 %v2251
        %2659 = vmatprep.subr.bf16.mxu0 %v2256
        %2660 = vmatpush1.bf16.msra.mxu0 %v2255
        %2661 = vmatprep.subr.bf16.mxu0 %v2260
        %2662 = vmatpush1.bf16.msra.mxu0 %v2259
        %2663 = vmatprep.subr.bf16.mxu0 %v2264
        %2664 = vmatpush1.bf16.msra.mxu0 %v2263
        %2665 = vmatprep.subr.bf16.mxu0 %v2268
        %2666 = vmatpush1.bf16.msra.mxu0 %v2267
        %2667 = vmatprep.subr.bf16.mxu0 %v2272
        %2668 = vmatpush1.bf16.msra.mxu0 %v2271
        %2669 = vmatprep.mubr.bf16.mxu0 %v1647
        %2670 = vmatmul.mubr.bf16.gmra.mrb[0].mxu0 %v1635
        %v2671 = vpop.f32.mrb[0].mxu0
        %v2672 = vadd.f32 %v2629, %v2671
        %v2673 = vpop.f32.mrb[0].mxu0
        %v2674 = vadd.f32 %v2631, %v2673
        %v2675 = vpop.f32.mrb[0].mxu0
        %v2676 = vadd.f32 %v2633, %v2675
        %v2677 = vpop.f32.mrb[0].mxu0
        %v2678 = vadd.f32 %v2635, %v2677
        %2679 = vdwg.mxu0
        %2680 = vmatprep.subr.bf16.mxu0 %v2276
        %2681 = vmatpush1.bf16.msra.mxu0 %v2275
        %2682 = vmatprep.subr.bf16.mxu0 %v2280
        %2683 = vmatpush1.bf16.msra.mxu0 %v2279
        %2684 = vmatprep.subr.bf16.mxu0 %v2284
        %2685 = vmatpush1.bf16.msra.mxu0 %v2283
        %2686 = vmatprep.subr.bf16.mxu0 %v2288
        %2687 = vmatpush1.bf16.msra.mxu0 %v2287
        %2688 = vmatprep.subr.bf16.mxu0 %v2292
        %2689 = vmatpush1.bf16.msra.mxu0 %v2291
        %2690 = vmatprep.subr.bf16.mxu0 %v2296
        %2691 = vmatpush1.bf16.msra.mxu0 %v2295
        %2692 = vmatprep.subr.bf16.mxu0 %v2300
        %2693 = vmatpush1.bf16.msra.mxu0 %v2299
        %2694 = vmatprep.subr.bf16.mxu0 %v2304
        %2695 = vmatpush1.bf16.msra.mxu0 %v2303
        %2696 = vmatprep.subr.bf16.mxu0 0
        %2697 = vmatpush1.bf16.msra.mxu0 0
        %2698 = vmatprep.subr.bf16.mxu0 0
        %2699 = vmatpush1.bf16.msra.mxu0 0
        %2700 = vmatprep.subr.bf16.mxu0 0
        %2701 = vmatpush1.bf16.msra.mxu0 0
        %2702 = vmatprep.subr.bf16.mxu0 0
        %2703 = vmatpush1.bf16.msra.mxu0 0
        %2704 = vmatprep.subr.bf16.mxu0 0
        %2705 = vmatpush1.bf16.msra.mxu0 0
        %2706 = vmatprep.subr.bf16.mxu0 0
        %2707 = vmatpush1.bf16.msra.mxu0 0
        %2708 = vmatprep.subr.bf16.mxu0 0
        %2709 = vmatpush1.bf16.msra.mxu0 0
        %2710 = vmatprep.subr.bf16.mxu0 0
        %2711 = vmatpush1.bf16.msra.mxu0 0
        %2712 = vmatprep.mubr.bf16.mxu0 0
        %2713 = vmatmul.mubr.bf16.gmra.mrb[0].mxu0 %v1659
        %v2714 = vpop.f32.mrb[0].mxu0
        %v2715 = vadd.f32 %v2672, %v2714
        %v2716 = vpop.f32.mrb[0].mxu0
        %v2717 = vadd.f32 %v2674, %v2716
        %v2718 = vpop.f32.mrb[0].mxu0
        %v2719 = vadd.f32 %v2676, %v2718
        %v2720 = vpop.f32.mrb[0].mxu0
        %v2721 = vadd.f32 %v2678, %v2720
        %2722 = vdwg.mxu0
        %v2883 = vunpack.c.l.b16 %v1259
        %v2884 = vunpack.c.h.b16 %v1259
        %v2885 = vunpack.c.l.b16 %v1260
        %v2886 = vunpack.c.h.b16 %v1260
        %v2887 = vunpack.c.l.b16 %v1261
        %v2888 = vunpack.c.h.b16 %v1261
        %v2889 = vunpack.c.l.b16 %v1262
        %v2890 = vunpack.c.h.b16 %v1262
        %v2891 = vunpack.c.l.b16 %v1263
        %v2892 = vunpack.c.h.b16 %v1263
        %v2893 = vunpack.c.l.b16 %v1264
        %v2894 = vunpack.c.h.b16 %v1264
        %v2895 = vunpack.c.l.b16 %v1265
        %v2896 = vunpack.c.h.b16 %v1265
        %v2897 = vunpack.c.l.b16 %v1266
        %v2898 = vunpack.c.h.b16 %v1266
        %v2899 = vunpack.c.l.b16 %v1267
        %v2900 = vunpack.c.h.b16 %v1267
        %v2901 = vunpack.c.l.b16 %v1268
        %v2902 = vunpack.c.h.b16 %v1268
        %v2903 = vunpack.c.l.b16 %v1269
        %v2904 = vunpack.c.h.b16 %v1269
        %v2905 = vunpack.c.l.b16 %v1270
        %v2906 = vunpack.c.h.b16 %v1270
        %v2907 = vunpack.c.l.b16 %v1271
        %v2908 = vunpack.c.h.b16 %v1271
        %v2909 = vunpack.c.l.b16 %v1272
        %v2910 = vunpack.c.h.b16 %v1272
        %v2911 = vunpack.c.l.b16 %v1273
        %v2912 = vunpack.c.h.b16 %v1273
        %v2913 = vunpack.c.l.b16 %v1274
        %v2914 = vunpack.c.h.b16 %v1274
        %v2915 = vunpack.c.l.b16 %v1275
        %v2916 = vunpack.c.h.b16 %v1275
        %v2917 = vunpack.c.l.b16 %v1276
        %v2918 = vunpack.c.h.b16 %v1276
        %v2919 = vunpack.c.l.b16 %v1277
        %v2920 = vunpack.c.h.b16 %v1277
        %v2921 = vunpack.c.l.b16 %v1278
        %v2922 = vunpack.c.h.b16 %v1278
        %v2923 = vunpack.c.l.b16 %v1279
        %v2924 = vunpack.c.h.b16 %v1279
        %v2925 = vunpack.c.l.b16 %v1280
        %v2926 = vunpack.c.h.b16 %v1280
        %v2927 = vunpack.c.l.b16 %v1281
        %v2928 = vunpack.c.h.b16 %v1281
        %v2929 = vunpack.c.l.b16 %v1282
        %v2930 = vunpack.c.h.b16 %v1282
        %v2931 = vunpack.c.l.b16 %v1283
        %v2932 = vunpack.c.h.b16 %v1283
        %v2933 = vunpack.c.l.b16 %v1284
        %v2934 = vunpack.c.h.b16 %v1284
        %v2935 = vunpack.c.l.b16 %v1285
        %v2936 = vunpack.c.h.b16 %v1285
        %v2937 = vunpack.c.l.b16 %v1286
        %v2938 = vunpack.c.h.b16 %v1286
        %v2939 = vunpack.c.l.b16 %v1287
        %v2940 = vunpack.c.h.b16 %v1287
        %v2941 = vunpack.c.l.b16 %v1288
        %v2942 = vunpack.c.h.b16 %v1288
        %v2943 = vunpack.c.l.b16 %v1289
        %v2944 = vunpack.c.h.b16 %v1289
        %v2945 = vunpack.c.l.b16 %v1290
        %v2946 = vunpack.c.h.b16 %v1290
        %v2947 = vunpack.c.l.b16 %v1291
        %v2948 = vunpack.c.h.b16 %v1291
        %v2949 = vunpack.c.l.b16 %v1292
        %v2950 = vunpack.c.h.b16 %v1292
        %v2951 = vunpack.c.l.b16 %v1293
        %v2952 = vunpack.c.h.b16 %v1293
        %v2953 = vunpack.c.l.b16 %v1294
        %v2954 = vunpack.c.h.b16 %v1294
        %v2955 = vunpack.c.l.b16 %v1295
        %v2956 = vunpack.c.h.b16 %v1295
        %v2957 = vunpack.c.l.b16 %v1296
        %v2958 = vunpack.c.h.b16 %v1296
        %v2959 = vunpack.c.l.b16 %v1297
        %v2960 = vunpack.c.h.b16 %v1297
        %v2961 = vunpack.c.l.b16 %v1298
        %v2962 = vunpack.c.h.b16 %v1298
        %v2963 = vunpack.c.l.b16 %v1299
        %v2964 = vunpack.c.h.b16 %v1299
        %v2965 = vunpack.c.l.b16 %v1300
        %v2966 = vunpack.c.h.b16 %v1300
        %v2967 = vunpack.c.l.b16 %v1301
        %v2968 = vunpack.c.h.b16 %v1301
        %v2969 = vunpack.c.l.b16 %v1302
        %v2970 = vunpack.c.h.b16 %v1302
        %v2971 = vunpack.c.l.b16 %v1303
        %v2972 = vunpack.c.h.b16 %v1303
        %v2973 = vunpack.c.l.b16 %v1304
        %v2974 = vunpack.c.h.b16 %v1304
        %v2975 = vunpack.c.l.b16 %v1305
        %v2976 = vunpack.c.h.b16 %v1305
        %v2977 = vunpack.c.l.b16 %v1306
        %v2978 = vunpack.c.h.b16 %v1306
        %v2979 = vunpack.c.l.b16 %v1307
        %v2980 = vunpack.c.h.b16 %v1307
        %v2981 = vunpack.c.l.b16 %v1308
        %v2982 = vunpack.c.h.b16 %v1308
        %v2983 = vunpack.c.l.b16 %v1309
        %v2984 = vunpack.c.h.b16 %v1309
        %v2985 = vunpack.c.l.b16 %v1310
        %v2986 = vunpack.c.h.b16 %v1310
        %v2987 = vunpack.c.l.b16 %v1311
        %v2988 = vunpack.c.h.b16 %v1311
        %v2989 = vunpack.c.l.b16 %v1312
        %v2990 = vunpack.c.h.b16 %v1312
        %v2991 = vunpack.c.l.b16 %v1313
        %v2992 = vunpack.c.h.b16 %v1313
        %v2993 = vunpack.c.l.b16 %v1314
        %v2994 = vunpack.c.h.b16 %v1314
        %v2995 = vunpack.c.l.b16 %v1315
        %v2996 = vunpack.c.h.b16 %v1315
        %v2997 = vunpack.c.l.b16 %v1316
        %v2998 = vunpack.c.h.b16 %v1316
        %v2999 = vunpack.c.l.b16 %v1317
        %v3000 = vunpack.c.h.b16 %v1317
        %v3001 = vunpack.c.l.b16 %v1318
        %v3002 = vunpack.c.h.b16 %v1318
        %v3003 = vunpack.c.l.b16 %v1319
        %v3004 = vunpack.c.h.b16 %v1319
        %v3005 = vunpack.c.l.b16 %v1320
        %v3006 = vunpack.c.h.b16 %v1320
        %v3007 = vunpack.c.l.b16 %v1321
        %v3008 = vunpack.c.h.b16 %v1321
        %v3009 = vunpack.c.l.b16 %v1322
        %v3010 = vunpack.c.h.b16 %v1322
        %v3011 = vunpack.c.l.b16 %v1323
        %v3012 = vunpack.c.h.b16 %v1323
        %v3013 = vunpack.c.l.b16 %v1324
        %v3014 = vunpack.c.h.b16 %v1324
        %v3015 = vunpack.c.l.b16 %v1325
        %v3016 = vunpack.c.h.b16 %v1325
        %v3017 = vunpack.c.l.b16 %v1326
        %v3018 = vunpack.c.h.b16 %v1326
        %v3019 = vunpack.c.l.b16 %v1327
        %v3020 = vunpack.c.h.b16 %v1327
        %v3021 = vunpack.c.l.b16 %v1328
        %v3022 = vunpack.c.h.b16 %v1328
        %v3023 = vunpack.c.l.b16 %v1329
        %v3024 = vunpack.c.h.b16 %v1329
        %v3025 = vunpack.c.l.b16 %v1330
        %v3026 = vunpack.c.h.b16 %v1330
        %v3027 = vunpack.c.l.b16 %v1331
        %v3028 = vunpack.c.h.b16 %v1331
        %v3029 = vunpack.c.l.b16 %v1332
        %v3030 = vunpack.c.h.b16 %v1332
        %v3031 = vunpack.c.l.b16 %v1333
        %v3032 = vunpack.c.h.b16 %v1333
        %v3033 = vunpack.c.l.b16 %v1334
        %v3034 = vunpack.c.h.b16 %v1334
        %v3035 = vunpack.c.l.b16 %v1335
        %v3036 = vunpack.c.h.b16 %v1335
        %v3037 = vunpack.c.l.b16 %v1336
        %v3038 = vunpack.c.h.b16 %v1336
        %v3039 = vunpack.c.l.b16 %v1337
        %v3040 = vunpack.c.h.b16 %v1337
        %v3041 = vunpack.c.l.b16 %v1338
        %v3042 = vunpack.c.h.b16 %v1338
        %v3043 = vunpack.c.l.b16 %v1339
        %v3044 = vunpack.c.h.b16 %v1339
        %v3045 = vunpack.c.l.b16 %v1340
        %v3046 = vunpack.c.h.b16 %v1340
        %v3047 = vunpack.c.l.b16 %v1341
        %v3048 = vunpack.c.h.b16 %v1341
        %v3049 = vunpack.c.l.b16 %v1342
        %v3050 = vunpack.c.h.b16 %v1342
        %v3051 = vunpack.c.l.b16 %v1343
        %v3052 = vunpack.c.h.b16 %v1343
        %v3053 = vunpack.c.l.b16 %v1344
        %v3054 = vunpack.c.h.b16 %v1344
        %v3055 = vunpack.c.l.b16 %v1345
        %v3056 = vunpack.c.h.b16 %v1345
        %v3057 = vunpack.c.l.b16 %v1346
        %v3058 = vunpack.c.h.b16 %v1346
        %v3059 = vunpack.c.l.b16 %v1347
        %v3060 = vunpack.c.h.b16 %v1347
        %v3061 = vunpack.c.l.b16 %v1348
        %v3062 = vunpack.c.h.b16 %v1348
        %v3063 = vunpack.c.l.b16 %v1349
        %v3064 = vunpack.c.h.b16 %v1349
        %v3065 = vunpack.c.l.b16 %v1350
        %v3066 = vunpack.c.h.b16 %v1350
        %v3067 = vunpack.c.l.b16 %v1351
        %v3068 = vunpack.c.h.b16 %v1351
        %v3069 = vunpack.c.l.b16 %v1352
        %v3070 = vunpack.c.h.b16 %v1352
        %v3071 = vunpack.c.l.b16 %v1353
        %v3072 = vunpack.c.h.b16 %v1353
        %v3073 = vunpack.c.l.b16 %v1354
        %v3074 = vunpack.c.h.b16 %v1354
        %v3075 = vunpack.c.l.b16 %v1355
        %v3076 = vunpack.c.h.b16 %v1355
        %v3077 = vunpack.c.l.b16 %v1356
        %v3078 = vunpack.c.h.b16 %v1356
        %v3079 = vunpack.c.l.b16 %v1357
        %v3080 = vunpack.c.h.b16 %v1357
        %v3081 = vunpack.c.l.b16 %v1358
        %v3082 = vunpack.c.h.b16 %v1358
        %v3083 = vunpack.c.l.b16 %v1359
        %v3084 = vunpack.c.h.b16 %v1359
        %v3085 = vunpack.c.l.b16 %v1360
        %v3086 = vunpack.c.h.b16 %v1360
        %v3087 = vunpack.c.l.b16 %v1361
        %v3088 = vunpack.c.h.b16 %v1361
        %v3089 = vunpack.c.l.b16 %v1362
        %v3090 = vunpack.c.h.b16 %v1362
        %v3091 = vunpack.c.l.b16 %v1363
        %v3092 = vunpack.c.h.b16 %v1363
        %v3093 = vunpack.c.l.b16 %v1364
        %v3094 = vunpack.c.h.b16 %v1364
        %v3095 = vunpack.c.l.b16 %v1365
        %v3096 = vunpack.c.h.b16 %v1365
        %v3097 = vunpack.c.l.b16 %v1366
        %v3098 = vunpack.c.h.b16 %v1366
        %v3099 = vunpack.c.l.b16 %v1367
        %v3100 = vunpack.c.h.b16 %v1367
        %v3101 = vunpack.c.l.b16 %v1368
        %v3102 = vunpack.c.h.b16 %v1368
        %v3103 = vunpack.c.l.b16 %v1369
        %v3104 = vunpack.c.h.b16 %v1369
        %v3105 = vunpack.c.l.b16 %v1370
        %v3106 = vunpack.c.h.b16 %v1370
        %v3107 = vunpack.c.l.b16 %v1371
        %v3108 = vunpack.c.h.b16 %v1371
        %v3109 = vunpack.c.l.b16 %v1372
        %v3110 = vunpack.c.h.b16 %v1372
        %v3111 = vunpack.c.l.b16 %v1373
        %v3112 = vunpack.c.h.b16 %v1373
        %v3113 = vunpack.c.l.b16 %v1374
        %v3114 = vunpack.c.h.b16 %v1374
        %v3115 = vunpack.c.l.b16 %v1375
        %v3116 = vunpack.c.h.b16 %v1375
        %v3117 = vunpack.c.l.b16 %v1376
        %v3118 = vunpack.c.h.b16 %v1376
        %v3119 = vunpack.c.l.b16 %v1377
        %v3120 = vunpack.c.h.b16 %v1377
        %v3121 = vunpack.c.l.b16 %v1378
        %v3122 = vunpack.c.h.b16 %v1378
        %v3123 = vunpack.c.l.b16 %v1379
        %v3124 = vunpack.c.h.b16 %v1379
        %v3125 = vunpack.c.l.b16 %v1380
        %v3126 = vunpack.c.h.b16 %v1380
        %v3127 = vunpack.c.l.b16 %v1381
        %v3128 = vunpack.c.h.b16 %v1381
        %v3129 = vunpack.c.l.b16 %v1382
        %v3130 = vunpack.c.h.b16 %v1382
        %v3131 = vunpack.c.l.b16 %v1383
        %v3132 = vunpack.c.h.b16 %v1383
        %v3133 = vunpack.c.l.b16 %v1384
        %v3134 = vunpack.c.h.b16 %v1384
        %v3135 = vunpack.c.l.b16 %v1385
        %v3136 = vunpack.c.h.b16 %v1385
        %v3137 = vunpack.c.l.b16 %v1386
        %v3138 = vunpack.c.h.b16 %v1386
        %v3139 = vunpack.c.l.b16 %v1387
        %v3140 = vunpack.c.h.b16 %v1387
        %v3141 = vunpack.c.l.b16 %v1388
        %v3142 = vunpack.c.h.b16 %v1388
        %v3143 = vunpack.c.l.b16 %v1389
        %v3144 = vunpack.c.h.b16 %v1389
        %v3145 = vunpack.c.l.b16 %v1390
        %v3146 = vunpack.c.h.b16 %v1390
        %v3147 = vunpack.c.l.b16 %v1391
        %v3148 = vunpack.c.h.b16 %v1391
        %v3149 = vunpack.c.l.b16 %v1392
        %v3150 = vunpack.c.h.b16 %v1392
        %v3151 = vunpack.c.l.b16 %v1393
        %v3152 = vunpack.c.h.b16 %v1393
        %v3153 = vunpack.c.l.b16 %v1394
        %v3154 = vunpack.c.h.b16 %v1394
        %v3155 = vunpack.c.l.b16 %v1395
        %v3156 = vunpack.c.h.b16 %v1395
        %v3157 = vunpack.c.l.b16 %v1396
        %v3158 = vunpack.c.h.b16 %v1396
        %v3159 = vunpack.c.l.b16 %v1397
        %v3160 = vunpack.c.h.b16 %v1397
        %v3161 = vunpack.c.l.b16 %v1398
        %v3162 = vunpack.c.h.b16 %v1398
        %v3163 = vunpack.c.l.b16 %v1399
        %v3164 = vunpack.c.h.b16 %v1399
        %v3165 = vunpack.c.l.b16 %v1400
        %v3166 = vunpack.c.h.b16 %v1400
        %v3167 = vunpack.c.l.b16 %v1401
        %v3168 = vunpack.c.h.b16 %v1401
        %v3169 = vunpack.c.l.b16 %v1402
        %v3170 = vunpack.c.h.b16 %v1402
        %v3171 = vunpack.c.l.b16 %v1403
        %v3172 = vunpack.c.h.b16 %v1403
        %v3173 = vunpack.c.l.b16 %v1404
        %v3174 = vunpack.c.h.b16 %v1404
        %v3175 = vunpack.c.l.b16 %v1405
        %v3176 = vunpack.c.h.b16 %v1405
        %v3177 = vunpack.c.l.b16 %v1406
        %v3178 = vunpack.c.h.b16 %v1406
        %v3179 = vunpack.c.l.b16 %v1407
        %v3180 = vunpack.c.h.b16 %v1407
        %v3181 = vunpack.c.l.b16 %v1408
        %v3182 = vunpack.c.h.b16 %v1408
        %v3183 = vunpack.c.l.b16 %v1409
        %v3184 = vunpack.c.h.b16 %v1409
        %v3185 = vunpack.c.l.b16 %v1410
        %v3186 = vunpack.c.h.b16 %v1410
        %v3187 = vunpack.c.l.b16 %v1411
        %v3188 = vunpack.c.h.b16 %v1411
        %v3189 = vunpack.c.l.b16 %v1412
        %v3190 = vunpack.c.h.b16 %v1412
        %v3191 = vunpack.c.l.b16 %v1413
        %v3192 = vunpack.c.h.b16 %v1413
        %v3193 = vunpack.c.l.b16 %v1414
        %v3194 = vunpack.c.h.b16 %v1414
        %v3195 = vunpack.c.l.b16 %v1415
        %v3196 = vunpack.c.h.b16 %v1415
        %v3197 = vunpack.c.l.b16 %v1416
        %v3198 = vunpack.c.h.b16 %v1416
        %v3199 = vunpack.c.l.b16 %v1417
        %v3200 = vunpack.c.h.b16 %v1417
        %v3201 = vunpack.c.l.b16 %v1418
        %v3202 = vunpack.c.h.b16 %v1418
        %v3203 = vpack.c.b16 %v2887, %v2883
        %v3204 = vpack.c.b16 %v2888, %v2884
        %v3205 = vpack.c.b16 %v2889, %v2885
        %v3206 = vpack.c.b16 %v2890, %v2886
        %v3207 = vpack.c.b16 %v2895, %v2891
        %v3208 = vpack.c.b16 %v2896, %v2892
        %v3209 = vpack.c.b16 %v2897, %v2893
        %v3210 = vpack.c.b16 %v2898, %v2894
        %v3211 = vpack.c.b16 %v2903, %v2899
        %v3212 = vpack.c.b16 %v2904, %v2900
        %v3213 = vpack.c.b16 %v2905, %v2901
        %v3214 = vpack.c.b16 %v2906, %v2902
        %v3215 = vpack.c.b16 %v2911, %v2907
        %v3216 = vpack.c.b16 %v2912, %v2908
        %v3217 = vpack.c.b16 %v2913, %v2909
        %v3218 = vpack.c.b16 %v2914, %v2910
        %v3219 = vpack.c.b16 %v2919, %v2915
        %v3220 = vpack.c.b16 %v2920, %v2916
        %v3221 = vpack.c.b16 %v2921, %v2917
        %v3222 = vpack.c.b16 %v2922, %v2918
        %v3223 = vpack.c.b16 %v2927, %v2923
        %v3224 = vpack.c.b16 %v2928, %v2924
        %v3225 = vpack.c.b16 %v2929, %v2925
        %v3226 = vpack.c.b16 %v2930, %v2926
        %v3227 = vpack.c.b16 %v2935, %v2931
        %v3228 = vpack.c.b16 %v2936, %v2932
        %v3229 = vpack.c.b16 %v2937, %v2933
        %v3230 = vpack.c.b16 %v2938, %v2934
        %v3231 = vpack.c.b16 %v2943, %v2939
        %v3232 = vpack.c.b16 %v2944, %v2940
        %v3233 = vpack.c.b16 %v2945, %v2941
        %v3234 = vpack.c.b16 %v2946, %v2942
        %v3235 = vpack.c.b16 %v2951, %v2947
        %v3236 = vpack.c.b16 %v2952, %v2948
        %v3237 = vpack.c.b16 %v2953, %v2949
        %v3238 = vpack.c.b16 %v2954, %v2950
        %v3239 = vpack.c.b16 %v2959, %v2955
        %v3240 = vpack.c.b16 %v2960, %v2956
        %v3241 = vpack.c.b16 %v2961, %v2957
        %v3242 = vpack.c.b16 %v2962, %v2958
        %v3243 = vpack.c.b16 %v2967, %v2963
        %v3244 = vpack.c.b16 %v2968, %v2964
        %v3245 = vpack.c.b16 %v2969, %v2965
        %v3246 = vpack.c.b16 %v2970, %v2966
        %v3247 = vpack.c.b16 %v2975, %v2971
        %v3248 = vpack.c.b16 %v2976, %v2972
        %v3249 = vpack.c.b16 %v2977, %v2973
        %v3250 = vpack.c.b16 %v2978, %v2974
        %v3251 = vpack.c.b16 %v2983, %v2979
        %v3252 = vpack.c.b16 %v2984, %v2980
        %v3253 = vpack.c.b16 %v2985, %v2981
        %v3254 = vpack.c.b16 %v2986, %v2982
        %v3255 = vpack.c.b16 %v2991, %v2987
        %v3256 = vpack.c.b16 %v2992, %v2988
        %v3257 = vpack.c.b16 %v2993, %v2989
        %v3258 = vpack.c.b16 %v2994, %v2990
        %v3259 = vpack.c.b16 %v2999, %v2995
        %v3260 = vpack.c.b16 %v3000, %v2996
        %v3261 = vpack.c.b16 %v3001, %v2997
        %v3262 = vpack.c.b16 %v3002, %v2998
        %v3263 = vpack.c.b16 %v3007, %v3003
        %v3264 = vpack.c.b16 %v3008, %v3004
        %v3265 = vpack.c.b16 %v3009, %v3005
        %v3266 = vpack.c.b16 %v3010, %v3006
        %v3267 = vpack.c.b16 %v3015, %v3011
        %v3268 = vpack.c.b16 %v3016, %v3012
        %v3269 = vpack.c.b16 %v3017, %v3013
        %v3270 = vpack.c.b16 %v3018, %v3014
        %v3271 = vpack.c.b16 %v3023, %v3019
        %v3272 = vpack.c.b16 %v3024, %v3020
        %v3273 = vpack.c.b16 %v3025, %v3021
        %v3274 = vpack.c.b16 %v3026, %v3022
        %v3275 = vpack.c.b16 %v3031, %v3027
        %v3276 = vpack.c.b16 %v3032, %v3028
        %v3277 = vpack.c.b16 %v3033, %v3029
        %v3278 = vpack.c.b16 %v3034, %v3030
        %v3279 = vpack.c.b16 %v3039, %v3035
        %v3280 = vpack.c.b16 %v3040, %v3036
        %v3281 = vpack.c.b16 %v3041, %v3037
        %v3282 = vpack.c.b16 %v3042, %v3038
        %v3283 = vpack.c.b16 %v3047, %v3043
        %v3284 = vpack.c.b16 %v3048, %v3044
        %v3285 = vpack.c.b16 %v3049, %v3045
        %v3286 = vpack.c.b16 %v3050, %v3046
        %v3287 = vpack.c.b16 %v3055, %v3051
        %v3288 = vpack.c.b16 %v3056, %v3052
        %v3289 = vpack.c.b16 %v3057, %v3053
        %v3290 = vpack.c.b16 %v3058, %v3054
        %v3291 = vpack.c.b16 %v3063, %v3059
        %v3292 = vpack.c.b16 %v3064, %v3060
        %v3293 = vpack.c.b16 %v3065, %v3061
        %v3294 = vpack.c.b16 %v3066, %v3062
        %v3295 = vpack.c.b16 %v3071, %v3067
        %v3296 = vpack.c.b16 %v3072, %v3068
        %v3297 = vpack.c.b16 %v3073, %v3069
        %v3298 = vpack.c.b16 %v3074, %v3070
        %v3299 = vpack.c.b16 %v3079, %v3075
        %v3300 = vpack.c.b16 %v3080, %v3076
        %v3301 = vpack.c.b16 %v3081, %v3077
        %v3302 = vpack.c.b16 %v3082, %v3078
        %v3303 = vpack.c.b16 %v3087, %v3083
        %v3304 = vpack.c.b16 %v3088, %v3084
        %v3305 = vpack.c.b16 %v3089, %v3085
        %v3306 = vpack.c.b16 %v3090, %v3086
        %v3307 = vpack.c.b16 %v3095, %v3091
        %v3308 = vpack.c.b16 %v3096, %v3092
        %v3309 = vpack.c.b16 %v3097, %v3093
        %v3310 = vpack.c.b16 %v3098, %v3094
        %v3311 = vpack.c.b16 %v3103, %v3099
        %v3312 = vpack.c.b16 %v3104, %v3100
        %v3313 = vpack.c.b16 %v3105, %v3101
        %v3314 = vpack.c.b16 %v3106, %v3102
        %v3315 = vpack.c.b16 %v3111, %v3107
        %v3316 = vpack.c.b16 %v3112, %v3108
        %v3317 = vpack.c.b16 %v3113, %v3109
        %v3318 = vpack.c.b16 %v3114, %v3110
        %v3319 = vpack.c.b16 %v3119, %v3115
        %v3320 = vpack.c.b16 %v3120, %v3116
        %v3321 = vpack.c.b16 %v3121, %v3117
        %v3322 = vpack.c.b16 %v3122, %v3118
        %v3323 = vpack.c.b16 %v3127, %v3123
        %v3324 = vpack.c.b16 %v3128, %v3124
        %v3325 = vpack.c.b16 %v3129, %v3125
        %v3326 = vpack.c.b16 %v3130, %v3126
        %v3327 = vpack.c.b16 %v3135, %v3131
        %v3328 = vpack.c.b16 %v3136, %v3132
        %v3329 = vpack.c.b16 %v3137, %v3133
        %v3330 = vpack.c.b16 %v3138, %v3134
        %v3331 = vpack.c.b16 %v3143, %v3139
        %v3332 = vpack.c.b16 %v3144, %v3140
        %v3333 = vpack.c.b16 %v3145, %v3141
        %v3334 = vpack.c.b16 %v3146, %v3142
        %v3335 = vpack.c.b16 %v3151, %v3147
        %v3336 = vpack.c.b16 %v3152, %v3148
        %v3337 = vpack.c.b16 %v3153, %v3149
        %v3338 = vpack.c.b16 %v3154, %v3150
        %v3339 = vpack.c.b16 %v3159, %v3155
        %v3340 = vpack.c.b16 %v3160, %v3156
        %v3341 = vpack.c.b16 %v3161, %v3157
        %v3342 = vpack.c.b16 %v3162, %v3158
        %v3343 = vpack.c.b16 %v3167, %v3163
        %v3344 = vpack.c.b16 %v3168, %v3164
        %v3345 = vpack.c.b16 %v3169, %v3165
        %v3346 = vpack.c.b16 %v3170, %v3166
        %v3347 = vpack.c.b16 %v3175, %v3171
        %v3348 = vpack.c.b16 %v3176, %v3172
        %v3349 = vpack.c.b16 %v3177, %v3173
        %v3350 = vpack.c.b16 %v3178, %v3174
        %v3351 = vpack.c.b16 %v3183, %v3179
        %v3352 = vpack.c.b16 %v3184, %v3180
        %v3353 = vpack.c.b16 %v3185, %v3181
        %v3354 = vpack.c.b16 %v3186, %v3182
        %v3355 = vpack.c.b16 %v3191, %v3187
        %v3356 = vpack.c.b16 %v3192, %v3188
        %v3357 = vpack.c.b16 %v3193, %v3189
        %v3358 = vpack.c.b16 %v3194, %v3190
        %v3359 = vpack.c.b16 %v3199, %v3195
        %v3360 = vpack.c.b16 %v3200, %v3196
        %v3361 = vpack.c.b16 %v3201, %v3197
        %v3362 = vpack.c.b16 %v3202, %v3198
        %3523 = vmatprep.subr.bf16.mxu0 %v3204
        %3524 = vmatpush1.bf16.msra.mxu0 %v3203
        %3525 = vmatprep.subr.bf16.mxu0 %v3208
        %3526 = vmatpush1.bf16.msra.mxu0 %v3207
        %3527 = vmatprep.subr.bf16.mxu0 %v3212
        %3528 = vmatpush1.bf16.msra.mxu0 %v3211
        %3529 = vmatprep.subr.bf16.mxu0 %v3216
        %3530 = vmatpush1.bf16.msra.mxu0 %v3215
        %3531 = vmatprep.subr.bf16.mxu0 %v3220
        %3532 = vmatpush1.bf16.msra.mxu0 %v3219
        %3533 = vmatprep.subr.bf16.mxu0 %v3224
        %3534 = vmatpush1.bf16.msra.mxu0 %v3223
        %3535 = vmatprep.subr.bf16.mxu0 %v3228
        %3536 = vmatpush1.bf16.msra.mxu0 %v3227
        %3537 = vmatprep.subr.bf16.mxu0 %v3232
        %3538 = vmatpush1.bf16.msra.mxu0 %v3231
        %3539 = vmatprep.subr.bf16.mxu0 %v3236
        %3540 = vmatpush1.bf16.msra.mxu0 %v3235
        %3541 = vmatprep.subr.bf16.mxu0 %v3240
        %3542 = vmatpush1.bf16.msra.mxu0 %v3239
        %3543 = vmatprep.subr.bf16.mxu0 %v3244
        %3544 = vmatpush1.bf16.msra.mxu0 %v3243
        %3545 = vmatprep.subr.bf16.mxu0 %v3248
        %3546 = vmatpush1.bf16.msra.mxu0 %v3247
        %3547 = vmatprep.subr.bf16.mxu0 %v3252
        %3548 = vmatpush1.bf16.msra.mxu0 %v3251
        %3549 = vmatprep.subr.bf16.mxu0 %v3256
        %3550 = vmatpush1.bf16.msra.mxu0 %v3255
        %3551 = vmatprep.subr.bf16.mxu0 %v3260
        %3552 = vmatpush1.bf16.msra.mxu0 %v3259
        %3553 = vmatprep.subr.bf16.mxu0 %v3264
        %3554 = vmatpush1.bf16.msra.mxu0 %v3263
        %3555 = vmatprep.mubr.bf16.mxu0 %v1255
        %3556 = vmatmul.mubr.bf16.gmra.mrb[0].mxu0 %v1254
        %v3557 = vpop.f32.mrb[0].mxu0
        %v3558 = vadd.f32 %v2586, %v3557
        %v3559 = vpop.f32.mrb[0].mxu0
        %v3560 = vadd.f32 %v2588, %v3559
        %v3561 = vpop.f32.mrb[0].mxu0
        %v3562 = vadd.f32 %v2590, %v3561
        %v3563 = vpop.f32.mrb[0].mxu0
        %v3564 = vadd.f32 %v2592, %v3563
        %3565 = vdwg.mxu0
        %3566 = vmatprep.subr.bf16.mxu0 %v3268
        %3567 = vmatpush1.bf16.msra.mxu0 %v3267
        %3568 = vmatprep.subr.bf16.mxu0 %v3272
        %3569 = vmatpush1.bf16.msra.mxu0 %v3271
        %3570 = vmatprep.subr.bf16.mxu0 %v3276
        %3571 = vmatpush1.bf16.msra.mxu0 %v3275
        %3572 = vmatprep.subr.bf16.mxu0 %v3280
        %3573 = vmatpush1.bf16.msra.mxu0 %v3279
        %3574 = vmatprep.subr.bf16.mxu0 %v3284
        %3575 = vmatpush1.bf16.msra.mxu0 %v3283
        %3576 = vmatprep.subr.bf16.mxu0 %v3288
        %3577 = vmatpush1.bf16.msra.mxu0 %v3287
        %3578 = vmatprep.subr.bf16.mxu0 %v3292
        %3579 = vmatpush1.bf16.msra.mxu0 %v3291
        %3580 = vmatprep.subr.bf16.mxu0 %v3296
        %3581 = vmatpush1.bf16.msra.mxu0 %v3295
        %3582 = vmatprep.subr.bf16.mxu0 %v3300
        %3583 = vmatpush1.bf16.msra.mxu0 %v3299
        %3584 = vmatprep.subr.bf16.mxu0 %v3304
        %3585 = vmatpush1.bf16.msra.mxu0 %v3303
        %3586 = vmatprep.subr.bf16.mxu0 %v3308
        %3587 = vmatpush1.bf16.msra.mxu0 %v3307
        %3588 = vmatprep.subr.bf16.mxu0 %v3312
        %3589 = vmatpush1.bf16.msra.mxu0 %v3311
        %3590 = vmatprep.subr.bf16.mxu0 %v3316
        %3591 = vmatpush1.bf16.msra.mxu0 %v3315
        %3592 = vmatprep.subr.bf16.mxu0 %v3320
        %3593 = vmatpush1.bf16.msra.mxu0 %v3319
        %3594 = vmatprep.subr.bf16.mxu0 %v3324
        %3595 = vmatpush1.bf16.msra.mxu0 %v3323
        %3596 = vmatprep.subr.bf16.mxu0 %v3328
        %3597 = vmatpush1.bf16.msra.mxu0 %v3327
        %3598 = vmatprep.mubr.bf16.mxu0 %v1257
        %3599 = vmatmul.mubr.bf16.gmra.mrb[0].mxu0 %v1256
        %v3600 = vpop.f32.mrb[0].mxu0
        %v3601 = vadd.f32 %v3558, %v3600
        %v3602 = vpop.f32.mrb[0].mxu0
        %v3603 = vadd.f32 %v3560, %v3602
        %v3604 = vpop.f32.mrb[0].mxu0
        %v3605 = vadd.f32 %v3562, %v3604
        %v3606 = vpop.f32.mrb[0].mxu0
        %v3607 = vadd.f32 %v3564, %v3606
        %3608 = vdwg.mxu0
        %3609 = vmatprep.subr.bf16.mxu0 %v3332
        %3610 = vmatpush1.bf16.msra.mxu0 %v3331
        %3611 = vmatprep.subr.bf16.mxu0 %v3336
        %3612 = vmatpush1.bf16.msra.mxu0 %v3335
        %3613 = vmatprep.subr.bf16.mxu0 %v3340
        %3614 = vmatpush1.bf16.msra.mxu0 %v3339
        %3615 = vmatprep.subr.bf16.mxu0 %v3344
        %3616 = vmatpush1.bf16.msra.mxu0 %v3343
        %3617 = vmatprep.subr.bf16.mxu0 %v3348
        %3618 = vmatpush1.bf16.msra.mxu0 %v3347
        %3619 = vmatprep.subr.bf16.mxu0 %v3352
        %3620 = vmatpush1.bf16.msra.mxu0 %v3351
        %3621 = vmatprep.subr.bf16.mxu0 %v3356
        %3622 = vmatpush1.bf16.msra.mxu0 %v3355
        %3623 = vmatprep.subr.bf16.mxu0 %v3360
        %3624 = vmatpush1.bf16.msra.mxu0 %v3359
        %3625 = vmatprep.subr.bf16.mxu0 0
        %3626 = vmatpush1.bf16.msra.mxu0 0
        %3627 = vmatprep.subr.bf16.mxu0 0
        %3628 = vmatpush1.bf16.msra.mxu0 0
        %3629 = vmatprep.subr.bf16.mxu0 0
        %3630 = vmatpush1.bf16.msra.mxu0 0
        %3631 = vmatprep.subr.bf16.mxu0 0
        %3632 = vmatpush1.bf16.msra.mxu0 0
        %3633 = vmatprep.subr.bf16.mxu0 0
        %3634 = vmatpush1.bf16.msra.mxu0 0
        %3635 = vmatprep.subr.bf16.mxu0 0
        %3636 = vmatpush1.bf16.msra.mxu0 0
        %3637 = vmatprep.subr.bf16.mxu0 0
        %3638 = vmatpush1.bf16.msra.mxu0 0
        %3639 = vmatprep.subr.bf16.mxu0 0
        %3640 = vmatpush1.bf16.msra.mxu0 0
        %3641 = vmatprep.mubr.bf16.mxu0 0
        %3642 = vmatmul.mubr.bf16.gmra.mrb[0].mxu0 %v1258
        %v3643 = vpop.f32.mrb[0].mxu0
        %v3644 = vadd.f32 %v3601, %v3643
        %v3645 = vpop.f32.mrb[0].mxu0
        %v3646 = vadd.f32 %v3603, %v3645
        %v3647 = vpop.f32.mrb[0].mxu0
        %v3648 = vadd.f32 %v3605, %v3647
        %v3649 = vpop.f32.mrb[0].mxu0
        %v3650 = vadd.f32 %v3607, %v3649
        %3651 = vdwg.mxu0
        %3652 = vmatprep.subr.bf16.mxu0 %v3206
        %3653 = vmatpush1.bf16.msra.mxu0 %v3205
        %3654 = vmatprep.subr.bf16.mxu0 %v3210
        %3655 = vmatpush1.bf16.msra.mxu0 %v3209
        %3656 = vmatprep.subr.bf16.mxu0 %v3214
        %3657 = vmatpush1.bf16.msra.mxu0 %v3213
        %3658 = vmatprep.subr.bf16.mxu0 %v3218
        %3659 = vmatpush1.bf16.msra.mxu0 %v3217
        %3660 = vmatprep.subr.bf16.mxu0 %v3222
        %3661 = vmatpush1.bf16.msra.mxu0 %v3221
        %3662 = vmatprep.subr.bf16.mxu0 %v3226
        %3663 = vmatpush1.bf16.msra.mxu0 %v3225
        %3664 = vmatprep.subr.bf16.mxu0 %v3230
        %3665 = vmatpush1.bf16.msra.mxu0 %v3229
        %3666 = vmatprep.subr.bf16.mxu0 %v3234
        %3667 = vmatpush1.bf16.msra.mxu0 %v3233
        %3668 = vmatprep.subr.bf16.mxu0 %v3238
        %3669 = vmatpush1.bf16.msra.mxu0 %v3237
        %3670 = vmatprep.subr.bf16.mxu0 %v3242
        %3671 = vmatpush1.bf16.msra.mxu0 %v3241
        %3672 = vmatprep.subr.bf16.mxu0 %v3246
        %3673 = vmatpush1.bf16.msra.mxu0 %v3245
        %3674 = vmatprep.subr.bf16.mxu0 %v3250
        %3675 = vmatpush1.bf16.msra.mxu0 %v3249
        %3676 = vmatprep.subr.bf16.mxu0 %v3254
        %3677 = vmatpush1.bf16.msra.mxu0 %v3253
        %3678 = vmatprep.subr.bf16.mxu0 %v3258
        %3679 = vmatpush1.bf16.msra.mxu0 %v3257
        %3680 = vmatprep.subr.bf16.mxu0 %v3262
        %3681 = vmatpush1.bf16.msra.mxu0 %v3261
        %3682 = vmatprep.subr.bf16.mxu0 %v3266
        %3683 = vmatpush1.bf16.msra.mxu0 %v3265
        %3684 = vmatprep.mubr.bf16.mxu0 %v1255
        %3685 = vmatmul.mubr.bf16.gmra.mrb[0].mxu0 %v1254
        %v3686 = vpop.f32.mrb[0].mxu0
        %v3687 = vadd.f32 %v2715, %v3686
        %v3688 = vpop.f32.mrb[0].mxu0
        %v3689 = vadd.f32 %v2717, %v3688
        %v3690 = vpop.f32.mrb[0].mxu0
        %v3691 = vadd.f32 %v2719, %v3690
        %v3692 = vpop.f32.mrb[0].mxu0
        %v3693 = vadd.f32 %v2721, %v3692
        %3694 = vdwg.mxu0
        %3695 = vmatprep.subr.bf16.mxu0 %v3270
        %3696 = vmatpush1.bf16.msra.mxu0 %v3269
        %3697 = vmatprep.subr.bf16.mxu0 %v3274
        %3698 = vmatpush1.bf16.msra.mxu0 %v3273
        %3699 = vmatprep.subr.bf16.mxu0 %v3278
        %3700 = vmatpush1.bf16.msra.mxu0 %v3277
        %3701 = vmatprep.subr.bf16.mxu0 %v3282
        %3702 = vmatpush1.bf16.msra.mxu0 %v3281
        %3703 = vmatprep.subr.bf16.mxu0 %v3286
        %3704 = vmatpush1.bf16.msra.mxu0 %v3285
        %3705 = vmatprep.subr.bf16.mxu0 %v3290
        %3706 = vmatpush1.bf16.msra.mxu0 %v3289
        %3707 = vmatprep.subr.bf16.mxu0 %v3294
        %3708 = vmatpush1.bf16.msra.mxu0 %v3293
        %3709 = vmatprep.subr.bf16.mxu0 %v3298
        %3710 = vmatpush1.bf16.msra.mxu0 %v3297
        %3711 = vmatprep.subr.bf16.mxu0 %v3302
        %3712 = vmatpush1.bf16.msra.mxu0 %v3301
        %3713 = vmatprep.subr.bf16.mxu0 %v3306
        %3714 = vmatpush1.bf16.msra.mxu0 %v3305
        %3715 = vmatprep.subr.bf16.mxu0 %v3310
        %3716 = vmatpush1.bf16.msra.mxu0 %v3309
        %3717 = vmatprep.subr.bf16.mxu0 %v3314
        %3718 = vmatpush1.bf16.msra.mxu0 %v3313
        %3719 = vmatprep.subr.bf16.mxu0 %v3318
        %3720 = vmatpush1.bf16.msra.mxu0 %v3317
        %3721 = vmatprep.subr.bf16.mxu0 %v3322
        %3722 = vmatpush1.bf16.msra.mxu0 %v3321
        %3723 = vmatprep.subr.bf16.mxu0 %v3326
        %3724 = vmatpush1.bf16.msra.mxu0 %v3325
        %3725 = vmatprep.subr.bf16.mxu0 %v3330
        %3726 = vmatpush1.bf16.msra.mxu0 %v3329
        %3727 = vmatprep.mubr.bf16.mxu0 %v1257
        %3728 = vmatmul.mubr.bf16.gmra.mrb[0].mxu0 %v1256
        %v3729 = vpop.f32.mrb[0].mxu0
        %v3730 = vadd.f32 %v3687, %v3729
        %v3731 = vpop.f32.mrb[0].mxu0
        %v3732 = vadd.f32 %v3689, %v3731
        %v3733 = vpop.f32.mrb[0].mxu0
        %v3734 = vadd.f32 %v3691, %v3733
        %v3735 = vpop.f32.mrb[0].mxu0
        %v3736 = vadd.f32 %v3693, %v3735
        %3737 = vdwg.mxu0
        %3738 = vmatprep.subr.bf16.mxu0 %v3334
        %3739 = vmatpush1.bf16.msra.mxu0 %v3333
        %3740 = vmatprep.subr.bf16.mxu0 %v3338
        %3741 = vmatpush1.bf16.msra.mxu0 %v3337
        %3742 = vmatprep.subr.bf16.mxu0 %v3342
        %3743 = vmatpush1.bf16.msra.mxu0 %v3341
        %3744 = vmatprep.subr.bf16.mxu0 %v3346
        %3745 = vmatpush1.bf16.msra.mxu0 %v3345
        %3746 = vmatprep.subr.bf16.mxu0 %v3350
        %3747 = vmatpush1.bf16.msra.mxu0 %v3349
        %3748 = vmatprep.subr.bf16.mxu0 %v3354
        %3749 = vmatpush1.bf16.msra.mxu0 %v3353
        %3750 = vmatprep.subr.bf16.mxu0 %v3358
        %3751 = vmatpush1.bf16.msra.mxu0 %v3357
        %3752 = vmatprep.subr.bf16.mxu0 %v3362
        %3753 = vmatpush1.bf16.msra.mxu0 %v3361
        %3754 = vmatprep.subr.bf16.mxu0 0
        %3755 = vmatpush1.bf16.msra.mxu0 0
        %3756 = vmatprep.subr.bf16.mxu0 0
        %3757 = vmatpush1.bf16.msra.mxu0 0
        %3758 = vmatprep.subr.bf16.mxu0 0
        %3759 = vmatpush1.bf16.msra.mxu0 0
        %3760 = vmatprep.subr.bf16.mxu0 0
        %3761 = vmatpush1.bf16.msra.mxu0 0
        %3762 = vmatprep.subr.bf16.mxu0 0
        %3763 = vmatpush1.bf16.msra.mxu0 0
        %3764 = vmatprep.subr.bf16.mxu0 0
        %3765 = vmatpush1.bf16.msra.mxu0 0
        %3766 = vmatprep.subr.bf16.mxu0 0
        %3767 = vmatpush1.bf16.msra.mxu0 0
        %3768 = vmatprep.subr.bf16.mxu0 0
        %3769 = vmatpush1.bf16.msra.mxu0 0
        %3770 = vmatprep.mubr.bf16.mxu0 0
        %3771 = vmatmul.mubr.bf16.gmra.mrb[0].mxu0 %v1258
        %v3772 = vpop.f32.mrb[0].mxu0
        %v3773 = vadd.f32 %v3730, %v3772
        %v3774 = vpop.f32.mrb[0].mxu0
        %v3775 = vadd.f32 %v3732, %v3774
        %v3776 = vpop.f32.mrb[0].mxu0
        %v3777 = vadd.f32 %v3734, %v3776
        %v3778 = vpop.f32.mrb[0].mxu0
        %v3779 = vadd.f32 %v3736, %v3778
        %3780 = vdwg.mxu0
        %v3781 = vld [vmem:[#allocation2] sm:$0xfc]
        %v3782 = vld [vmem:[#allocation2 + $0x8] sm:$0xfc]
        %v3783 = vld [vmem:[#allocation2 + $0x10] sm:$0xfc]
        %v3784 = vld [vmem:[#allocation2 + $0x18] sm:$0xfc]
        %v3785 = vld [vmem:[#allocation2 + $0x20] sm:$0xfc]
        %v3786 = vld [vmem:[#allocation2 + $0x50] sm:$0x3]
        %v3787 = vld [vmem:[#allocation2 + $0x58] sm:$0x3]
        %v3788 = vld [vmem:[#allocation2 + $0x60] sm:$0x3]
        %v3789 = vld [vmem:[#allocation2 + $0x68] sm:$0x3]
        %v3790 = vld [vmem:[#allocation2 + $0x70] sm:$0x3]
        %v3791 = vpack.c.bf16 %v1249, %v3781
        %v3792 = vpack.c.bf16 %v1250, %v3782
        %v3793 = vpack.c.bf16 %v1251, %v3783
        %v3794 = vpack.c.bf16 %v1252, %v3784
        %v3795 = vpack.c.bf16 %v1253, %v3785
        %v3796 = vpack.c.bf16 %v3786, %v3786
        %v3797 = vpack.c.bf16 %v3787, %v3787
        %v3798 = vpack.c.bf16 %v3788, %v3788
        %v3799 = vpack.c.bf16 %v3789, %v3789
        %v3800 = vpack.c.bf16 %v3790, %v3790
        %s3801 = scalar_lea.vmem [#allocation7], 2560
        %v3802 = vld [vmem:[%s3801] sm:$0xff]
        %v3803 = vld [vmem:[%s3801 + $0x8] sm:$0xff]
        %v3804 = vld [vmem:[%s3801 + $0x10] sm:$0xff]
        %v3805 = vld [vmem:[%s3801 + $0x18] sm:$0xff]
        %v3806 = vld [vmem:[%s3801 + $0x20] sm:$0xff]
        %v3807 = vld [vmem:[%s3801 + $0x28] sm:$0xff]
        %v3808 = vld [vmem:[%s3801 + $0x30] sm:$0xff]
        %v3809 = vld [vmem:[%s3801 + $0x38] sm:$0xff]
        %v3810 = vld [vmem:[%s3801 + $0x40] sm:$0xff]
        %v3811 = vld [vmem:[%s3801 + $0x48] sm:$0xff]
        %v3812 = vld [vmem:[%s3801 + $0x50] sm:$0xff]
        %v3813 = vld [vmem:[%s3801 + $0x58] sm:$0xff]
        %v3814 = vld [vmem:[%s3801 + $0x60] sm:$0xff]
        %v3815 = vld [vmem:[%s3801 + $0x68] sm:$0xff]
        %v3816 = vld [vmem:[%s3801 + $0x70] sm:$0xff]
        %v3817 = vld [vmem:[%s3801 + $0x78] sm:$0xff]
        %v3818 = vld [vmem:[%s3801 + $0x80] sm:$0xff]
        %v3819 = vld [vmem:[%s3801 + $0x88] sm:$0xff]
        %v3820 = vld [vmem:[%s3801 + $0x90] sm:$0xff]
        %v3821 = vld [vmem:[%s3801 + $0x98] sm:$0xff]
        %v3822 = vld [vmem:[%s3801 + $0xa0] sm:$0xff]
        %v3823 = vld [vmem:[%s3801 + $0xa8] sm:$0xff]
        %v3824 = vld [vmem:[%s3801 + $0xb0] sm:$0xff]
        %v3825 = vld [vmem:[%s3801 + $0xb8] sm:$0xff]
        %v3826 = vld [vmem:[%s3801 + $0xc0] sm:$0xff]
        %v3827 = vld [vmem:[%s3801 + $0xc8] sm:$0xff]
        %v3828 = vld [vmem:[%s3801 + $0xd0] sm:$0xff]
        %v3829 = vld [vmem:[%s3801 + $0xd8] sm:$0xff]
        %v3830 = vld [vmem:[%s3801 + $0xe0] sm:$0xff]
        %v3831 = vld [vmem:[%s3801 + $0xe8] sm:$0xff]
        %v3832 = vld [vmem:[%s3801 + $0xf0] sm:$0xff]
        %v3833 = vld [vmem:[%s3801 + $0xf8] sm:$0xff]
        %v3834 = vld [vmem:[%s3801 + $0x100] sm:$0xff]
        %v3835 = vld [vmem:[%s3801 + $0x108] sm:$0xff]
        %v3836 = vld [vmem:[%s3801 + $0x110] sm:$0xff]
        %v3837 = vld [vmem:[%s3801 + $0x118] sm:$0xff]
        %v3838 = vld [vmem:[%s3801 + $0x120] sm:$0xff]
        %v3839 = vld [vmem:[%s3801 + $0x128] sm:$0xff]
        %v3840 = vld [vmem:[%s3801 + $0x130] sm:$0xff]
        %v3841 = vld [vmem:[%s3801 + $0x138] sm:$0xff]
        %v3842 = vld [vmem:[%s3801 + $0x140] sm:$0xff]
        %v3843 = vld [vmem:[%s3801 + $0x148] sm:$0xff]
        %v3844 = vld [vmem:[%s3801 + $0x150] sm:$0xff]
        %v3845 = vld [vmem:[%s3801 + $0x158] sm:$0xff]
        %v3846 = vld [vmem:[%s3801 + $0x160] sm:$0xff]
        %v3847 = vld [vmem:[%s3801 + $0x168] sm:$0xff]
        %v3848 = vld [vmem:[%s3801 + $0x170] sm:$0xff]
        %v3849 = vld [vmem:[%s3801 + $0x178] sm:$0xff]
        %v3850 = vld [vmem:[%s3801 + $0x180] sm:$0xff]
        %v3851 = vld [vmem:[%s3801 + $0x188] sm:$0xff]
        %v3852 = vld [vmem:[%s3801 + $0x190] sm:$0xff]
        %v3853 = vld [vmem:[%s3801 + $0x198] sm:$0xff]
        %v3854 = vld [vmem:[%s3801 + $0x1a0] sm:$0xff]
        %v3855 = vld [vmem:[%s3801 + $0x1a8] sm:$0xff]
        %v3856 = vld [vmem:[%s3801 + $0x1b0] sm:$0xff]
        %v3857 = vld [vmem:[%s3801 + $0x1b8] sm:$0xff]
        %v3858 = vld [vmem:[%s3801 + $0x1c0] sm:$0xff]
        %v3859 = vld [vmem:[%s3801 + $0x1c8] sm:$0xff]
        %v3860 = vld [vmem:[%s3801 + $0x1d0] sm:$0xff]
        %v3861 = vld [vmem:[%s3801 + $0x1d8] sm:$0xff]
        %v3862 = vld [vmem:[%s3801 + $0x1e0] sm:$0xff]
        %v3863 = vld [vmem:[%s3801 + $0x1e8] sm:$0xff]
        %v3864 = vld [vmem:[%s3801 + $0x1f0] sm:$0xff]
        %v3865 = vld [vmem:[%s3801 + $0x1f8] sm:$0xff]
        %v3866 = vld [vmem:[%s3801 + $0x200] sm:$0xff]
        %v3867 = vld [vmem:[%s3801 + $0x208] sm:$0xff]
        %v3868 = vld [vmem:[%s3801 + $0x210] sm:$0xff]
        %v3869 = vld [vmem:[%s3801 + $0x218] sm:$0xff]
        %v3870 = vld [vmem:[%s3801 + $0x220] sm:$0xff]
        %v3871 = vld [vmem:[%s3801 + $0x228] sm:$0xff]
        %v3872 = vld [vmem:[%s3801 + $0x230] sm:$0xff]
        %v3873 = vld [vmem:[%s3801 + $0x238] sm:$0xff]
        %v3874 = vld [vmem:[%s3801 + $0x240] sm:$0xff]
        %v3875 = vld [vmem:[%s3801 + $0x248] sm:$0xff]
        %v3876 = vld [vmem:[%s3801 + $0x250] sm:$0xff]
        %v3877 = vld [vmem:[%s3801 + $0x258] sm:$0xff]
        %v3878 = vld [vmem:[%s3801 + $0x260] sm:$0xff]
        %v3879 = vld [vmem:[%s3801 + $0x268] sm:$0xff]
        %v3880 = vld [vmem:[%s3801 + $0x270] sm:$0xff]
        %v3881 = vld [vmem:[%s3801 + $0x278] sm:$0xff]
        %v3882 = vld [vmem:[%s3801 + $0x280] sm:$0xff]
        %v3883 = vld [vmem:[%s3801 + $0x288] sm:$0xff]
        %v3884 = vld [vmem:[%s3801 + $0x290] sm:$0xff]
        %v3885 = vld [vmem:[%s3801 + $0x298] sm:$0xff]
        %v3886 = vld [vmem:[%s3801 + $0x2a0] sm:$0xff]
        %v3887 = vld [vmem:[%s3801 + $0x2a8] sm:$0xff]
        %v3888 = vld [vmem:[%s3801 + $0x2b0] sm:$0xff]
        %v3889 = vld [vmem:[%s3801 + $0x2b8] sm:$0xff]
        %v3890 = vld [vmem:[%s3801 + $0x2c0] sm:$0xff]
        %v3891 = vld [vmem:[%s3801 + $0x2c8] sm:$0xff]
        %v3892 = vld [vmem:[%s3801 + $0x2d0] sm:$0xff]
        %v3893 = vld [vmem:[%s3801 + $0x2d8] sm:$0xff]
        %v3894 = vld [vmem:[%s3801 + $0x2e0] sm:$0xff]
        %v3895 = vld [vmem:[%s3801 + $0x2e8] sm:$0xff]
        %v3896 = vld [vmem:[%s3801 + $0x2f0] sm:$0xff]
        %v3897 = vld [vmem:[%s3801 + $0x2f8] sm:$0xff]
        %v3898 = vld [vmem:[%s3801 + $0x300] sm:$0xff]
        %v3899 = vld [vmem:[%s3801 + $0x308] sm:$0xff]
        %v3900 = vld [vmem:[%s3801 + $0x310] sm:$0xff]
        %v3901 = vld [vmem:[%s3801 + $0x318] sm:$0xff]
        %v3902 = vld [vmem:[%s3801 + $0x320] sm:$0xff]
        %v3903 = vld [vmem:[%s3801 + $0x328] sm:$0xff]
        %v3904 = vld [vmem:[%s3801 + $0x330] sm:$0xff]
        %v3905 = vld [vmem:[%s3801 + $0x338] sm:$0xff]
        %v3906 = vld [vmem:[%s3801 + $0x340] sm:$0xff]
        %v3907 = vld [vmem:[%s3801 + $0x348] sm:$0xff]
        %v3908 = vld [vmem:[%s3801 + $0x350] sm:$0xff]
        %v3909 = vld [vmem:[%s3801 + $0x358] sm:$0xff]
        %v3910 = vld [vmem:[%s3801 + $0x360] sm:$0xff]
        %v3911 = vld [vmem:[%s3801 + $0x368] sm:$0xff]
        %v3912 = vld [vmem:[%s3801 + $0x370] sm:$0xff]
        %v3913 = vld [vmem:[%s3801 + $0x378] sm:$0xff]
        %v3914 = vld [vmem:[%s3801 + $0x380] sm:$0xff]
        %v3915 = vld [vmem:[%s3801 + $0x388] sm:$0xff]
        %v3916 = vld [vmem:[%s3801 + $0x390] sm:$0xff]
        %v3917 = vld [vmem:[%s3801 + $0x398] sm:$0xff]
        %v3918 = vld [vmem:[%s3801 + $0x3a0] sm:$0xff]
        %v3919 = vld [vmem:[%s3801 + $0x3a8] sm:$0xff]
        %v3920 = vld [vmem:[%s3801 + $0x3b0] sm:$0xff]
        %v3921 = vld [vmem:[%s3801 + $0x3b8] sm:$0xff]
        %v3922 = vld [vmem:[%s3801 + $0x3c0] sm:$0xff]
        %v3923 = vld [vmem:[%s3801 + $0x3c8] sm:$0xff]
        %v3924 = vld [vmem:[%s3801 + $0x3d0] sm:$0xff]
        %v3925 = vld [vmem:[%s3801 + $0x3d8] sm:$0xff]
        %v3926 = vld [vmem:[%s3801 + $0x3e0] sm:$0xff]
        %v3927 = vld [vmem:[%s3801 + $0x3e8] sm:$0xff]
        %v3928 = vld [vmem:[%s3801 + $0x3f0] sm:$0xff]
        %v3929 = vld [vmem:[%s3801 + $0x3f8] sm:$0xff]
        %v3930 = vld [vmem:[%s3801 + $0x400] sm:$0xff]
        %v3931 = vld [vmem:[%s3801 + $0x408] sm:$0xff]
        %v3932 = vld [vmem:[%s3801 + $0x410] sm:$0xff]
        %v3933 = vld [vmem:[%s3801 + $0x418] sm:$0xff]
        %v3934 = vld [vmem:[%s3801 + $0x420] sm:$0xff]
        %v3935 = vld [vmem:[%s3801 + $0x428] sm:$0xff]
        %v3936 = vld [vmem:[%s3801 + $0x430] sm:$0xff]
        %v3937 = vld [vmem:[%s3801 + $0x438] sm:$0xff]
        %v3938 = vld [vmem:[%s3801 + $0x440] sm:$0xff]
        %v3939 = vld [vmem:[%s3801 + $0x448] sm:$0xff]
        %v3940 = vld [vmem:[%s3801 + $0x450] sm:$0xff]
        %v3941 = vld [vmem:[%s3801 + $0x458] sm:$0xff]
        %v3942 = vld [vmem:[%s3801 + $0x460] sm:$0xff]
        %v3943 = vld [vmem:[%s3801 + $0x468] sm:$0xff]
        %v3944 = vld [vmem:[%s3801 + $0x470] sm:$0xff]
        %v3945 = vld [vmem:[%s3801 + $0x478] sm:$0xff]
        %v3946 = vld [vmem:[%s3801 + $0x480] sm:$0xff]
        %v3947 = vld [vmem:[%s3801 + $0x488] sm:$0xff]
        %v3948 = vld [vmem:[%s3801 + $0x490] sm:$0xff]
        %v3949 = vld [vmem:[%s3801 + $0x498] sm:$0xff]
        %v3950 = vld [vmem:[%s3801 + $0x4a0] sm:$0xff]
        %v3951 = vld [vmem:[%s3801 + $0x4a8] sm:$0xff]
        %v3952 = vld [vmem:[%s3801 + $0x4b0] sm:$0xff]
        %v3953 = vld [vmem:[%s3801 + $0x4b8] sm:$0xff]
        %v3954 = vld [vmem:[%s3801 + $0x4c0] sm:$0xff]
        %v3955 = vld [vmem:[%s3801 + $0x4c8] sm:$0xff]
        %v3956 = vld [vmem:[%s3801 + $0x4d0] sm:$0xff]
        %v3957 = vld [vmem:[%s3801 + $0x4d8] sm:$0xff]
        %v3958 = vld [vmem:[%s3801 + $0x4e0] sm:$0xff]
        %v3959 = vld [vmem:[%s3801 + $0x4e8] sm:$0xff]
        %v3960 = vld [vmem:[%s3801 + $0x4f0] sm:$0xff]
        %v3961 = vld [vmem:[%s3801 + $0x4f8] sm:$0xff]
        %v3972 = vrot.slane %v3791, 1
        %v3973 = vrot.slane %v3796, 1
        %v3974 = vsel %vm884, %v3972, %v3973
        %v3975 = vrot.slane %v3792, 1
        %v3976 = vrot.slane %v3797, 1
        %v3977 = vsel %vm884, %v3975, %v3976
        %v3978 = vrot.slane %v3793, 1
        %v3979 = vrot.slane %v3798, 1
        %v3980 = vsel %vm884, %v3978, %v3979
        %v3981 = vrot.slane %v3794, 1
        %v3982 = vrot.slane %v3799, 1
        %v3983 = vsel %vm884, %v3981, %v3982
        %v3984 = vrot.slane %v3795, 1
        %v3985 = vrot.slane %v3800, 1
        %v3986 = vsel %vm884, %v3984, %v3985
        %v4152 = vunpack.c.l.b16 %v3802
        %v4153 = vunpack.c.h.b16 %v3802
        %v4154 = vunpack.c.l.b16 %v3803
        %v4155 = vunpack.c.h.b16 %v3803
        %v4156 = vunpack.c.l.b16 %v3804
        %v4157 = vunpack.c.h.b16 %v3804
        %v4158 = vunpack.c.l.b16 %v3805
        %v4159 = vunpack.c.h.b16 %v3805
        %v4160 = vunpack.c.l.b16 %v3806
        %v4161 = vunpack.c.h.b16 %v3806
        %v4162 = vunpack.c.l.b16 %v3807
        %v4163 = vunpack.c.h.b16 %v3807
        %v4164 = vunpack.c.l.b16 %v3808
        %v4165 = vunpack.c.h.b16 %v3808
        %v4166 = vunpack.c.l.b16 %v3809
        %v4167 = vunpack.c.h.b16 %v3809
        %v4168 = vunpack.c.l.b16 %v3810
        %v4169 = vunpack.c.h.b16 %v3810
        %v4170 = vunpack.c.l.b16 %v3811
        %v4171 = vunpack.c.h.b16 %v3811
        %v4172 = vunpack.c.l.b16 %v3812
        %v4173 = vunpack.c.h.b16 %v3812
        %v4174 = vunpack.c.l.b16 %v3813
        %v4175 = vunpack.c.h.b16 %v3813
        %v4176 = vunpack.c.l.b16 %v3814
        %v4177 = vunpack.c.h.b16 %v3814
        %v4178 = vunpack.c.l.b16 %v3815
        %v4179 = vunpack.c.h.b16 %v3815
        %v4180 = vunpack.c.l.b16 %v3816
        %v4181 = vunpack.c.h.b16 %v3816
        %v4182 = vunpack.c.l.b16 %v3817
        %v4183 = vunpack.c.h.b16 %v3817
        %v4184 = vunpack.c.l.b16 %v3818
        %v4185 = vunpack.c.h.b16 %v3818
        %v4186 = vunpack.c.l.b16 %v3819
        %v4187 = vunpack.c.h.b16 %v3819
        %v4188 = vunpack.c.l.b16 %v3820
        %v4189 = vunpack.c.h.b16 %v3820
        %v4190 = vunpack.c.l.b16 %v3821
        %v4191 = vunpack.c.h.b16 %v3821
        %v4192 = vunpack.c.l.b16 %v3822
        %v4193 = vunpack.c.h.b16 %v3822
        %v4194 = vunpack.c.l.b16 %v3823
        %v4195 = vunpack.c.h.b16 %v3823
        %v4196 = vunpack.c.l.b16 %v3824
        %v4197 = vunpack.c.h.b16 %v3824
        %v4198 = vunpack.c.l.b16 %v3825
        %v4199 = vunpack.c.h.b16 %v3825
        %v4200 = vunpack.c.l.b16 %v3826
        %v4201 = vunpack.c.h.b16 %v3826
        %v4202 = vunpack.c.l.b16 %v3827
        %v4203 = vunpack.c.h.b16 %v3827
        %v4204 = vunpack.c.l.b16 %v3828
        %v4205 = vunpack.c.h.b16 %v3828
        %v4206 = vunpack.c.l.b16 %v3829
        %v4207 = vunpack.c.h.b16 %v3829
        %v4208 = vunpack.c.l.b16 %v3830
        %v4209 = vunpack.c.h.b16 %v3830
        %v4210 = vunpack.c.l.b16 %v3831
        %v4211 = vunpack.c.h.b16 %v3831
        %v4212 = vunpack.c.l.b16 %v3832
        %v4213 = vunpack.c.h.b16 %v3832
        %v4214 = vunpack.c.l.b16 %v3833
        %v4215 = vunpack.c.h.b16 %v3833
        %v4216 = vunpack.c.l.b16 %v3834
        %v4217 = vunpack.c.h.b16 %v3834
        %v4218 = vunpack.c.l.b16 %v3835
        %v4219 = vunpack.c.h.b16 %v3835
        %v4220 = vunpack.c.l.b16 %v3836
        %v4221 = vunpack.c.h.b16 %v3836
        %v4222 = vunpack.c.l.b16 %v3837
        %v4223 = vunpack.c.h.b16 %v3837
        %v4224 = vunpack.c.l.b16 %v3838
        %v4225 = vunpack.c.h.b16 %v3838
        %v4226 = vunpack.c.l.b16 %v3839
        %v4227 = vunpack.c.h.b16 %v3839
        %v4228 = vunpack.c.l.b16 %v3840
        %v4229 = vunpack.c.h.b16 %v3840
        %v4230 = vunpack.c.l.b16 %v3841
        %v4231 = vunpack.c.h.b16 %v3841
        %v4232 = vunpack.c.l.b16 %v3842
        %v4233 = vunpack.c.h.b16 %v3842
        %v4234 = vunpack.c.l.b16 %v3843
        %v4235 = vunpack.c.h.b16 %v3843
        %v4236 = vunpack.c.l.b16 %v3844
        %v4237 = vunpack.c.h.b16 %v3844
        %v4238 = vunpack.c.l.b16 %v3845
        %v4239 = vunpack.c.h.b16 %v3845
        %v4240 = vunpack.c.l.b16 %v3846
        %v4241 = vunpack.c.h.b16 %v3846
        %v4242 = vunpack.c.l.b16 %v3847
        %v4243 = vunpack.c.h.b16 %v3847
        %v4244 = vunpack.c.l.b16 %v3848
        %v4245 = vunpack.c.h.b16 %v3848
        %v4246 = vunpack.c.l.b16 %v3849
        %v4247 = vunpack.c.h.b16 %v3849
        %v4248 = vunpack.c.l.b16 %v3850
        %v4249 = vunpack.c.h.b16 %v3850
        %v4250 = vunpack.c.l.b16 %v3851
        %v4251 = vunpack.c.h.b16 %v3851
        %v4252 = vunpack.c.l.b16 %v3852
        %v4253 = vunpack.c.h.b16 %v3852
        %v4254 = vunpack.c.l.b16 %v3853
        %v4255 = vunpack.c.h.b16 %v3853
        %v4256 = vunpack.c.l.b16 %v3854
        %v4257 = vunpack.c.h.b16 %v3854
        %v4258 = vunpack.c.l.b16 %v3855
        %v4259 = vunpack.c.h.b16 %v3855
        %v4260 = vunpack.c.l.b16 %v3856
        %v4261 = vunpack.c.h.b16 %v3856
        %v4262 = vunpack.c.l.b16 %v3857
        %v4263 = vunpack.c.h.b16 %v3857
        %v4264 = vunpack.c.l.b16 %v3858
        %v4265 = vunpack.c.h.b16 %v3858
        %v4266 = vunpack.c.l.b16 %v3859
        %v4267 = vunpack.c.h.b16 %v3859
        %v4268 = vunpack.c.l.b16 %v3860
        %v4269 = vunpack.c.h.b16 %v3860
        %v4270 = vunpack.c.l.b16 %v3861
        %v4271 = vunpack.c.h.b16 %v3861
        %v4272 = vunpack.c.l.b16 %v3862
        %v4273 = vunpack.c.h.b16 %v3862
        %v4274 = vunpack.c.l.b16 %v3863
        %v4275 = vunpack.c.h.b16 %v3863
        %v4276 = vunpack.c.l.b16 %v3864
        %v4277 = vunpack.c.h.b16 %v3864
        %v4278 = vunpack.c.l.b16 %v3865
        %v4279 = vunpack.c.h.b16 %v3865
        %v4280 = vunpack.c.l.b16 %v3866
        %v4281 = vunpack.c.h.b16 %v3866
        %v4282 = vunpack.c.l.b16 %v3867
        %v4283 = vunpack.c.h.b16 %v3867
        %v4284 = vunpack.c.l.b16 %v3868
        %v4285 = vunpack.c.h.b16 %v3868
        %v4286 = vunpack.c.l.b16 %v3869
        %v4287 = vunpack.c.h.b16 %v3869
        %v4288 = vunpack.c.l.b16 %v3870
        %v4289 = vunpack.c.h.b16 %v3870
        %v4290 = vunpack.c.l.b16 %v3871
        %v4291 = vunpack.c.h.b16 %v3871
        %v4292 = vunpack.c.l.b16 %v3872
        %v4293 = vunpack.c.h.b16 %v3872
        %v4294 = vunpack.c.l.b16 %v3873
        %v4295 = vunpack.c.h.b16 %v3873
        %v4296 = vunpack.c.l.b16 %v3874
        %v4297 = vunpack.c.h.b16 %v3874
        %v4298 = vunpack.c.l.b16 %v3875
        %v4299 = vunpack.c.h.b16 %v3875
        %v4300 = vunpack.c.l.b16 %v3876
        %v4301 = vunpack.c.h.b16 %v3876
        %v4302 = vunpack.c.l.b16 %v3877
        %v4303 = vunpack.c.h.b16 %v3877
        %v4304 = vunpack.c.l.b16 %v3878
        %v4305 = vunpack.c.h.b16 %v3878
        %v4306 = vunpack.c.l.b16 %v3879
        %v4307 = vunpack.c.h.b16 %v3879
        %v4308 = vunpack.c.l.b16 %v3880
        %v4309 = vunpack.c.h.b16 %v3880
        %v4310 = vunpack.c.l.b16 %v3881
        %v4311 = vunpack.c.h.b16 %v3881
        %v4312 = vunpack.c.l.b16 %v3882
        %v4313 = vunpack.c.h.b16 %v3882
        %v4314 = vunpack.c.l.b16 %v3883
        %v4315 = vunpack.c.h.b16 %v3883
        %v4316 = vunpack.c.l.b16 %v3884
        %v4317 = vunpack.c.h.b16 %v3884
        %v4318 = vunpack.c.l.b16 %v3885
        %v4319 = vunpack.c.h.b16 %v3885
        %v4320 = vunpack.c.l.b16 %v3886
        %v4321 = vunpack.c.h.b16 %v3886
        %v4322 = vunpack.c.l.b16 %v3887
        %v4323 = vunpack.c.h.b16 %v3887
        %v4324 = vunpack.c.l.b16 %v3888
        %v4325 = vunpack.c.h.b16 %v3888
        %v4326 = vunpack.c.l.b16 %v3889
        %v4327 = vunpack.c.h.b16 %v3889
        %v4328 = vunpack.c.l.b16 %v3890
        %v4329 = vunpack.c.h.b16 %v3890
        %v4330 = vunpack.c.l.b16 %v3891
        %v4331 = vunpack.c.h.b16 %v3891
        %v4332 = vunpack.c.l.b16 %v3892
        %v4333 = vunpack.c.h.b16 %v3892
        %v4334 = vunpack.c.l.b16 %v3893
        %v4335 = vunpack.c.h.b16 %v3893
        %v4336 = vunpack.c.l.b16 %v3894
        %v4337 = vunpack.c.h.b16 %v3894
        %v4338 = vunpack.c.l.b16 %v3895
        %v4339 = vunpack.c.h.b16 %v3895
        %v4340 = vunpack.c.l.b16 %v3896
        %v4341 = vunpack.c.h.b16 %v3896
        %v4342 = vunpack.c.l.b16 %v3897
        %v4343 = vunpack.c.h.b16 %v3897
        %v4344 = vunpack.c.l.b16 %v3898
        %v4345 = vunpack.c.h.b16 %v3898
        %v4346 = vunpack.c.l.b16 %v3899
        %v4347 = vunpack.c.h.b16 %v3899
        %v4348 = vunpack.c.l.b16 %v3900
        %v4349 = vunpack.c.h.b16 %v3900
        %v4350 = vunpack.c.l.b16 %v3901
        %v4351 = vunpack.c.h.b16 %v3901
        %v4352 = vunpack.c.l.b16 %v3902
        %v4353 = vunpack.c.h.b16 %v3902
        %v4354 = vunpack.c.l.b16 %v3903
        %v4355 = vunpack.c.h.b16 %v3903
        %v4356 = vunpack.c.l.b16 %v3904
        %v4357 = vunpack.c.h.b16 %v3904
        %v4358 = vunpack.c.l.b16 %v3905
        %v4359 = vunpack.c.h.b16 %v3905
        %v4360 = vunpack.c.l.b16 %v3906
        %v4361 = vunpack.c.h.b16 %v3906
        %v4362 = vunpack.c.l.b16 %v3907
        %v4363 = vunpack.c.h.b16 %v3907
        %v4364 = vunpack.c.l.b16 %v3908
        %v4365 = vunpack.c.h.b16 %v3908
        %v4366 = vunpack.c.l.b16 %v3909
        %v4367 = vunpack.c.h.b16 %v3909
        %v4368 = vunpack.c.l.b16 %v3910
        %v4369 = vunpack.c.h.b16 %v3910
        %v4370 = vunpack.c.l.b16 %v3911
        %v4371 = vunpack.c.h.b16 %v3911
        %v4372 = vunpack.c.l.b16 %v3912
        %v4373 = vunpack.c.h.b16 %v3912
        %v4374 = vunpack.c.l.b16 %v3913
        %v4375 = vunpack.c.h.b16 %v3913
        %v4376 = vunpack.c.l.b16 %v3914
        %v4377 = vunpack.c.h.b16 %v3914
        %v4378 = vunpack.c.l.b16 %v3915
        %v4379 = vunpack.c.h.b16 %v3915
        %v4380 = vunpack.c.l.b16 %v3916
        %v4381 = vunpack.c.h.b16 %v3916
        %v4382 = vunpack.c.l.b16 %v3917
        %v4383 = vunpack.c.h.b16 %v3917
        %v4384 = vunpack.c.l.b16 %v3918
        %v4385 = vunpack.c.h.b16 %v3918
        %v4386 = vunpack.c.l.b16 %v3919
        %v4387 = vunpack.c.h.b16 %v3919
        %v4388 = vunpack.c.l.b16 %v3920
        %v4389 = vunpack.c.h.b16 %v3920
        %v4390 = vunpack.c.l.b16 %v3921
        %v4391 = vunpack.c.h.b16 %v3921
        %v4392 = vunpack.c.l.b16 %v3922
        %v4393 = vunpack.c.h.b16 %v3922
        %v4394 = vunpack.c.l.b16 %v3923
        %v4395 = vunpack.c.h.b16 %v3923
        %v4396 = vunpack.c.l.b16 %v3924
        %v4397 = vunpack.c.h.b16 %v3924
        %v4398 = vunpack.c.l.b16 %v3925
        %v4399 = vunpack.c.h.b16 %v3925
        %v4400 = vunpack.c.l.b16 %v3926
        %v4401 = vunpack.c.h.b16 %v3926
        %v4402 = vunpack.c.l.b16 %v3927
        %v4403 = vunpack.c.h.b16 %v3927
        %v4404 = vunpack.c.l.b16 %v3928
        %v4405 = vunpack.c.h.b16 %v3928
        %v4406 = vunpack.c.l.b16 %v3929
        %v4407 = vunpack.c.h.b16 %v3929
        %v4408 = vunpack.c.l.b16 %v3930
        %v4409 = vunpack.c.h.b16 %v3930
        %v4410 = vunpack.c.l.b16 %v3931
        %v4411 = vunpack.c.h.b16 %v3931
        %v4412 = vunpack.c.l.b16 %v3932
        %v4413 = vunpack.c.h.b16 %v3932
        %v4414 = vunpack.c.l.b16 %v3933
        %v4415 = vunpack.c.h.b16 %v3933
        %v4416 = vunpack.c.l.b16 %v3934
        %v4417 = vunpack.c.h.b16 %v3934
        %v4418 = vunpack.c.l.b16 %v3935
        %v4419 = vunpack.c.h.b16 %v3935
        %v4420 = vunpack.c.l.b16 %v3936
        %v4421 = vunpack.c.h.b16 %v3936
        %v4422 = vunpack.c.l.b16 %v3937
        %v4423 = vunpack.c.h.b16 %v3937
        %v4424 = vunpack.c.l.b16 %v3938
        %v4425 = vunpack.c.h.b16 %v3938
        %v4426 = vunpack.c.l.b16 %v3939
        %v4427 = vunpack.c.h.b16 %v3939
        %v4428 = vunpack.c.l.b16 %v3940
        %v4429 = vunpack.c.h.b16 %v3940
        %v4430 = vunpack.c.l.b16 %v3941
        %v4431 = vunpack.c.h.b16 %v3941
        %v4432 = vunpack.c.l.b16 %v3942
        %v4433 = vunpack.c.h.b16 %v3942
        %v4434 = vunpack.c.l.b16 %v3943
        %v4435 = vunpack.c.h.b16 %v3943
        %v4436 = vunpack.c.l.b16 %v3944
        %v4437 = vunpack.c.h.b16 %v3944
        %v4438 = vunpack.c.l.b16 %v3945
        %v4439 = vunpack.c.h.b16 %v3945
        %v4440 = vunpack.c.l.b16 %v3946
        %v4441 = vunpack.c.h.b16 %v3946
        %v4442 = vunpack.c.l.b16 %v3947
        %v4443 = vunpack.c.h.b16 %v3947
        %v4444 = vunpack.c.l.b16 %v3948
        %v4445 = vunpack.c.h.b16 %v3948
        %v4446 = vunpack.c.l.b16 %v3949
        %v4447 = vunpack.c.h.b16 %v3949
        %v4448 = vunpack.c.l.b16 %v3950
        %v4449 = vunpack.c.h.b16 %v3950
        %v4450 = vunpack.c.l.b16 %v3951
        %v4451 = vunpack.c.h.b16 %v3951
        %v4452 = vunpack.c.l.b16 %v3952
        %v4453 = vunpack.c.h.b16 %v3952
        %v4454 = vunpack.c.l.b16 %v3953
        %v4455 = vunpack.c.h.b16 %v3953
        %v4456 = vunpack.c.l.b16 %v3954
        %v4457 = vunpack.c.h.b16 %v3954
        %v4458 = vunpack.c.l.b16 %v3955
        %v4459 = vunpack.c.h.b16 %v3955
        %v4460 = vunpack.c.l.b16 %v3956
        %v4461 = vunpack.c.h.b16 %v3956
        %v4462 = vunpack.c.l.b16 %v3957
        %v4463 = vunpack.c.h.b16 %v3957
        %v4464 = vunpack.c.l.b16 %v3958
        %v4465 = vunpack.c.h.b16 %v3958
        %v4466 = vunpack.c.l.b16 %v3959
        %v4467 = vunpack.c.h.b16 %v3959
        %v4468 = vunpack.c.l.b16 %v3960
        %v4469 = vunpack.c.h.b16 %v3960
        %v4470 = vunpack.c.l.b16 %v3961
        %v4471 = vunpack.c.h.b16 %v3961
        %v4472 = vpack.c.b16 %v4156, %v4152
        %v4473 = vpack.c.b16 %v4157, %v4153
        %v4474 = vpack.c.b16 %v4158, %v4154
        %v4475 = vpack.c.b16 %v4159, %v4155
        %v4476 = vpack.c.b16 %v4164, %v4160
        %v4477 = vpack.c.b16 %v4165, %v4161
        %v4478 = vpack.c.b16 %v4166, %v4162
        %v4479 = vpack.c.b16 %v4167, %v4163
        %v4480 = vpack.c.b16 %v4172, %v4168
        %v4481 = vpack.c.b16 %v4173, %v4169
        %v4482 = vpack.c.b16 %v4174, %v4170
        %v4483 = vpack.c.b16 %v4175, %v4171
        %v4484 = vpack.c.b16 %v4180, %v4176
        %v4485 = vpack.c.b16 %v4181, %v4177
        %v4486 = vpack.c.b16 %v4182, %v4178
        %v4487 = vpack.c.b16 %v4183, %v4179
        %v4488 = vpack.c.b16 %v4188, %v4184
        %v4489 = vpack.c.b16 %v4189, %v4185
        %v4490 = vpack.c.b16 %v4190, %v4186
        %v4491 = vpack.c.b16 %v4191, %v4187
        %v4492 = vpack.c.b16 %v4196, %v4192
        %v4493 = vpack.c.b16 %v4197, %v4193
        %v4494 = vpack.c.b16 %v4198, %v4194
        %v4495 = vpack.c.b16 %v4199, %v4195
        %v4496 = vpack.c.b16 %v4204, %v4200
        %v4497 = vpack.c.b16 %v4205, %v4201
        %v4498 = vpack.c.b16 %v4206, %v4202
        %v4499 = vpack.c.b16 %v4207, %v4203
        %v4500 = vpack.c.b16 %v4212, %v4208
        %v4501 = vpack.c.b16 %v4213, %v4209
        %v4502 = vpack.c.b16 %v4214, %v4210
        %v4503 = vpack.c.b16 %v4215, %v4211
        %v4504 = vpack.c.b16 %v4220, %v4216
        %v4505 = vpack.c.b16 %v4221, %v4217
        %v4506 = vpack.c.b16 %v4222, %v4218
        %v4507 = vpack.c.b16 %v4223, %v4219
        %v4508 = vpack.c.b16 %v4228, %v4224
        %v4509 = vpack.c.b16 %v4229, %v4225
        %v4510 = vpack.c.b16 %v4230, %v4226
        %v4511 = vpack.c.b16 %v4231, %v4227
        %v4512 = vpack.c.b16 %v4236, %v4232
        %v4513 = vpack.c.b16 %v4237, %v4233
        %v4514 = vpack.c.b16 %v4238, %v4234
        %v4515 = vpack.c.b16 %v4239, %v4235
        %v4516 = vpack.c.b16 %v4244, %v4240
        %v4517 = vpack.c.b16 %v4245, %v4241
        %v4518 = vpack.c.b16 %v4246, %v4242
        %v4519 = vpack.c.b16 %v4247, %v4243
        %v4520 = vpack.c.b16 %v4252, %v4248
        %v4521 = vpack.c.b16 %v4253, %v4249
        %v4522 = vpack.c.b16 %v4254, %v4250
        %v4523 = vpack.c.b16 %v4255, %v4251
        %v4524 = vpack.c.b16 %v4260, %v4256
        %v4525 = vpack.c.b16 %v4261, %v4257
        %v4526 = vpack.c.b16 %v4262, %v4258
        %v4527 = vpack.c.b16 %v4263, %v4259
        %v4528 = vpack.c.b16 %v4268, %v4264
        %v4529 = vpack.c.b16 %v4269, %v4265
        %v4530 = vpack.c.b16 %v4270, %v4266
        %v4531 = vpack.c.b16 %v4271, %v4267
        %v4532 = vpack.c.b16 %v4276, %v4272
        %v4533 = vpack.c.b16 %v4277, %v4273
        %v4534 = vpack.c.b16 %v4278, %v4274
        %v4535 = vpack.c.b16 %v4279, %v4275
        %v4536 = vpack.c.b16 %v4284, %v4280
        %v4537 = vpack.c.b16 %v4285, %v4281
        %v4538 = vpack.c.b16 %v4286, %v4282
        %v4539 = vpack.c.b16 %v4287, %v4283
        %v4540 = vpack.c.b16 %v4292, %v4288
        %v4541 = vpack.c.b16 %v4293, %v4289
        %v4542 = vpack.c.b16 %v4294, %v4290
        %v4543 = vpack.c.b16 %v4295, %v4291
        %v4544 = vpack.c.b16 %v4300, %v4296
        %v4545 = vpack.c.b16 %v4301, %v4297
        %v4546 = vpack.c.b16 %v4302, %v4298
        %v4547 = vpack.c.b16 %v4303, %v4299
        %v4548 = vpack.c.b16 %v4308, %v4304
        %v4549 = vpack.c.b16 %v4309, %v4305
        %v4550 = vpack.c.b16 %v4310, %v4306
        %v4551 = vpack.c.b16 %v4311, %v4307
        %v4552 = vpack.c.b16 %v4316, %v4312
        %v4553 = vpack.c.b16 %v4317, %v4313
        %v4554 = vpack.c.b16 %v4318, %v4314
        %v4555 = vpack.c.b16 %v4319, %v4315
        %v4556 = vpack.c.b16 %v4324, %v4320
        %v4557 = vpack.c.b16 %v4325, %v4321
        %v4558 = vpack.c.b16 %v4326, %v4322
        %v4559 = vpack.c.b16 %v4327, %v4323
        %v4560 = vpack.c.b16 %v4332, %v4328
        %v4561 = vpack.c.b16 %v4333, %v4329
        %v4562 = vpack.c.b16 %v4334, %v4330
        %v4563 = vpack.c.b16 %v4335, %v4331
        %v4564 = vpack.c.b16 %v4340, %v4336
        %v4565 = vpack.c.b16 %v4341, %v4337
        %v4566 = vpack.c.b16 %v4342, %v4338
        %v4567 = vpack.c.b16 %v4343, %v4339
        %v4568 = vpack.c.b16 %v4348, %v4344
        %v4569 = vpack.c.b16 %v4349, %v4345
        %v4570 = vpack.c.b16 %v4350, %v4346
        %v4571 = vpack.c.b16 %v4351, %v4347
        %v4572 = vpack.c.b16 %v4356, %v4352
        %v4573 = vpack.c.b16 %v4357, %v4353
        %v4574 = vpack.c.b16 %v4358, %v4354
        %v4575 = vpack.c.b16 %v4359, %v4355
        %v4576 = vpack.c.b16 %v4364, %v4360
        %v4577 = vpack.c.b16 %v4365, %v4361
        %v4578 = vpack.c.b16 %v4366, %v4362
        %v4579 = vpack.c.b16 %v4367, %v4363
        %v4580 = vpack.c.b16 %v4372, %v4368
        %v4581 = vpack.c.b16 %v4373, %v4369
        %v4582 = vpack.c.b16 %v4374, %v4370
        %v4583 = vpack.c.b16 %v4375, %v4371
        %v4584 = vpack.c.b16 %v4380, %v4376
        %v4585 = vpack.c.b16 %v4381, %v4377
        %v4586 = vpack.c.b16 %v4382, %v4378
        %v4587 = vpack.c.b16 %v4383, %v4379
        %v4588 = vpack.c.b16 %v4388, %v4384
        %v4589 = vpack.c.b16 %v4389, %v4385
        %v4590 = vpack.c.b16 %v4390, %v4386
        %v4591 = vpack.c.b16 %v4391, %v4387
        %v4592 = vpack.c.b16 %v4396, %v4392
        %v4593 = vpack.c.b16 %v4397, %v4393
        %v4594 = vpack.c.b16 %v4398, %v4394
        %v4595 = vpack.c.b16 %v4399, %v4395
        %v4596 = vpack.c.b16 %v4404, %v4400
        %v4597 = vpack.c.b16 %v4405, %v4401
        %v4598 = vpack.c.b16 %v4406, %v4402
        %v4599 = vpack.c.b16 %v4407, %v4403
        %v4600 = vpack.c.b16 %v4412, %v4408
        %v4601 = vpack.c.b16 %v4413, %v4409
        %v4602 = vpack.c.b16 %v4414, %v4410
        %v4603 = vpack.c.b16 %v4415, %v4411
        %v4604 = vpack.c.b16 %v4420, %v4416
        %v4605 = vpack.c.b16 %v4421, %v4417
        %v4606 = vpack.c.b16 %v4422, %v4418
        %v4607 = vpack.c.b16 %v4423, %v4419
        %v4608 = vpack.c.b16 %v4428, %v4424
        %v4609 = vpack.c.b16 %v4429, %v4425
        %v4610 = vpack.c.b16 %v4430, %v4426
        %v4611 = vpack.c.b16 %v4431, %v4427
        %v4612 = vpack.c.b16 %v4436, %v4432
        %v4613 = vpack.c.b16 %v4437, %v4433
        %v4614 = vpack.c.b16 %v4438, %v4434
        %v4615 = vpack.c.b16 %v4439, %v4435
        %v4616 = vpack.c.b16 %v4444, %v4440
        %v4617 = vpack.c.b16 %v4445, %v4441
        %v4618 = vpack.c.b16 %v4446, %v4442
        %v4619 = vpack.c.b16 %v4447, %v4443
        %v4620 = vpack.c.b16 %v4452, %v4448
        %v4621 = vpack.c.b16 %v4453, %v4449
        %v4622 = vpack.c.b16 %v4454, %v4450
        %v4623 = vpack.c.b16 %v4455, %v4451
        %v4624 = vpack.c.b16 %v4460, %v4456
        %v4625 = vpack.c.b16 %v4461, %v4457
        %v4626 = vpack.c.b16 %v4462, %v4458
        %v4627 = vpack.c.b16 %v4463, %v4459
        %v4628 = vpack.c.b16 %v4468, %v4464
        %v4629 = vpack.c.b16 %v4469, %v4465
        %v4630 = vpack.c.b16 %v4470, %v4466
        %v4631 = vpack.c.b16 %v4471, %v4467
        %4792 = vmatprep.subr.bf16.mxu0 %v4473
        %4793 = vmatpush1.bf16.msra.mxu0 %v4472
        %4794 = vmatprep.subr.bf16.mxu0 %v4477
        %4795 = vmatpush1.bf16.msra.mxu0 %v4476
        %4796 = vmatprep.subr.bf16.mxu0 %v4481
        %4797 = vmatpush1.bf16.msra.mxu0 %v4480
        %4798 = vmatprep.subr.bf16.mxu0 %v4485
        %4799 = vmatpush1.bf16.msra.mxu0 %v4484
        %4800 = vmatprep.subr.bf16.mxu0 %v4489
        %4801 = vmatpush1.bf16.msra.mxu0 %v4488
        %4802 = vmatprep.subr.bf16.mxu0 %v4493
        %4803 = vmatpush1.bf16.msra.mxu0 %v4492
        %4804 = vmatprep.subr.bf16.mxu0 %v4497
        %4805 = vmatpush1.bf16.msra.mxu0 %v4496
        %4806 = vmatprep.subr.bf16.mxu0 %v4501
        %4807 = vmatpush1.bf16.msra.mxu0 %v4500
        %4808 = vmatprep.subr.bf16.mxu0 %v4505
        %4809 = vmatpush1.bf16.msra.mxu0 %v4504
        %4810 = vmatprep.subr.bf16.mxu0 %v4509
        %4811 = vmatpush1.bf16.msra.mxu0 %v4508
        %4812 = vmatprep.subr.bf16.mxu0 %v4513
        %4813 = vmatpush1.bf16.msra.mxu0 %v4512
        %4814 = vmatprep.subr.bf16.mxu0 %v4517
        %4815 = vmatpush1.bf16.msra.mxu0 %v4516
        %4816 = vmatprep.subr.bf16.mxu0 %v4521
        %4817 = vmatpush1.bf16.msra.mxu0 %v4520
        %4818 = vmatprep.subr.bf16.mxu0 %v4525
        %4819 = vmatpush1.bf16.msra.mxu0 %v4524
        %4820 = vmatprep.subr.bf16.mxu0 %v4529
        %4821 = vmatpush1.bf16.msra.mxu0 %v4528
        %4822 = vmatprep.subr.bf16.mxu0 %v4533
        %4823 = vmatpush1.bf16.msra.mxu0 %v4532
        %4824 = vmatprep.mubr.bf16.mxu0 %v3977
        %4825 = vmatmul.mubr.bf16.gmra.mrb[0].mxu0 %v3974
        %v4826 = vpop.f32.mrb[0].mxu0
        %v4827 = vadd.f32 0.0, %v4826
        %v4828 = vpop.f32.mrb[0].mxu0
        %v4829 = vadd.f32 0.0, %v4828
        %v4830 = vpop.f32.mrb[0].mxu0
        %v4831 = vadd.f32 0.0, %v4830
        %v4832 = vpop.f32.mrb[0].mxu0
        %v4833 = vadd.f32 0.0, %v4832
        %4834 = vdwg.mxu0
        %4835 = vmatprep.subr.bf16.mxu0 %v4537
        %4836 = vmatpush1.bf16.msra.mxu0 %v4536
        %4837 = vmatprep.subr.bf16.mxu0 %v4541
        %4838 = vmatpush1.bf16.msra.mxu0 %v4540
        %4839 = vmatprep.subr.bf16.mxu0 %v4545
        %4840 = vmatpush1.bf16.msra.mxu0 %v4544
        %4841 = vmatprep.subr.bf16.mxu0 %v4549
        %4842 = vmatpush1.bf16.msra.mxu0 %v4548
        %4843 = vmatprep.subr.bf16.mxu0 %v4553
        %4844 = vmatpush1.bf16.msra.mxu0 %v4552
        %4845 = vmatprep.subr.bf16.mxu0 %v4557
        %4846 = vmatpush1.bf16.msra.mxu0 %v4556
        %4847 = vmatprep.subr.bf16.mxu0 %v4561
        %4848 = vmatpush1.bf16.msra.mxu0 %v4560
        %4849 = vmatprep.subr.bf16.mxu0 %v4565
        %4850 = vmatpush1.bf16.msra.mxu0 %v4564
        %4851 = vmatprep.subr.bf16.mxu0 %v4569
        %4852 = vmatpush1.bf16.msra.mxu0 %v4568
        %4853 = vmatprep.subr.bf16.mxu0 %v4573
        %4854 = vmatpush1.bf16.msra.mxu0 %v4572
        %4855 = vmatprep.subr.bf16.mxu0 %v4577
        %4856 = vmatpush1.bf16.msra.mxu0 %v4576
        %4857 = vmatprep.subr.bf16.mxu0 %v4581
        %4858 = vmatpush1.bf16.msra.mxu0 %v4580
        %4859 = vmatprep.subr.bf16.mxu0 %v4585
        %4860 = vmatpush1.bf16.msra.mxu0 %v4584
        %4861 = vmatprep.subr.bf16.mxu0 %v4589
        %4862 = vmatpush1.bf16.msra.mxu0 %v4588
        %4863 = vmatprep.subr.bf16.mxu0 %v4593
        %4864 = vmatpush1.bf16.msra.mxu0 %v4592
        %4865 = vmatprep.subr.bf16.mxu0 %v4597
        %4866 = vmatpush1.bf16.msra.mxu0 %v4596
        %4867 = vmatprep.mubr.bf16.mxu0 %v3983
        %4868 = vmatmul.mubr.bf16.gmra.mrb[0].mxu0 %v3980
        %v4869 = vpop.f32.mrb[0].mxu0
        %v4870 = vadd.f32 %v4827, %v4869
        %v4871 = vpop.f32.mrb[0].mxu0
        %v4872 = vadd.f32 %v4829, %v4871
        %v4873 = vpop.f32.mrb[0].mxu0
        %v4874 = vadd.f32 %v4831, %v4873
        %v4875 = vpop.f32.mrb[0].mxu0
        %v4876 = vadd.f32 %v4833, %v4875
        %4877 = vdwg.mxu0
        %4878 = vmatprep.subr.bf16.mxu0 %v4601
        %4879 = vmatpush1.bf16.msra.mxu0 %v4600
        %4880 = vmatprep.subr.bf16.mxu0 %v4605
        %4881 = vmatpush1.bf16.msra.mxu0 %v4604
        %4882 = vmatprep.subr.bf16.mxu0 %v4609
        %4883 = vmatpush1.bf16.msra.mxu0 %v4608
        %4884 = vmatprep.subr.bf16.mxu0 %v4613
        %4885 = vmatpush1.bf16.msra.mxu0 %v4612
        %4886 = vmatprep.subr.bf16.mxu0 %v4617
        %4887 = vmatpush1.bf16.msra.mxu0 %v4616
        %4888 = vmatprep.subr.bf16.mxu0 %v4621
        %4889 = vmatpush1.bf16.msra.mxu0 %v4620
        %4890 = vmatprep.subr.bf16.mxu0 %v4625
        %4891 = vmatpush1.bf16.msra.mxu0 %v4624
        %4892 = vmatprep.subr.bf16.mxu0 %v4629
        %4893 = vmatpush1.bf16.msra.mxu0 %v4628
        %4894 = vmatprep.subr.bf16.mxu0 0
        %4895 = vmatpush1.bf16.msra.mxu0 0
        %4896 = vmatprep.subr.bf16.mxu0 0
        %4897 = vmatpush1.bf16.msra.mxu0 0
        %4898 = vmatprep.subr.bf16.mxu0 0
        %4899 = vmatpush1.bf16.msra.mxu0 0
        %4900 = vmatprep.subr.bf16.mxu0 0
        %4901 = vmatpush1.bf16.msra.mxu0 0
        %4902 = vmatprep.subr.bf16.mxu0 0
        %4903 = vmatpush1.bf16.msra.mxu0 0
        %4904 = vmatprep.subr.bf16.mxu0 0
        %4905 = vmatpush1.bf16.msra.mxu0 0
        %4906 = vmatprep.subr.bf16.mxu0 0
        %4907 = vmatpush1.bf16.msra.mxu0 0
        %4908 = vmatprep.subr.bf16.mxu0 0
        %4909 = vmatpush1.bf16.msra.mxu0 0
        %4910 = vmatprep.mubr.bf16.mxu0 0
        %4911 = vmatmul.mubr.bf16.gmra.mrb[0].mxu0 %v3986
        %v4912 = vpop.f32.mrb[0].mxu0
        %v4913 = vadd.f32 %v4870, %v4912
        %v4914 = vpop.f32.mrb[0].mxu0
        %v4915 = vadd.f32 %v4872, %v4914
        %v4916 = vpop.f32.mrb[0].mxu0
        %v4917 = vadd.f32 %v4874, %v4916
        %v4918 = vpop.f32.mrb[0].mxu0
        %v4919 = vadd.f32 %v4876, %v4918
        %4920 = vdwg.mxu0
        %4921 = vmatprep.subr.bf16.mxu0 %v4475
        %4922 = vmatpush1.bf16.msra.mxu0 %v4474
        %4923 = vmatprep.subr.bf16.mxu0 %v4479
        %4924 = vmatpush1.bf16.msra.mxu0 %v4478
        %4925 = vmatprep.subr.bf16.mxu0 %v4483
        %4926 = vmatpush1.bf16.msra.mxu0 %v4482
        %4927 = vmatprep.subr.bf16.mxu0 %v4487
        %4928 = vmatpush1.bf16.msra.mxu0 %v4486
        %4929 = vmatprep.subr.bf16.mxu0 %v4491
        %4930 = vmatpush1.bf16.msra.mxu0 %v4490
        %4931 = vmatprep.subr.bf16.mxu0 %v4495
        %4932 = vmatpush1.bf16.msra.mxu0 %v4494
        %4933 = vmatprep.subr.bf16.mxu0 %v4499
        %4934 = vmatpush1.bf16.msra.mxu0 %v4498
        %4935 = vmatprep.subr.bf16.mxu0 %v4503
        %4936 = vmatpush1.bf16.msra.mxu0 %v4502
        %4937 = vmatprep.subr.bf16.mxu0 %v4507
        %4938 = vmatpush1.bf16.msra.mxu0 %v4506
        %4939 = vmatprep.subr.bf16.mxu0 %v4511
        %4940 = vmatpush1.bf16.msra.mxu0 %v4510
        %4941 = vmatprep.subr.bf16.mxu0 %v4515
        %4942 = vmatpush1.bf16.msra.mxu0 %v4514
        %4943 = vmatprep.subr.bf16.mxu0 %v4519
        %4944 = vmatpush1.bf16.msra.mxu0 %v4518
        %4945 = vmatprep.subr.bf16.mxu0 %v4523
        %4946 = vmatpush1.bf16.msra.mxu0 %v4522
        %4947 = vmatprep.subr.bf16.mxu0 %v4527
        %4948 = vmatpush1.bf16.msra.mxu0 %v4526
        %4949 = vmatprep.subr.bf16.mxu0 %v4531
        %4950 = vmatpush1.bf16.msra.mxu0 %v4530
        %4951 = vmatprep.subr.bf16.mxu0 %v4535
        %4952 = vmatpush1.bf16.msra.mxu0 %v4534
        %4953 = vmatprep.mubr.bf16.mxu0 %v3977
        %4954 = vmatmul.mubr.bf16.gmra.mrb[0].mxu0 %v3974
        %v4955 = vpop.f32.mrb[0].mxu0
        %v4956 = vadd.f32 0.0, %v4955
        %v4957 = vpop.f32.mrb[0].mxu0
        %v4958 = vadd.f32 0.0, %v4957
        %v4959 = vpop.f32.mrb[0].mxu0
        %v4960 = vadd.f32 0.0, %v4959
        %v4961 = vpop.f32.mrb[0].mxu0
        %v4962 = vadd.f32 0.0, %v4961
        %4963 = vdwg.mxu0
        %4964 = vmatprep.subr.bf16.mxu0 %v4539
        %4965 = vmatpush1.bf16.msra.mxu0 %v4538
        %4966 = vmatprep.subr.bf16.mxu0 %v4543
        %4967 = vmatpush1.bf16.msra.mxu0 %v4542
        %4968 = vmatprep.subr.bf16.mxu0 %v4547
        %4969 = vmatpush1.bf16.msra.mxu0 %v4546
        %4970 = vmatprep.subr.bf16.mxu0 %v4551
        %4971 = vmatpush1.bf16.msra.mxu0 %v4550
        %4972 = vmatprep.subr.bf16.mxu0 %v4555
        %4973 = vmatpush1.bf16.msra.mxu0 %v4554
        %4974 = vmatprep.subr.bf16.mxu0 %v4559
        %4975 = vmatpush1.bf16.msra.mxu0 %v4558
        %4976 = vmatprep.subr.bf16.mxu0 %v4563
        %4977 = vmatpush1.bf16.msra.mxu0 %v4562
        %4978 = vmatprep.subr.bf16.mxu0 %v4567
        %4979 = vmatpush1.bf16.msra.mxu0 %v4566
        %4980 = vmatprep.subr.bf16.mxu0 %v4571
        %4981 = vmatpush1.bf16.msra.mxu0 %v4570
        %4982 = vmatprep.subr.bf16.mxu0 %v4575
        %4983 = vmatpush1.bf16.msra.mxu0 %v4574
        %4984 = vmatprep.subr.bf16.mxu0 %v4579
        %4985 = vmatpush1.bf16.msra.mxu0 %v4578
        %4986 = vmatprep.subr.bf16.mxu0 %v4583
        %4987 = vmatpush1.bf16.msra.mxu0 %v4582
        %4988 = vmatprep.subr.bf16.mxu0 %v4587
        %4989 = vmatpush1.bf16.msra.mxu0 %v4586
        %4990 = vmatprep.subr.bf16.mxu0 %v4591
        %4991 = vmatpush1.bf16.msra.mxu0 %v4590
        %4992 = vmatprep.subr.bf16.mxu0 %v4595
        %4993 = vmatpush1.bf16.msra.mxu0 %v4594
        %4994 = vmatprep.subr.bf16.mxu0 %v4599
        %4995 = vmatpush1.bf16.msra.mxu0 %v4598
        %4996 = vmatprep.mubr.bf16.mxu0 %v3983
        %4997 = vmatmul.mubr.bf16.gmra.mrb[0].mxu0 %v3980
        %v4998 = vpop.f32.mrb[0].mxu0
        %v4999 = vadd.f32 %v4956, %v4998
        %v5000 = vpop.f32.mrb[0].mxu0
        %v5001 = vadd.f32 %v4958, %v5000
        %v5002 = vpop.f32.mrb[0].mxu0
        %v5003 = vadd.f32 %v4960, %v5002
        %v5004 = vpop.f32.mrb[0].mxu0
        %v5005 = vadd.f32 %v4962, %v5004
        %5006 = vdwg.mxu0
        %5007 = vmatprep.subr.bf16.mxu0 %v4603
        %5008 = vmatpush1.bf16.msra.mxu0 %v4602
        %5009 = vmatprep.subr.bf16.mxu0 %v4607
        %5010 = vmatpush1.bf16.msra.mxu0 %v4606
        %5011 = vmatprep.subr.bf16.mxu0 %v4611
        %5012 = vmatpush1.bf16.msra.mxu0 %v4610
        %5013 = vmatprep.subr.bf16.mxu0 %v4615
        %5014 = vmatpush1.bf16.msra.mxu0 %v4614
        %5015 = vmatprep.subr.bf16.mxu0 %v4619
        %5016 = vmatpush1.bf16.msra.mxu0 %v4618
        %5017 = vmatprep.subr.bf16.mxu0 %v4623
        %5018 = vmatpush1.bf16.msra.mxu0 %v4622
        %5019 = vmatprep.subr.bf16.mxu0 %v4627
        %5020 = vmatpush1.bf16.msra.mxu0 %v4626
        %5021 = vmatprep.subr.bf16.mxu0 %v4631
        %5022 = vmatpush1.bf16.msra.mxu0 %v4630
        %5023 = vmatprep.subr.bf16.mxu0 0
        %5024 = vmatpush1.bf16.msra.mxu0 0
        %5025 = vmatprep.subr.bf16.mxu0 0
        %5026 = vmatpush1.bf16.msra.mxu0 0
        %5027 = vmatprep.subr.bf16.mxu0 0
        %5028 = vmatpush1.bf16.msra.mxu0 0
        %5029 = vmatprep.subr.bf16.mxu0 0
        %5030 = vmatpush1.bf16.msra.mxu0 0
        %5031 = vmatprep.subr.bf16.mxu0 0
        %5032 = vmatpush1.bf16.msra.mxu0 0
        %5033 = vmatprep.subr.bf16.mxu0 0
        %5034 = vmatpush1.bf16.msra.mxu0 0
        %5035 = vmatprep.subr.bf16.mxu0 0
        %5036 = vmatpush1.bf16.msra.mxu0 0
        %5037 = vmatprep.subr.bf16.mxu0 0
        %5038 = vmatpush1.bf16.msra.mxu0 0
        %5039 = vmatprep.mubr.bf16.mxu0 0
        %5040 = vmatmul.mubr.bf16.gmra.mrb[0].mxu0 %v3986
        %v5041 = vpop.f32.mrb[0].mxu0
        %v5042 = vadd.f32 %v4999, %v5041
        %v5043 = vpop.f32.mrb[0].mxu0
        %v5044 = vadd.f32 %v5001, %v5043
        %v5045 = vpop.f32.mrb[0].mxu0
        %v5046 = vadd.f32 %v5003, %v5045
        %v5047 = vpop.f32.mrb[0].mxu0
        %v5048 = vadd.f32 %v5005, %v5047
        %5049 = vdwg.mxu0
        %v5050 = vadd.f32 %v3644, %v4913
        %v5051 = vadd.f32 %v3646, %v4915
        %v5052 = vadd.f32 %v3773, %v5042
        %v5053 = vadd.f32 %v3775, %v5044
        %v5054 = vadd.f32 %v3648, %v4917
        %v5055 = vadd.f32 %v3650, %v4919
        %v5056 = vadd.f32 %v3777, %v5046
        %v5057 = vadd.f32 %v3779, %v5048
        %v5058 = vld [vmem:[#allocation8] sm:$0xff]
        %v5059 = vld [vmem:[#allocation8 + $0x8] sm:$0xff]
        %v5060 = vld [vmem:[#allocation8 + $0x10] sm:$0xff]
        %v5061 = vld [vmem:[#allocation8 + $0x18] sm:$0xff]
        %v5062 = vld [vmem:[#allocation8 + $0x20] sm:$0xff]
        %v5063 = vld [vmem:[#allocation8 + $0x28] sm:$0xff]
        %v5064 = vld [vmem:[#allocation8 + $0x30] sm:$0xff]
        %v5065 = vld [vmem:[#allocation8 + $0x38] sm:$0xff]
        %v5066 = vld [vmem:[#allocation8 + $0x40] sm:$0xff]
        %v5067 = vld [vmem:[#allocation8 + $0x48] sm:$0xff]
        %v5068 = vld [vmem:[#allocation8 + $0x50] sm:$0xff]
        %v5069 = vld [vmem:[#allocation8 + $0x58] sm:$0xff]
        %v5070 = vld [vmem:[#allocation8 + $0x60] sm:$0xff]
        %v5071 = vld [vmem:[#allocation8 + $0x68] sm:$0xff]
        %v5072 = vld [vmem:[#allocation8 + $0x70] sm:$0xff]
        %v5073 = vld [vmem:[#allocation8 + $0x78] sm:$0xff]
        %v5090 = vunpack.c.l.b16 %v5058
        %v5091 = vunpack.c.h.b16 %v5058
        %v5092 = vunpack.c.l.b16 %v5059
        %v5093 = vunpack.c.h.b16 %v5059
        %v5094 = vunpack.c.l.b16 %v5060
        %v5095 = vunpack.c.h.b16 %v5060
        %v5096 = vunpack.c.l.b16 %v5061
        %v5097 = vunpack.c.h.b16 %v5061
        %v5098 = vunpack.c.l.b16 %v5062
        %v5099 = vunpack.c.h.b16 %v5062
        %v5100 = vunpack.c.l.b16 %v5063
        %v5101 = vunpack.c.h.b16 %v5063
        %v5102 = vunpack.c.l.b16 %v5064
        %v5103 = vunpack.c.h.b16 %v5064
        %v5104 = vunpack.c.l.b16 %v5065
        %v5105 = vunpack.c.h.b16 %v5065
        %v5106 = vunpack.c.l.b16 %v5066
        %v5107 = vunpack.c.h.b16 %v5066
        %v5108 = vunpack.c.l.b16 %v5067
        %v5109 = vunpack.c.h.b16 %v5067
        %v5110 = vunpack.c.l.b16 %v5068
        %v5111 = vunpack.c.h.b16 %v5068
        %v5112 = vunpack.c.l.b16 %v5069
        %v5113 = vunpack.c.h.b16 %v5069
        %v5114 = vunpack.c.l.b16 %v5070
        %v5115 = vunpack.c.h.b16 %v5070
        %v5116 = vunpack.c.l.b16 %v5071
        %v5117 = vunpack.c.h.b16 %v5071
        %v5118 = vunpack.c.l.b16 %v5072
        %v5119 = vunpack.c.h.b16 %v5072
        %v5120 = vunpack.c.l.b16 %v5073
        %v5121 = vunpack.c.h.b16 %v5073
        %v5122 = vpack.c.b16 %v5094, %v5090
        %v5123 = vpack.c.b16 %v5095, %v5091
        %v5124 = vpack.c.b16 %v5096, %v5092
        %v5125 = vpack.c.b16 %v5097, %v5093
        %v5126 = vpack.c.b16 %v5102, %v5098
        %v5127 = vpack.c.b16 %v5103, %v5099
        %v5128 = vpack.c.b16 %v5104, %v5100
        %v5129 = vpack.c.b16 %v5105, %v5101
        %v5130 = vpack.c.b16 %v5110, %v5106
        %v5131 = vpack.c.b16 %v5111, %v5107
        %v5132 = vpack.c.b16 %v5112, %v5108
        %v5133 = vpack.c.b16 %v5113, %v5109
        %v5134 = vpack.c.b16 %v5118, %v5114
        %v5135 = vpack.c.b16 %v5119, %v5115
        %v5136 = vpack.c.b16 %v5120, %v5116
        %v5137 = vpack.c.b16 %v5121, %v5117
        %5154 = vmatprep.subr.bf16.mxu0 %v5123
        %5155 = vmatpush1.bf16.msra.mxu0 %v5122
        %5156 = vmatprep.subr.bf16.mxu0 %v5127
        %5157 = vmatpush1.bf16.msra.mxu0 %v5126
        %5158 = vmatprep.subr.bf16.mxu0 %v5131
        %5159 = vmatpush1.bf16.msra.mxu0 %v5130
        %5160 = vmatprep.subr.bf16.mxu0 %v5135
        %5161 = vmatpush1.bf16.msra.mxu0 %v5134
        %5162 = vmatprep.subr.bf16.mxu0 0
        %5163 = vmatpush1.bf16.msra.mxu0 0
        %5164 = vmatprep.subr.bf16.mxu0 0
        %5165 = vmatpush1.bf16.msra.mxu0 0
        %5166 = vmatprep.subr.bf16.mxu0 0
        %5167 = vmatpush1.bf16.msra.mxu0 0
        %5168 = vmatprep.subr.bf16.mxu0 0
        %5169 = vmatpush1.bf16.msra.mxu0 0
        %5170 = vmatprep.subr.bf16.mxu0 0
        %5171 = vmatpush1.bf16.msra.mxu0 0
        %5172 = vmatprep.subr.bf16.mxu0 0
        %5173 = vmatpush1.bf16.msra.mxu0 0
        %5174 = vmatprep.subr.bf16.mxu0 0
        %5175 = vmatpush1.bf16.msra.mxu0 0
        %5176 = vmatprep.subr.bf16.mxu0 0
        %5177 = vmatpush1.bf16.msra.mxu0 0
        %5178 = vmatprep.subr.bf16.mxu0 0
        %5179 = vmatpush1.bf16.msra.mxu0 0
        %5180 = vmatprep.subr.bf16.mxu0 0
        %5181 = vmatpush1.bf16.msra.mxu0 0
        %5182 = vmatprep.subr.bf16.mxu0 0
        %5183 = vmatpush1.bf16.msra.mxu0 0
        %5184 = vmatprep.subr.bf16.mxu0 0
        %5185 = vmatpush1.bf16.msra.mxu0 0
        %5186 = vmatprep.mubr.bf16.mxu0 0
        %5187 = vmatmul.mubr.bf16.gmra.mrb[0].mxu0 %v495
        %v5188 = vpop.f32.mrb[0].mxu0
        %v5189 = vadd.f32 0.0, %v5188
        %v5190 = vpop.f32.mrb[0].mxu0
        %v5191 = vadd.f32 0.0, %v5190
        %v5192 = vpop.f32.mrb[0].mxu0
        %v5193 = vadd.f32 0.0, %v5192
        %v5194 = vpop.f32.mrb[0].mxu0
        %v5195 = vadd.f32 0.0, %v5194
        %5196 = vdwg.mxu0
        %5197 = vmatprep.subr.bf16.mxu0 %v5125
        %5198 = vmatpush1.bf16.msra.mxu0 %v5124
        %5199 = vmatprep.subr.bf16.mxu0 %v5129
        %5200 = vmatpush1.bf16.msra.mxu0 %v5128
        %5201 = vmatprep.subr.bf16.mxu0 %v5133
        %5202 = vmatpush1.bf16.msra.mxu0 %v5132
        %5203 = vmatprep.subr.bf16.mxu0 %v5137
        %5204 = vmatpush1.bf16.msra.mxu0 %v5136
        %5205 = vmatprep.subr.bf16.mxu0 0
        %5206 = vmatpush1.bf16.msra.mxu0 0
        %5207 = vmatprep.subr.bf16.mxu0 0
        %5208 = vmatpush1.bf16.msra.mxu0 0
        %5209 = vmatprep.subr.bf16.mxu0 0
        %5210 = vmatpush1.bf16.msra.mxu0 0
        %5211 = vmatprep.subr.bf16.mxu0 0
        %5212 = vmatpush1.bf16.msra.mxu0 0
        %5213 = vmatprep.subr.bf16.mxu0 0
        %5214 = vmatpush1.bf16.msra.mxu0 0
        %5215 = vmatprep.subr.bf16.mxu0 0
        %5216 = vmatpush1.bf16.msra.mxu0 0
        %5217 = vmatprep.subr.bf16.mxu0 0
        %5218 = vmatpush1.bf16.msra.mxu0 0
        %5219 = vmatprep.subr.bf16.mxu0 0
        %5220 = vmatpush1.bf16.msra.mxu0 0
        %5221 = vmatprep.subr.bf16.mxu0 0
        %5222 = vmatpush1.bf16.msra.mxu0 0
        %5223 = vmatprep.subr.bf16.mxu0 0
        %5224 = vmatpush1.bf16.msra.mxu0 0
        %5225 = vmatprep.subr.bf16.mxu0 0
        %5226 = vmatpush1.bf16.msra.mxu0 0
        %5227 = vmatprep.subr.bf16.mxu0 0
        %5228 = vmatpush1.bf16.msra.mxu0 0
        %5229 = vmatprep.mubr.bf16.mxu0 0
        %5230 = vmatmul.mubr.bf16.gmra.mrb[0].mxu0 %v495
        %v5231 = vpop.f32.mrb[0].mxu0
        %v5232 = vadd.f32 0.0, %v5231
        %v5233 = vpop.f32.mrb[0].mxu0
        %v5234 = vadd.f32 0.0, %v5233
        %v5235 = vpop.f32.mrb[0].mxu0
        %v5236 = vadd.f32 0.0, %v5235
        %v5237 = vpop.f32.mrb[0].mxu0
        %v5238 = vadd.f32 0.0, %v5237
        %5239 = vdwg.mxu0
        %v5240 = vadd.f32 %v5050, %v5189
        %v5241 = vadd.f32 %v5051, %v5191
        %v5242 = vadd.f32 %v5052, %v5232
        %v5243 = vadd.f32 %v5053, %v5234
        %v5244 = vadd.f32 %v5054, %v5193
        %v5245 = vadd.f32 %v5055, %v5195
        %v5246 = vadd.f32 %v5056, %v5236
        %v5247 = vadd.f32 %v5057, %v5238
        %v5248 = vld [vmem:[#allocation10] sm:$0xf]
        %v5250 = vlaneseq
        %v5251 = vshrl.u32 %v5250, 7
        %v5252 = vsub.s32 0, %v5251
        %v5253 = vrot.slane %v5248, %v5252
        %v5254 = vlaneseq
        %v5255 = vshrl.u32 %v5254, 7
        %v5256 = vsub.s32 1, %v5255
        %v5257 = vrot.slane %v5248, %v5256
        %v5258 = vlaneseq
        %v5259 = vshrl.u32 %v5258, 7
        %v5260 = vsub.s32 2, %v5259
        %v5261 = vrot.slane %v5248, %v5260
        %v5262 = vlaneseq
        %v5263 = vshrl.u32 %v5262, 7
        %v5264 = vsub.s32 3, %v5263
        %v5265 = vrot.slane %v5248, %v5264
        %v5270 = vadd.f32 %v5240, %v5253
        %v5271 = vadd.f32 %v5241, %v5257
        %v5272 = vadd.f32 %v5242, %v5261
        %v5273 = vadd.f32 %v5243, %v5265
        %v5274 = vadd.f32 %v5244, %v5253
        %v5275 = vadd.f32 %v5245, %v5257
        %v5276 = vadd.f32 %v5246, %v5261
        %v5277 = vadd.f32 %v5247, %v5265
        %v5278 = vmax.f32 %v5270, 0.0
        %v5279 = vmax.f32 %v5271, 0.0
        %v5280 = vmax.f32 %v5272, 0.0
        %v5281 = vmax.f32 %v5273, 0.0
        %v5282 = vmax.f32 %v5274, 0.0
        %v5283 = vmax.f32 %v5275, 0.0
        %v5284 = vmax.f32 %v5276, 0.0
        %v5285 = vmax.f32 %v5277, 0.0
        %5286 = vst [vmem:[%s320] sm:$0xff] %v5278
        %5287 = vst [vmem:[%s320 + $0x8] sm:$0xff] %v5279
        %5288 = vst [vmem:[%s320 + $0x10] sm:$0xff] %v5280
        %5289 = vst [vmem:[%s320 + $0x18] sm:$0xff] %v5281
        %5290 = vst [vmem:[%s320 + $0x20] sm:$0xff] %v5282
        %5291 = vst [vmem:[%s320 + $0x28] sm:$0xff] %v5283
        %5292 = vst [vmem:[%s320 + $0x30] sm:$0xff] %v5284
        %5293 = vst [vmem:[%s320 + $0x38] sm:$0xff] %v5285
        %p5294 = scmp.lt.s32.totalorder %s20, 1
        %s5295 = scalar_select %p5294, %s20, 1
        %s5296 = smul.addr %s5295, 8
        %s5297 = smul.addr %s5296, 8
        %s5298 = scalar_lea.vmem %s6, %s5297
        // Predicated region
        $region65: #{_layer_forward.1} parent=43 // pred_check
          %p5299 = pneg %p169
        $region66: #{_layer_forward.1} parent=43 // pred_check_branch
          %5301 = sbr.rel (%p5299) target = $region68
        $region67: #{_layer_forward.1} parent=43 // pred_region
          _
        $region68: #{_layer_forward.1} parent=43 // pred_fallthru
          _
      $region44: #{_layer_forward.1} parent=5 // pred_fallthru
        _
      %p5302 = scmp.le.s32.totalorder 2, %s15
      // Predicated region
      $region69: #{_layer_forward.1} parent=5 // pred_check
        %p5303 = pneg %p5302
      $region70: #{_layer_forward.1} parent=5 // pred_check_branch
        %5305 = sbr.rel (%p5303) target = $region72
      $region71: #{_layer_forward.1} parent=5 // pred_region
        %s5306 = ssub.s32 %s15, 2
        // Predicated region
        $region73: #{_layer_forward.1} parent=71 // pred_check
          %p5307 = pneg %p175
        $region74: #{_layer_forward.1} parent=71 // pred_check_branch
          %5309 = sbr.rel (%p5307) target = $region76
        $region75: #{_layer_forward.1} parent=71 // pred_region
          %p5310 = scmp.lt.s32.totalorder %s21, 1
          %s5311 = scalar_select %p5310, %s21, 1
          %s5312 = smul.addr %s5311, 8
          %s5313 = smul.addr %s5312, 8
          %s5314 = scalar_lea.vmem %s6, %s5313
        $region76: #{_layer_forward.1} parent=71 // pred_fallthru
          _
      $region72: #{_layer_forward.1} parent=5 // pred_fallthru
        _
    $region6: #{_layer_forward.1} parent=1 // loop_footer
      %s19 = sadd.s32 1, %s15
    $region7: #{_layer_forward.1} parent=1 // loop_footer_branch
      %14 = sbr.rel target = $region3
    $region8: #{_layer_forward.1} parent=1 // loop_exit
      _
    %5315 = vsyncpa [#allocation4], 1
    %s5316 = scalar_lea.sflag [#allocation4], 1
    %5317 = vsyncpa %s5316, 1
    %5318 = vsyncpa [#allocation6], 1
    %5319 = vsyncpa [#allocation9], 1

</llo_original>
